<compile_context>
chip_gen: v7x
topology: tpu7x:2x2x1
jax: 0.10.0
libtpu: 0.0.40
codegen_flags: <defaults>
</compile_context>

<pallas_src>
import jax
import jax.numpy as jnp
from jax.experimental import pallas as pl
from jax.experimental.pallas import tpu as pltpu

IN_FEATURES = 2
IN_PAD = 128      # layer-1 K padded to one full lane width for the MXU
HIDDEN = 512
LANES = 128


def mlp_kernel(x_ref,
               w1_ref, b1_ref,
               w2_ref, b2_ref,
               w3_ref, b3_ref,
               wo_ref, bo_ref,
               o_ref):
    # input layer: Linear(2 -> 512) as a K-padded (128) bf16 MXU matmul with
    # f32 accumulation + f32 bias.  No activation (matches the PyTorch forward).
    h = jnp.dot(x_ref[...], w1_ref[...],
                preferred_element_type=jnp.float32) + b1_ref[...]
    h = h.astype(jnp.bfloat16)                                     # (TB, 512)

    # hidden layer 0: Linear(512, 512) + tanh.  bf16 MXU operands, f32 accum,
    # bf16 bias-add + tanh (packed VPU vregs, bf16 EUP).
    h = jnp.tanh(
        jnp.dot(h, w2_ref[...],
                preferred_element_type=jnp.float32).astype(jnp.bfloat16)
        + b2_ref[...])

    # hidden layer 1: Linear(512, 512) + tanh
    h = jnp.tanh(
        jnp.dot(h, w3_ref[...],
                preferred_element_type=jnp.float32).astype(jnp.bfloat16)
        + b3_ref[...])

    # output layer: Linear(512, 1).  N == 1 -> bf16 VPU multiply, f32 lane
    # reduction on the (TB//128, 128, 512) view so the lane-dense output block
    # is produced directly (no relayout).  Bias is a scalar from SMEM.
    rows, lanes = o_ref.shape
    hw = (h * wo_ref[...]).astype(jnp.float32)                     # (TB, 512)
    out = jnp.sum(hw.reshape(rows, lanes, HIDDEN), axis=-1) + bo_ref[0, 0]
    o_ref[...] = out.astype(o_ref.dtype)


def _round_up(n, m):
    return ((n + m - 1) // m) * m


def mlp_forward(x, params, *, block_batch=4096):
    """x: (B, 2) float32.  params: weights stored (in, out), biases (1, out)."""
    B = x.shape[0]

    # Batch tile: one rounded-up tile for small B, else fixed 4096-row tiles.
    if B <= block_batch:
        tb = _round_up(max(B, 1), LANES)
        b_pad = tb
    else:
        tb = block_batch
        # TODO(synk): remainder tile / masked last tile instead of padding up
        # to a full tile (up to tb-1 rows of silent wasted compute).
        b_pad = _round_up(B, tb)
    num_tiles = b_pad // tb

    # lane-dense bf16 x, zero-padded to 128 input features (layer-1 on MXU).
    xp = jnp.pad(x.astype(jnp.bfloat16),
                 ((0, b_pad - B), (0, IN_PAD - IN_FEATURES)))

    w1 = jnp.pad(params["w1"].astype(jnp.bfloat16),
                 ((0, IN_PAD - IN_FEATURES), (0, 0)))              # (128, 512)
    b1 = params["b1"].reshape(1, HIDDEN).astype(jnp.float32)
    w2 = params["w2"].astype(jnp.bfloat16)                         # (512, 512)
    b2 = params["b2"].reshape(1, HIDDEN).astype(jnp.bfloat16)
    w3 = params["w3"].astype(jnp.bfloat16)
    b3 = params["b3"].reshape(1, HIDDEN).astype(jnp.bfloat16)
    wo = params["wo"].reshape(1, HIDDEN).astype(jnp.bfloat16)      # row vector
    bo = params["bo"].reshape(1, 1).astype(jnp.float32)            # -> SMEM

    const2d = lambda i: (0, 0)
    # Weights/biases never change across grid steps -> single buffer.
    resident = lambda shape: pl.BlockSpec(shape, const2d,
                                          pipeline_mode=pl.Buffered(1))

    grid_spec = pltpu.PrefetchScalarGridSpec(
        num_scalar_prefetch=0,
        grid=(num_tiles,),
        in_specs=[
            pl.BlockSpec((tb, IN_PAD), lambda i: (i, 0)),          # x (streamed)
            resident((IN_PAD, HIDDEN)),                            # w1
            resident((1, HIDDEN)),                                 # b1
            resident((HIDDEN, HIDDEN)),                            # w2
            resident((1, HIDDEN)),                                 # b2
            resident((HIDDEN, HIDDEN)),                            # w3
            resident((1, HIDDEN)),                                 # b3
            resident((1, HIDDEN)),                                 # wo row
            pl.BlockSpec(memory_space=pltpu.MemorySpace.SMEM),     # bo scalar
        ],
        out_specs=pl.BlockSpec((tb // LANES, LANES), lambda i: (i, 0)),
    )

    out = pl.pallas_call(
        mlp_kernel,
        out_shape=jax.ShapeDtypeStruct((b_pad // LANES, LANES), jnp.float32),
        grid_spec=grid_spec,
        compiler_params=pltpu.CompilerParams(
            dimension_semantics=("parallel",),
            vmem_limit_bytes=48 * 1024 * 1024,
        ),
    )(xp, w1, b1, w2, b2, w3, b3, wo, bo)

    return out.reshape(b_pad, 1)[:B]


def init_params(key):
    """Mimics PyTorch nn.Linear defaults: uniform(-1/sqrt(fan_in), +1/sqrt(fan_in));
    out_layer weight/bias zeroed as in the module's __init__."""
    def linear(key, fan_in, fan_out):
        kw, kb = jax.random.split(key)
        bound = 1.0 / jnp.sqrt(jnp.float32(fan_in))
        # stored (in, out) == transpose of PyTorch's (out, in)
        w = jax.random.uniform(kw, (fan_in, fan_out), jnp.float32, -bound, bound)
        b = jax.random.uniform(kb, (1, fan_out), jnp.float32, -bound, bound)
        return w, b

    k1, k2, k3 = jax.random.split(key, 3)
    w1, b1 = linear(k1, IN_FEATURES, HIDDEN)
    w2, b2 = linear(k2, HIDDEN, HIDDEN)
    w3, b3 = linear(k3, HIDDEN, HIDDEN)
    wo = jnp.zeros((HIDDEN, 1), jnp.float32)
    bo = jnp.zeros((1, 1), jnp.float32)
    return dict(w1=w1, b1=b1, w2=w2, b2=b2, w3=w3, b3=b3, wo=wo, bo=bo)


def mlp_reference(x, p):
    h = x @ p["w1"] + p["b1"]
    h = jnp.tanh(h @ p["w2"] + p["b2"])
    h = jnp.tanh(h @ p["w3"] + p["b3"])
    return h @ p["wo"] + p["bo"]


if __name__ == "__main__":
    key = jax.random.PRNGKey(0)
    kx, kp, kv = jax.random.split(key, 3)

    B = 8
    x = jax.random.normal(kx, (B, IN_FEATURES), jnp.float32)

    fwd = jax.jit(mlp_forward)

    # (1) Module-faithful params (out_layer zero-initialised, as in __init__).
    params = init_params(kp)
    out = jax.block_until_ready(fwd(x, params))
    ref = mlp_reference(x, params)
    assert out.shape == (B, 1)
    assert jnp.allclose(out, ref, atol=3e-2), "mismatch vs reference (module params)"

    # (2) Validation with a nonzero output layer so the reduction path is
    # actually exercised (bf16 activations/matmuls -> loose tolerance vs f32).
    kwo, kbo = jax.random.split(kv)
    bound = 1.0 / jnp.sqrt(jnp.float32(HIDDEN))
    vparams = dict(params)
    vparams["wo"] = jax.random.uniform(kwo, (HIDDEN, 1), jnp.float32, -bound, bound)
    vparams["bo"] = jax.random.uniform(kbo, (1, 1), jnp.float32, -bound, bound)
    out2 = jax.block_until_ready(fwd(x, vparams))
    ref2 = mlp_reference(x, vparams)
    assert jnp.allclose(out2, ref2, atol=3e-2, rtol=3e-2), \
        "mismatch vs reference (validation params)"

    print("KERNEL_OK")
</pallas_src>

<mosaic_0001>
module attributes {stable_mosaic.version = 11 : i64} {
  func.func @mlp_kernel(%arg0: i32, %arg1: memref<128x128xbf16, #tpu.memory_space<vmem>>, %arg2: memref<128x512xbf16, #tpu.memory_space<vmem>>, %arg3: memref<1x512xf32, #tpu.memory_space<vmem>>, %arg4: memref<512x512xbf16, #tpu.memory_space<vmem>>, %arg5: memref<1x512xbf16, #tpu.memory_space<vmem>>, %arg6: memref<512x512xbf16, #tpu.memory_space<vmem>>, %arg7: memref<1x512xbf16, #tpu.memory_space<vmem>>, %arg8: memref<1x512xbf16, #tpu.memory_space<vmem>>, %arg9: memref<1x1xf32, #tpu.memory_space<smem>>, %arg10: memref<1x128xf32, #tpu.memory_space<vmem>>) attributes {dimension_semantics = [#tpu.dimension_semantics<parallel>], iteration_bounds = array<i64: 1>, scalar_prefetch = 0 : i64, scratch_operands = 0 : i64, tpu.core_type = #tpu.core_type<tc>, window_params = [{transform_indices = @transform_0, window_bounds = array<i64: 128, 128>}, {pipeline_mode = #tpu.pipeline_mode<synchronous>, transform_indices = @transform_1, window_bounds = array<i64: 128, 512>}, {pipeline_mode = #tpu.pipeline_mode<synchronous>, transform_indices = @transform_2, window_bounds = array<i64: 1, 512>}, {pipeline_mode = #tpu.pipeline_mode<synchronous>, transform_indices = @transform_3, window_bounds = array<i64: 512, 512>}, {pipeline_mode = #tpu.pipeline_mode<synchronous>, transform_indices = @transform_4, window_bounds = array<i64: 1, 512>}, {pipeline_mode = #tpu.pipeline_mode<synchronous>, transform_indices = @transform_5, window_bounds = array<i64: 512, 512>}, {pipeline_mode = #tpu.pipeline_mode<synchronous>, transform_indices = @transform_6, window_bounds = array<i64: 1, 512>}, {pipeline_mode = #tpu.pipeline_mode<synchronous>, transform_indices = @transform_7, window_bounds = array<i64: 1, 512>}, {transform_indices = @transform_8, window_bounds = array<i64: 1, 1>}, {transform_indices = @transform_9, window_bounds = array<i64: 1, 128>}]} {
    %c0 = arith.constant 0 : index
    %c0_0 = arith.constant 0 : index
    %0 = vector.load %arg1[%c0, %c0_0] : memref<128x128xbf16, #tpu.memory_space<vmem>>, vector<128x128xbf16>
    %c0_1 = arith.constant 0 : index
    %c0_2 = arith.constant 0 : index
    %1 = vector.load %arg2[%c0_1, %c0_2] : memref<128x512xbf16, #tpu.memory_space<vmem>>, vector<128x512xbf16>
    %cst = arith.constant dense<0.000000e+00> : vector<128x512xf32>
    %2 = tpu.matmul %0, %1, %cst {dimension_numbers = #tpu.dot_dimension_numbers<[1], [0], [0], [1], [0, 0, 1, 1], [], []>} : vector<128x128xbf16>, vector<128x512xbf16>, vector<128x512xf32> -> vector<128x512xf32>
    %c0_3 = arith.constant 0 : index
    %c0_4 = arith.constant 0 : index
    %3 = vector.load %arg3[%c0_3, %c0_4] : memref<1x512xf32, #tpu.memory_space<vmem>>, vector<1x512xf32>
    %4 = vector.broadcast %3 : vector<1x512xf32> to vector<128x512xf32>
    %5 = arith.addf %2, %4 : vector<128x512xf32>
    %6 = arith.truncf %5 : vector<128x512xf32> to vector<128x512xbf16>
    %c0_5 = arith.constant 0 : index
    %c0_6 = arith.constant 0 : index
    %7 = vector.load %arg4[%c0_5, %c0_6] : memref<512x512xbf16, #tpu.memory_space<vmem>>, vector<512x512xbf16>
    %cst_7 = arith.constant dense<0.000000e+00> : vector<128x512xf32>
    %8 = tpu.matmul %6, %7, %cst_7 {dimension_numbers = #tpu.dot_dimension_numbers<[1], [0], [0], [1], [0, 0, 1, 1], [], []>} : vector<128x512xbf16>, vector<512x512xbf16>, vector<128x512xf32> -> vector<128x512xf32>
    %9 = arith.truncf %8 : vector<128x512xf32> to vector<128x512xbf16>
    %c0_8 = arith.constant 0 : index
    %c0_9 = arith.constant 0 : index
    %10 = vector.load %arg5[%c0_8, %c0_9] : memref<1x512xbf16, #tpu.memory_space<vmem>>, vector<1x512xbf16>
    %11 = vector.broadcast %10 : vector<1x512xbf16> to vector<128x512xbf16>
    %12 = arith.addf %9, %11 : vector<128x512xbf16>
    %13 = math.tanh %12 : vector<128x512xbf16>
    %c0_10 = arith.constant 0 : index
    %c0_11 = arith.constant 0 : index
    %14 = vector.load %arg6[%c0_10, %c0_11] : memref<512x512xbf16, #tpu.memory_space<vmem>>, vector<512x512xbf16>
    %cst_12 = arith.constant dense<0.000000e+00> : vector<128x512xf32>
    %15 = tpu.matmul %13, %14, %cst_12 {dimension_numbers = #tpu.dot_dimension_numbers<[1], [0], [0], [1], [0, 0, 1, 1], [], []>} : vector<128x512xbf16>, vector<512x512xbf16>, vector<128x512xf32> -> vector<128x512xf32>
    %16 = arith.truncf %15 : vector<128x512xf32> to vector<128x512xbf16>
    %c0_13 = arith.constant 0 : index
    %c0_14 = arith.constant 0 : index
    %17 = vector.load %arg7[%c0_13, %c0_14] : memref<1x512xbf16, #tpu.memory_space<vmem>>, vector<1x512xbf16>
    %18 = vector.broadcast %17 : vector<1x512xbf16> to vector<128x512xbf16>
    %19 = arith.addf %16, %18 : vector<128x512xbf16>
    %20 = math.tanh %19 : vector<128x512xbf16>
    %c0_15 = arith.constant 0 : index
    %c0_16 = arith.constant 0 : index
    %21 = vector.load %arg8[%c0_15, %c0_16] : memref<1x512xbf16, #tpu.memory_space<vmem>>, vector<1x512xbf16>
    %22 = vector.broadcast %21 : vector<1x512xbf16> to vector<128x512xbf16>
    %23 = arith.mulf %20, %22 : vector<128x512xbf16>
    %24 = arith.extf %23 : vector<128x512xbf16> to vector<128x512xf32>
    %25 = vector.shape_cast %24 : vector<128x512xf32> to vector<1x128x512xf32>
    %cst_17 = arith.constant dense<0.000000e+00> : vector<1x128xf32>
    %26 = vector.multi_reduction <add>, %25, %cst_17 [2] : vector<1x128x512xf32> to vector<1x128xf32>
    %c0_18 = arith.constant 0 : index
    %c0_19 = arith.constant 0 : index
    %27 = memref.load %arg9[%c0_18, %c0_19] : memref<1x1xf32, #tpu.memory_space<smem>>
    %28 = vector.broadcast %27 : f32 to vector<1x128xf32>
    %29 = arith.addf %26, %28 : vector<1x128xf32>
    %c0_20 = arith.constant 0 : index
    %c0_21 = arith.constant 0 : index
    %30 = vector.load %arg10[%c0_20, %c0_21] : memref<1x128xf32, #tpu.memory_space<vmem>>, vector<1x128xf32>
    tpu.vector_store %arg10[%c0_20, %c0_21], %29 {strides = array<i32>} : memref<1x128xf32, #tpu.memory_space<vmem>>, vector<1x128xf32>,
    return
  }
  func.func @transform_0(%arg0: i32) -> (i32, i32) {
    %c0_i32 = arith.constant 0 : i32
    %c0_i32_0 = arith.constant 0 : i32
    return %arg0, %c0_i32 : i32, i32
  }
  func.func @transform_1(%arg0: i32) -> (i32, i32) {
    %c0_i32 = arith.constant 0 : i32
    %c0_i32_0 = arith.constant 0 : i32
    %c0_i32_1 = arith.constant 0 : i32
    return %c0_i32, %c0_i32_0 : i32, i32
  }
  func.func @transform_2(%arg0: i32) -> (i32, i32) {
    %c0_i32 = arith.constant 0 : i32
    %c0_i32_0 = arith.constant 0 : i32
    %c0_i32_1 = arith.constant 0 : i32
    return %c0_i32, %c0_i32_0 : i32, i32
  }
  func.func @transform_3(%arg0: i32) -> (i32, i32) {
    %c0_i32 = arith.constant 0 : i32
    %c0_i32_0 = arith.constant 0 : i32
    %c0_i32_1 = arith.constant 0 : i32
    return %c0_i32, %c0_i32_0 : i32, i32
  }
  func.func @transform_4(%arg0: i32) -> (i32, i32) {
    %c0_i32 = arith.constant 0 : i32
    %c0_i32_0 = arith.constant 0 : i32
    %c0_i32_1 = arith.constant 0 : i32
    return %c0_i32, %c0_i32_0 : i32, i32
  }
  func.func @transform_5(%arg0: i32) -> (i32, i32) {
    %c0_i32 = arith.constant 0 : i32
    %c0_i32_0 = arith.constant 0 : i32
    %c0_i32_1 = arith.constant 0 : i32
    return %c0_i32, %c0_i32_0 : i32, i32
  }
  func.func @transform_6(%arg0: i32) -> (i32, i32) {
    %c0_i32 = arith.constant 0 : i32
    %c0_i32_0 = arith.constant 0 : i32
    %c0_i32_1 = arith.constant 0 : i32
    return %c0_i32, %c0_i32_0 : i32, i32
  }
  func.func @transform_7(%arg0: i32) -> (i32, i32) {
    %c0_i32 = arith.constant 0 : i32
    %c0_i32_0 = arith.constant 0 : i32
    %c0_i32_1 = arith.constant 0 : i32
    return %c0_i32, %c0_i32_0 : i32, i32
  }
  func.func @transform_8(%arg0: i32) -> (i32, i32) {
    %c0_i32 = arith.constant 0 : i32
    %c0_i32_0 = arith.constant 0 : i32
    %c0_i32_1 = arith.constant 0 : i32
    return %c0_i32, %c0_i32_0 : i32, i32
  }
  func.func @transform_9(%arg0: i32) -> (i32, i32) {
    %c0_i32 = arith.constant 0 : i32
    %c0_i32_0 = arith.constant 0 : i32
    return %arg0, %c0_i32 : i32, i32
  }
}

</mosaic_0001>

<llo_original>
// kernel: mlp_forward.1
$region0: #{mlp_forward.1}
  #allocation0 [shape = 'u32[]', space=smem, size = 0x4, offset = 0x4, fixed_abs, tag = 'smem constant byte address 0x4 - core index']
  #allocation1 [shape = 'u32[144,128]{1,0:T(1,128)}', space=vmem, size = 0x12000, scoped, tag = 'internal scratch']
  #allocation2 [shape = 'f32[1,1]{1,0:T(1,128)S(6)}', space=smem, size = 0x200, scoped, tag = 'scoped memory for mlp_forward.1']
  %s0 = inlined_call_operand.vmem [shape: bf16[128,128], index: 0, kind: input, shape index: {}]
  %s1 = inlined_call_operand.vmem [shape: bf16[128,512], index: 1, kind: input, shape index: {}]
  %s2 = inlined_call_operand.vmem [shape: f32[1,512], index: 2, kind: input, shape index: {}]
  %s3 = inlined_call_operand.vmem [shape: bf16[512,512], index: 3, kind: input, shape index: {}]
  %s4 = inlined_call_operand.vmem [shape: bf16[1,512], index: 4, kind: input, shape index: {}]
  %s5 = inlined_call_operand.vmem [shape: bf16[512,512], index: 5, kind: input, shape index: {}]
  %s6 = inlined_call_operand.vmem [shape: bf16[1,512], index: 6, kind: input, shape index: {}]
  %s7 = inlined_call_operand.vmem [shape: bf16[1,512], index: 7, kind: input, shape index: {}]
  %s8 = inlined_call_operand.<no memory space> [shape: f32[1,1], index: 8, kind: input, shape index: {}]
  %s9 = inlined_call_operand.vmem [shape: f32[1,128], index: 9, kind: output, shape index: {}]
  %s10 = sld [smem:[#allocation0]]
  $region46: #{mlp_forward.1} parent=0
    _
  %s12 = ssub.s32 1, %s10
  %s13 = scalar_select 0, %s12, %s10
  %14 = sst [smem:[#allocation2]] %s8
  // Predicated region
  $region2: #{mlp_forward.1} parent=0 // pred_check
    _
  $region3: #{mlp_forward.1} parent=0 // pred_check_branch
    %16 = sbr.rel (0) target = $region5
  $region4: #{mlp_forward.1} parent=0 // pred_region
    _
  $region5: #{mlp_forward.1} parent=0 // pred_fallthru
    _
  // Predicated region
  $region6: #{mlp_forward.1} parent=0 // pred_check
    _
  $region7: #{mlp_forward.1} parent=0 // pred_check_branch
    %18 = sbr.rel (0) target = $region9
  $region8: #{mlp_forward.1} parent=0 // pred_region
    _
  $region9: #{mlp_forward.1} parent=0 // pred_fallthru
    _
  // Predicated region
  $region10: #{mlp_forward.1} parent=0 // pred_check
    _
  $region11: #{mlp_forward.1} parent=0 // pred_check_branch
    %20 = sbr.rel (0) target = $region13
  $region12: #{mlp_forward.1} parent=0 // pred_region
    _
  $region13: #{mlp_forward.1} parent=0 // pred_fallthru
    _
  // Predicated region
  $region14: #{mlp_forward.1} parent=0 // pred_check
    _
  $region15: #{mlp_forward.1} parent=0 // pred_check_branch
    %22 = sbr.rel (0) target = $region17
  $region16: #{mlp_forward.1} parent=0 // pred_region
    _
  $region17: #{mlp_forward.1} parent=0 // pred_fallthru
    _
  // Predicated region
  $region18: #{mlp_forward.1} parent=0 // pred_check
    _
  $region19: #{mlp_forward.1} parent=0 // pred_check_branch
    %24 = sbr.rel (0) target = $region21
  $region20: #{mlp_forward.1} parent=0 // pred_region
    _
  $region21: #{mlp_forward.1} parent=0 // pred_fallthru
    _
  // Predicated region
  $region22: #{mlp_forward.1} parent=0 // pred_check
    _
  $region23: #{mlp_forward.1} parent=0 // pred_check_branch
    %26 = sbr.rel (0) target = $region25
  $region24: #{mlp_forward.1} parent=0 // pred_region
    _
  $region25: #{mlp_forward.1} parent=0 // pred_fallthru
    _
  // Predicated region
  $region26: #{mlp_forward.1} parent=0 // pred_check
    _
  $region27: #{mlp_forward.1} parent=0 // pred_check_branch
    %28 = sbr.rel (0) target = $region29
  $region28: #{mlp_forward.1} parent=0 // pred_region
    _
  $region29: #{mlp_forward.1} parent=0 // pred_fallthru
    _
  // Predicated region
  $region30: #{mlp_forward.1} parent=0 // pred_check
    _
  $region31: #{mlp_forward.1} parent=0 // pred_check_branch
    %30 = sbr.rel (0) target = $region33
  $region32: #{mlp_forward.1} parent=0 // pred_region
    _
  $region33: #{mlp_forward.1} parent=0 // pred_fallthru
    _
  // Predicated region
  $region34: #{mlp_forward.1} parent=0 // pred_check
    _
  $region35: #{mlp_forward.1} parent=0 // pred_check_branch
    %32 = sbr.rel (0) target = $region37
  $region36: #{mlp_forward.1} parent=0 // pred_region
    _
  $region37: #{mlp_forward.1} parent=0 // pred_fallthru
    _
  %v34 = vld [vmem:[%s0] sm:$0xf]
  %v35 = vld [vmem:[%s0 + $0x4] sm:$0xf]
  %v36 = vld [vmem:[%s0 + $0x8] sm:$0xf]
  %v37 = vld [vmem:[%s0 + $0xc] sm:$0xf]
  %v38 = vld [vmem:[%s0 + $0x10] sm:$0xf]
  %v39 = vld [vmem:[%s0 + $0x14] sm:$0xf]
  %v40 = vld [vmem:[%s0 + $0x18] sm:$0xf]
  %v41 = vld [vmem:[%s0 + $0x1c] sm:$0xf]
  %v42 = vld [vmem:[%s0 + $0x20] sm:$0xf]
  %v43 = vld [vmem:[%s0 + $0x24] sm:$0xf]
  %v44 = vld [vmem:[%s0 + $0x28] sm:$0xf]
  %v45 = vld [vmem:[%s0 + $0x2c] sm:$0xf]
  %v46 = vld [vmem:[%s0 + $0x30] sm:$0xf]
  %v47 = vld [vmem:[%s0 + $0x34] sm:$0xf]
  %v48 = vld [vmem:[%s0 + $0x38] sm:$0xf]
  %v49 = vld [vmem:[%s0 + $0x3c] sm:$0xf]
  %v50 = vld [vmem:[%s1] sm:$0xff]
  %v51 = vld [vmem:[%s1 + $0x8] sm:$0xff]
  %v52 = vld [vmem:[%s1 + $0x10] sm:$0xff]
  %v53 = vld [vmem:[%s1 + $0x18] sm:$0xff]
  %v54 = vld [vmem:[%s1 + $0x20] sm:$0xff]
  %v55 = vld [vmem:[%s1 + $0x28] sm:$0xff]
  %v56 = vld [vmem:[%s1 + $0x30] sm:$0xff]
  %v57 = vld [vmem:[%s1 + $0x38] sm:$0xff]
  %v58 = vld [vmem:[%s1 + $0x40] sm:$0xff]
  %v59 = vld [vmem:[%s1 + $0x48] sm:$0xff]
  %v60 = vld [vmem:[%s1 + $0x50] sm:$0xff]
  %v61 = vld [vmem:[%s1 + $0x58] sm:$0xff]
  %v62 = vld [vmem:[%s1 + $0x60] sm:$0xff]
  %v63 = vld [vmem:[%s1 + $0x68] sm:$0xff]
  %v64 = vld [vmem:[%s1 + $0x70] sm:$0xff]
  %v65 = vld [vmem:[%s1 + $0x78] sm:$0xff]
  %v66 = vld [vmem:[%s1 + $0x80] sm:$0xff]
  %v67 = vld [vmem:[%s1 + $0x88] sm:$0xff]
  %v68 = vld [vmem:[%s1 + $0x90] sm:$0xff]
  %v69 = vld [vmem:[%s1 + $0x98] sm:$0xff]
  %v70 = vld [vmem:[%s1 + $0xa0] sm:$0xff]
  %v71 = vld [vmem:[%s1 + $0xa8] sm:$0xff]
  %v72 = vld [vmem:[%s1 + $0xb0] sm:$0xff]
  %v73 = vld [vmem:[%s1 + $0xb8] sm:$0xff]
  %v74 = vld [vmem:[%s1 + $0xc0] sm:$0xff]
  %v75 = vld [vmem:[%s1 + $0xc8] sm:$0xff]
  %v76 = vld [vmem:[%s1 + $0xd0] sm:$0xff]
  %v77 = vld [vmem:[%s1 + $0xd8] sm:$0xff]
  %v78 = vld [vmem:[%s1 + $0xe0] sm:$0xff]
  %v79 = vld [vmem:[%s1 + $0xe8] sm:$0xff]
  %v80 = vld [vmem:[%s1 + $0xf0] sm:$0xff]
  %v81 = vld [vmem:[%s1 + $0xf8] sm:$0xff]
  %v82 = vld [vmem:[%s2] sm:$0xf]
  %v84 = vlaneseq
  %v85 = vshrl.u32 %v84, 7
  %v86 = vsub.s32 0, %v85
  %v87 = vrot.slane %v82, %v86
  %v88 = vlaneseq
  %v89 = vshrl.u32 %v88, 7
  %v90 = vsub.s32 1, %v89
  %v91 = vrot.slane %v82, %v90
  %v92 = vlaneseq
  %v93 = vshrl.u32 %v92, 7
  %v94 = vsub.s32 2, %v93
  %v95 = vrot.slane %v82, %v94
  %v96 = vlaneseq
  %v97 = vshrl.u32 %v96, 7
  %v98 = vsub.s32 3, %v97
  %v99 = vrot.slane %v82, %v98
  %v120 = vunpack.c.l.b16 %v34
  %v121 = vunpack.c.l.b16 %v35
  %v122 = vunpack.c.l.b16 %v36
  %v123 = vunpack.c.l.b16 %v37
  %v124 = vunpack.c.l.b16 %v38
  %v125 = vunpack.c.l.b16 %v39
  %v126 = vunpack.c.l.b16 %v40
  %v127 = vunpack.c.l.b16 %v41
  %v128 = vunpack.c.l.b16 %v42
  %v129 = vunpack.c.l.b16 %v43
  %v130 = vunpack.c.l.b16 %v44
  %v131 = vunpack.c.l.b16 %v45
  %v132 = vunpack.c.l.b16 %v46
  %v133 = vunpack.c.l.b16 %v47
  %v134 = vunpack.c.l.b16 %v48
  %v135 = vunpack.c.l.b16 %v49
  %v136 = vpack.c.b16 %v121, %v120
  %v137 = vpack.c.b16 %v123, %v122
  %v138 = vpack.c.b16 %v125, %v124
  %v139 = vpack.c.b16 %v127, %v126
  %v140 = vpack.c.b16 %v129, %v128
  %v141 = vpack.c.b16 %v131, %v130
  %v142 = vpack.c.b16 %v133, %v132
  %v143 = vpack.c.b16 %v135, %v134
  %v184 = vunpack.c.l.b16 %v50
  %v185 = vunpack.c.h.b16 %v50
  %v186 = vunpack.c.l.b16 %v51
  %v187 = vunpack.c.h.b16 %v51
  %v188 = vunpack.c.l.b16 %v52
  %v189 = vunpack.c.h.b16 %v52
  %v190 = vunpack.c.l.b16 %v53
  %v191 = vunpack.c.h.b16 %v53
  %v192 = vunpack.c.l.b16 %v54
  %v193 = vunpack.c.h.b16 %v54
  %v194 = vunpack.c.l.b16 %v55
  %v195 = vunpack.c.h.b16 %v55
  %v196 = vunpack.c.l.b16 %v56
  %v197 = vunpack.c.h.b16 %v56
  %v198 = vunpack.c.l.b16 %v57
  %v199 = vunpack.c.h.b16 %v57
  %v200 = vunpack.c.l.b16 %v58
  %v201 = vunpack.c.h.b16 %v58
  %v202 = vunpack.c.l.b16 %v59
  %v203 = vunpack.c.h.b16 %v59
  %v204 = vunpack.c.l.b16 %v60
  %v205 = vunpack.c.h.b16 %v60
  %v206 = vunpack.c.l.b16 %v61
  %v207 = vunpack.c.h.b16 %v61
  %v208 = vunpack.c.l.b16 %v62
  %v209 = vunpack.c.h.b16 %v62
  %v210 = vunpack.c.l.b16 %v63
  %v211 = vunpack.c.h.b16 %v63
  %v212 = vunpack.c.l.b16 %v64
  %v213 = vunpack.c.h.b16 %v64
  %v214 = vunpack.c.l.b16 %v65
  %v215 = vunpack.c.h.b16 %v65
  %v216 = vunpack.c.l.b16 %v66
  %v217 = vunpack.c.h.b16 %v66
  %v218 = vunpack.c.l.b16 %v67
  %v219 = vunpack.c.h.b16 %v67
  %v220 = vunpack.c.l.b16 %v68
  %v221 = vunpack.c.h.b16 %v68
  %v222 = vunpack.c.l.b16 %v69
  %v223 = vunpack.c.h.b16 %v69
  %v224 = vunpack.c.l.b16 %v70
  %v225 = vunpack.c.h.b16 %v70
  %v226 = vunpack.c.l.b16 %v71
  %v227 = vunpack.c.h.b16 %v71
  %v228 = vunpack.c.l.b16 %v72
  %v229 = vunpack.c.h.b16 %v72
  %v230 = vunpack.c.l.b16 %v73
  %v231 = vunpack.c.h.b16 %v73
  %v232 = vunpack.c.l.b16 %v74
  %v233 = vunpack.c.h.b16 %v74
  %v234 = vunpack.c.l.b16 %v75
  %v235 = vunpack.c.h.b16 %v75
  %v236 = vunpack.c.l.b16 %v76
  %v237 = vunpack.c.h.b16 %v76
  %v238 = vunpack.c.l.b16 %v77
  %v239 = vunpack.c.h.b16 %v77
  %v240 = vunpack.c.l.b16 %v78
  %v241 = vunpack.c.h.b16 %v78
  %v242 = vunpack.c.l.b16 %v79
  %v243 = vunpack.c.h.b16 %v79
  %v244 = vunpack.c.l.b16 %v80
  %v245 = vunpack.c.h.b16 %v80
  %v246 = vunpack.c.l.b16 %v81
  %v247 = vunpack.c.h.b16 %v81
  %v248 = vpack.c.b16 %v188, %v184
  %v249 = vpack.c.b16 %v189, %v185
  %v250 = vpack.c.b16 %v190, %v186
  %v251 = vpack.c.b16 %v191, %v187
  %v252 = vpack.c.b16 %v196, %v192
  %v253 = vpack.c.b16 %v197, %v193
  %v254 = vpack.c.b16 %v198, %v194
  %v255 = vpack.c.b16 %v199, %v195
  %v256 = vpack.c.b16 %v204, %v200
  %v257 = vpack.c.b16 %v205, %v201
  %v258 = vpack.c.b16 %v206, %v202
  %v259 = vpack.c.b16 %v207, %v203
  %v260 = vpack.c.b16 %v212, %v208
  %v261 = vpack.c.b16 %v213, %v209
  %v262 = vpack.c.b16 %v214, %v210
  %v263 = vpack.c.b16 %v215, %v211
  %v264 = vpack.c.b16 %v220, %v216
  %v265 = vpack.c.b16 %v221, %v217
  %v266 = vpack.c.b16 %v222, %v218
  %v267 = vpack.c.b16 %v223, %v219
  %v268 = vpack.c.b16 %v228, %v224
  %v269 = vpack.c.b16 %v229, %v225
  %v270 = vpack.c.b16 %v230, %v226
  %v271 = vpack.c.b16 %v231, %v227
  %v272 = vpack.c.b16 %v236, %v232
  %v273 = vpack.c.b16 %v237, %v233
  %v274 = vpack.c.b16 %v238, %v234
  %v275 = vpack.c.b16 %v239, %v235
  %v276 = vpack.c.b16 %v244, %v240
  %v277 = vpack.c.b16 %v245, %v241
  %v278 = vpack.c.b16 %v246, %v242
  %v279 = vpack.c.b16 %v247, %v243
  %312 = vmatprep.subr.bf16.mxu0 %v249
  %313 = vmatpush1.bf16.msra.mxu0 %v248
  %314 = vmatprep.subr.bf16.mxu0 %v253
  %315 = vmatpush1.bf16.msra.mxu0 %v252
  %316 = vmatprep.subr.bf16.mxu0 %v257
  %317 = vmatpush1.bf16.msra.mxu0 %v256
  %318 = vmatprep.subr.bf16.mxu0 %v261
  %319 = vmatpush1.bf16.msra.mxu0 %v260
  %320 = vmatprep.subr.bf16.mxu0 %v265
  %321 = vmatpush1.bf16.msra.mxu0 %v264
  %322 = vmatprep.subr.bf16.mxu0 %v269
  %323 = vmatpush1.bf16.msra.mxu0 %v268
  %324 = vmatprep.subr.bf16.mxu0 %v273
  %325 = vmatpush1.bf16.msra.mxu0 %v272
  %326 = vmatprep.subr.bf16.mxu0 %v277
  %327 = vmatpush1.bf16.msra.mxu0 %v276
  %328 = vmatprep.subr.bf16.mxu0 0
  %329 = vmatpush1.bf16.msra.mxu0 0
  %330 = vmatprep.subr.bf16.mxu0 0
  %331 = vmatpush1.bf16.msra.mxu0 0
  %332 = vmatprep.subr.bf16.mxu0 0
  %333 = vmatpush1.bf16.msra.mxu0 0
  %334 = vmatprep.subr.bf16.mxu0 0
  %335 = vmatpush1.bf16.msra.mxu0 0
  %336 = vmatprep.subr.bf16.mxu0 0
  %337 = vmatpush1.bf16.msra.mxu0 0
  %338 = vmatprep.subr.bf16.mxu0 0
  %339 = vmatpush1.bf16.msra.mxu0 0
  %340 = vmatprep.subr.bf16.mxu0 0
  %341 = vmatpush1.bf16.msra.mxu0 0
  %342 = vmatprep.subr.bf16.mxu0 0
  %343 = vmatpush1.bf16.msra.mxu0 0
  %344 = vmatprep.mubr.bf16.mxu0 0
  %345 = vmatmul.mubr.bf16.gmra.mrb[0].mxu0 %v136
  %v346 = vpop.f32.mrb[0].mxu0
  %v347 = vadd.f32 %v87, %v346
  %v348 = vpop.f32.mrb[0].mxu0
  %v349 = vadd.f32 %v91, %v348
  %v350 = vpop.f32.mrb[0].mxu0
  %v351 = vadd.f32 %v87, %v350
  %v352 = vpop.f32.mrb[0].mxu0
  %v353 = vadd.f32 %v91, %v352
  %354 = vmatprep.mubr.bf16.mxu0 0
  %355 = vmatmul.mubr.bf16.gmra.mrb[0].mxu0 %v137
  %v356 = vpop.f32.mrb[0].mxu0
  %v357 = vadd.f32 %v87, %v356
  %v358 = vpop.f32.mrb[0].mxu0
  %v359 = vadd.f32 %v91, %v358
  %v360 = vpop.f32.mrb[0].mxu0
  %v361 = vadd.f32 %v87, %v360
  %v362 = vpop.f32.mrb[0].mxu0
  %v363 = vadd.f32 %v91, %v362
  %364 = vmatprep.mubr.bf16.mxu0 0
  %365 = vmatmul.mubr.bf16.gmra.mrb[0].mxu0 %v138
  %v366 = vpop.f32.mrb[0].mxu0
  %v367 = vadd.f32 %v87, %v366
  %v368 = vpop.f32.mrb[0].mxu0
  %v369 = vadd.f32 %v91, %v368
  %v370 = vpop.f32.mrb[0].mxu0
  %v371 = vadd.f32 %v87, %v370
  %v372 = vpop.f32.mrb[0].mxu0
  %v373 = vadd.f32 %v91, %v372
  %374 = vmatprep.mubr.bf16.mxu0 0
  %375 = vmatmul.mubr.bf16.gmra.mrb[0].mxu0 %v139
  %v376 = vpop.f32.mrb[0].mxu0
  %v377 = vadd.f32 %v87, %v376
  %v378 = vpop.f32.mrb[0].mxu0
  %v379 = vadd.f32 %v91, %v378
  %v380 = vpop.f32.mrb[0].mxu0
  %v381 = vadd.f32 %v87, %v380
  %v382 = vpop.f32.mrb[0].mxu0
  %v383 = vadd.f32 %v91, %v382
  %384 = vmatprep.mubr.bf16.mxu0 0
  %385 = vmatmul.mubr.bf16.gmra.mrb[0].mxu0 %v140
  %v386 = vpop.f32.mrb[0].mxu0
  %v387 = vadd.f32 %v87, %v386
  %v388 = vpop.f32.mrb[0].mxu0
  %v389 = vadd.f32 %v91, %v388
  %v390 = vpop.f32.mrb[0].mxu0
  %v391 = vadd.f32 %v87, %v390
  %v392 = vpop.f32.mrb[0].mxu0
  %v393 = vadd.f32 %v91, %v392
  %394 = vmatprep.mubr.bf16.mxu0 0
  %395 = vmatmul.mubr.bf16.gmra.mrb[0].mxu0 %v141
  %v396 = vpop.f32.mrb[0].mxu0
  %v397 = vadd.f32 %v87, %v396
  %v398 = vpop.f32.mrb[0].mxu0
  %v399 = vadd.f32 %v91, %v398
  %v400 = vpop.f32.mrb[0].mxu0
  %v401 = vadd.f32 %v87, %v400
  %v402 = vpop.f32.mrb[0].mxu0
  %v403 = vadd.f32 %v91, %v402
  %404 = vmatprep.mubr.bf16.mxu0 0
  %405 = vmatmul.mubr.bf16.gmra.mrb[0].mxu0 %v142
  %v406 = vpop.f32.mrb[0].mxu0
  %v407 = vadd.f32 %v87, %v406
  %v408 = vpop.f32.mrb[0].mxu0
  %v409 = vadd.f32 %v91, %v408
  %v410 = vpop.f32.mrb[0].mxu0
  %v411 = vadd.f32 %v87, %v410
  %v412 = vpop.f32.mrb[0].mxu0
  %v413 = vadd.f32 %v91, %v412
  %414 = vmatprep.mubr.bf16.mxu0 0
  %415 = vmatmul.mubr.bf16.gmra.mrb[0].mxu0 %v143
  %v416 = vpop.f32.mrb[0].mxu0
  %v417 = vadd.f32 %v87, %v416
  %v418 = vpop.f32.mrb[0].mxu0
  %v419 = vadd.f32 %v91, %v418
  %v420 = vpop.f32.mrb[0].mxu0
  %v421 = vadd.f32 %v87, %v420
  %v422 = vpop.f32.mrb[0].mxu0
  %v423 = vadd.f32 %v91, %v422
  %424 = vdwg.mxu0
  %425 = vmatprep.subr.bf16.mxu0 %v251
  %426 = vmatpush1.bf16.msra.mxu0 %v250
  %427 = vmatprep.subr.bf16.mxu0 %v255
  %428 = vmatpush1.bf16.msra.mxu0 %v254
  %429 = vmatprep.subr.bf16.mxu0 %v259
  %430 = vmatpush1.bf16.msra.mxu0 %v258
  %431 = vmatprep.subr.bf16.mxu0 %v263
  %432 = vmatpush1.bf16.msra.mxu0 %v262
  %433 = vmatprep.subr.bf16.mxu0 %v267
  %434 = vmatpush1.bf16.msra.mxu0 %v266
  %435 = vmatprep.subr.bf16.mxu0 %v271
  %436 = vmatpush1.bf16.msra.mxu0 %v270
  %437 = vmatprep.subr.bf16.mxu0 %v275
  %438 = vmatpush1.bf16.msra.mxu0 %v274
  %439 = vmatprep.subr.bf16.mxu0 %v279
  %440 = vmatpush1.bf16.msra.mxu0 %v278
  %441 = vmatprep.subr.bf16.mxu0 0
  %442 = vmatpush1.bf16.msra.mxu0 0
  %443 = vmatprep.subr.bf16.mxu0 0
  %444 = vmatpush1.bf16.msra.mxu0 0
  %445 = vmatprep.subr.bf16.mxu0 0
  %446 = vmatpush1.bf16.msra.mxu0 0
  %447 = vmatprep.subr.bf16.mxu0 0
  %448 = vmatpush1.bf16.msra.mxu0 0
  %449 = vmatprep.subr.bf16.mxu0 0
  %450 = vmatpush1.bf16.msra.mxu0 0
  %451 = vmatprep.subr.bf16.mxu0 0
  %452 = vmatpush1.bf16.msra.mxu0 0
  %453 = vmatprep.subr.bf16.mxu0 0
  %454 = vmatpush1.bf16.msra.mxu0 0
  %455 = vmatprep.subr.bf16.mxu0 0
  %456 = vmatpush1.bf16.msra.mxu0 0
  %457 = vmatprep.mubr.bf16.mxu0 0
  %458 = vmatmul.mubr.bf16.gmra.mrb[0].mxu0 %v136
  %v459 = vpop.f32.mrb[0].mxu0
  %v460 = vadd.f32 %v95, %v459
  %v461 = vpop.f32.mrb[0].mxu0
  %v462 = vadd.f32 %v99, %v461
  %v463 = vpop.f32.mrb[0].mxu0
  %v464 = vadd.f32 %v95, %v463
  %v465 = vpop.f32.mrb[0].mxu0
  %v466 = vadd.f32 %v99, %v465
  %467 = vmatprep.mubr.bf16.mxu0 0
  %468 = vmatmul.mubr.bf16.gmra.mrb[0].mxu0 %v137
  %v469 = vpop.f32.mrb[0].mxu0
  %v470 = vadd.f32 %v95, %v469
  %v471 = vpop.f32.mrb[0].mxu0
  %v472 = vadd.f32 %v99, %v471
  %v473 = vpop.f32.mrb[0].mxu0
  %v474 = vadd.f32 %v95, %v473
  %v475 = vpop.f32.mrb[0].mxu0
  %v476 = vadd.f32 %v99, %v475
  %477 = vmatprep.mubr.bf16.mxu0 0
  %478 = vmatmul.mubr.bf16.gmra.mrb[0].mxu0 %v138
  %v479 = vpop.f32.mrb[0].mxu0
  %v480 = vadd.f32 %v95, %v479
  %v481 = vpop.f32.mrb[0].mxu0
  %v482 = vadd.f32 %v99, %v481
  %v483 = vpop.f32.mrb[0].mxu0
  %v484 = vadd.f32 %v95, %v483
  %v485 = vpop.f32.mrb[0].mxu0
  %v486 = vadd.f32 %v99, %v485
  %487 = vmatprep.mubr.bf16.mxu0 0
  %488 = vmatmul.mubr.bf16.gmra.mrb[0].mxu0 %v139
  %v489 = vpop.f32.mrb[0].mxu0
  %v490 = vadd.f32 %v95, %v489
  %v491 = vpop.f32.mrb[0].mxu0
  %v492 = vadd.f32 %v99, %v491
  %v493 = vpop.f32.mrb[0].mxu0
  %v494 = vadd.f32 %v95, %v493
  %v495 = vpop.f32.mrb[0].mxu0
  %v496 = vadd.f32 %v99, %v495
  %497 = vmatprep.mubr.bf16.mxu0 0
  %498 = vmatmul.mubr.bf16.gmra.mrb[0].mxu0 %v140
  %v499 = vpop.f32.mrb[0].mxu0
  %v500 = vadd.f32 %v95, %v499
  %v501 = vpop.f32.mrb[0].mxu0
  %v502 = vadd.f32 %v99, %v501
  %v503 = vpop.f32.mrb[0].mxu0
  %v504 = vadd.f32 %v95, %v503
  %v505 = vpop.f32.mrb[0].mxu0
  %v506 = vadd.f32 %v99, %v505
  %507 = vmatprep.mubr.bf16.mxu0 0
  %508 = vmatmul.mubr.bf16.gmra.mrb[0].mxu0 %v141
  %v509 = vpop.f32.mrb[0].mxu0
  %v510 = vadd.f32 %v95, %v509
  %v511 = vpop.f32.mrb[0].mxu0
  %v512 = vadd.f32 %v99, %v511
  %v513 = vpop.f32.mrb[0].mxu0
  %v514 = vadd.f32 %v95, %v513
  %v515 = vpop.f32.mrb[0].mxu0
  %v516 = vadd.f32 %v99, %v515
  %517 = vmatprep.mubr.bf16.mxu0 0
  %518 = vmatmul.mubr.bf16.gmra.mrb[0].mxu0 %v142
  %v519 = vpop.f32.mrb[0].mxu0
  %v520 = vadd.f32 %v95, %v519
  %v521 = vpop.f32.mrb[0].mxu0
  %v522 = vadd.f32 %v99, %v521
  %v523 = vpop.f32.mrb[0].mxu0
  %v524 = vadd.f32 %v95, %v523
  %v525 = vpop.f32.mrb[0].mxu0
  %v526 = vadd.f32 %v99, %v525
  %527 = vmatprep.mubr.bf16.mxu0 0
  %528 = vmatmul.mubr.bf16.gmra.mrb[0].mxu0 %v143
  %v529 = vpop.f32.mrb[0].mxu0
  %v530 = vadd.f32 %v95, %v529
  %v531 = vpop.f32.mrb[0].mxu0
  %v532 = vadd.f32 %v99, %v531
  %v533 = vpop.f32.mrb[0].mxu0
  %v534 = vadd.f32 %v95, %v533
  %v535 = vpop.f32.mrb[0].mxu0
  %v536 = vadd.f32 %v99, %v535
  %537 = vdwg.mxu0
  %v538 = vpack.c.bf16 %v351, %v347
  %v539 = vpack.c.bf16 %v353, %v349
  %v540 = vpack.c.bf16 %v464, %v460
  %v541 = vpack.c.bf16 %v466, %v462
  %v542 = vpack.c.bf16 %v361, %v357
  %v543 = vpack.c.bf16 %v363, %v359
  %v544 = vpack.c.bf16 %v474, %v470
  %v545 = vpack.c.bf16 %v476, %v472
  %v546 = vpack.c.bf16 %v371, %v367
  %v547 = vpack.c.bf16 %v373, %v369
  %v548 = vpack.c.bf16 %v484, %v480
  %v549 = vpack.c.bf16 %v486, %v482
  %v550 = vpack.c.bf16 %v381, %v377
  %v551 = vpack.c.bf16 %v383, %v379
  %v552 = vpack.c.bf16 %v494, %v490
  %v553 = vpack.c.bf16 %v496, %v492
  %v554 = vpack.c.bf16 %v391, %v387
  %v555 = vpack.c.bf16 %v393, %v389
  %v556 = vpack.c.bf16 %v504, %v500
  %v557 = vpack.c.bf16 %v506, %v502
  %v558 = vpack.c.bf16 %v401, %v397
  %v559 = vpack.c.bf16 %v403, %v399
  %v560 = vpack.c.bf16 %v514, %v510
  %v561 = vpack.c.bf16 %v516, %v512
  %v562 = vpack.c.bf16 %v411, %v407
  %v563 = vpack.c.bf16 %v413, %v409
  %v564 = vpack.c.bf16 %v524, %v520
  %v565 = vpack.c.bf16 %v526, %v522
  %v566 = vpack.c.bf16 %v421, %v417
  %v567 = vpack.c.bf16 %v423, %v419
  %v568 = vpack.c.bf16 %v534, %v530
  %v569 = vpack.c.bf16 %v536, %v532
  %v570 = vld [vmem:[%s3] sm:$0xff]
  %v571 = vld [vmem:[%s3 + $0x8] sm:$0xff]
  %v572 = vld [vmem:[%s3 + $0x10] sm:$0xff]
  %v573 = vld [vmem:[%s3 + $0x18] sm:$0xff]
  %v574 = vld [vmem:[%s3 + $0x20] sm:$0xff]
  %v575 = vld [vmem:[%s3 + $0x28] sm:$0xff]
  %v576 = vld [vmem:[%s3 + $0x30] sm:$0xff]
  %v577 = vld [vmem:[%s3 + $0x38] sm:$0xff]
  %v578 = vld [vmem:[%s3 + $0x40] sm:$0xff]
  %v579 = vld [vmem:[%s3 + $0x48] sm:$0xff]
  %v580 = vld [vmem:[%s3 + $0x50] sm:$0xff]
  %v581 = vld [vmem:[%s3 + $0x58] sm:$0xff]
  %v582 = vld [vmem:[%s3 + $0x60] sm:$0xff]
  %v583 = vld [vmem:[%s3 + $0x68] sm:$0xff]
  %v584 = vld [vmem:[%s3 + $0x70] sm:$0xff]
  %v585 = vld [vmem:[%s3 + $0x78] sm:$0xff]
  %v586 = vld [vmem:[%s3 + $0x80] sm:$0xff]
  %v587 = vld [vmem:[%s3 + $0x88] sm:$0xff]
  %v588 = vld [vmem:[%s3 + $0x90] sm:$0xff]
  %v589 = vld [vmem:[%s3 + $0x98] sm:$0xff]
  %v590 = vld [vmem:[%s3 + $0xa0] sm:$0xff]
  %v591 = vld [vmem:[%s3 + $0xa8] sm:$0xff]
  %v592 = vld [vmem:[%s3 + $0xb0] sm:$0xff]
  %v593 = vld [vmem:[%s3 + $0xb8] sm:$0xff]
  %v594 = vld [vmem:[%s3 + $0xc0] sm:$0xff]
  %v595 = vld [vmem:[%s3 + $0xc8] sm:$0xff]
  %v596 = vld [vmem:[%s3 + $0xd0] sm:$0xff]
  %v597 = vld [vmem:[%s3 + $0xd8] sm:$0xff]
  %v598 = vld [vmem:[%s3 + $0xe0] sm:$0xff]
  %v599 = vld [vmem:[%s3 + $0xe8] sm:$0xff]
  %v600 = vld [vmem:[%s3 + $0xf0] sm:$0xff]
  %v601 = vld [vmem:[%s3 + $0xf8] sm:$0xff]
  %v602 = vld [vmem:[%s3 + $0x100] sm:$0xff]
  %v603 = vld [vmem:[%s3 + $0x108] sm:$0xff]
  %v604 = vld [vmem:[%s3 + $0x110] sm:$0xff]
  %v605 = vld [vmem:[%s3 + $0x118] sm:$0xff]
  %v606 = vld [vmem:[%s3 + $0x120] sm:$0xff]
  %v607 = vld [vmem:[%s3 + $0x128] sm:$0xff]
  %v608 = vld [vmem:[%s3 + $0x130] sm:$0xff]
  %v609 = vld [vmem:[%s3 + $0x138] sm:$0xff]
  %v610 = vld [vmem:[%s3 + $0x140] sm:$0xff]
  %v611 = vld [vmem:[%s3 + $0x148] sm:$0xff]
  %v612 = vld [vmem:[%s3 + $0x150] sm:$0xff]
  %v613 = vld [vmem:[%s3 + $0x158] sm:$0xff]
  %v614 = vld [vmem:[%s3 + $0x160] sm:$0xff]
  %v615 = vld [vmem:[%s3 + $0x168] sm:$0xff]
  %v616 = vld [vmem:[%s3 + $0x170] sm:$0xff]
  %v617 = vld [vmem:[%s3 + $0x178] sm:$0xff]
  %v618 = vld [vmem:[%s3 + $0x180] sm:$0xff]
  %v619 = vld [vmem:[%s3 + $0x188] sm:$0xff]
  %v620 = vld [vmem:[%s3 + $0x190] sm:$0xff]
  %v621 = vld [vmem:[%s3 + $0x198] sm:$0xff]
  %v622 = vld [vmem:[%s3 + $0x1a0] sm:$0xff]
  %v623 = vld [vmem:[%s3 + $0x1a8] sm:$0xff]
  %v624 = vld [vmem:[%s3 + $0x1b0] sm:$0xff]
  %v625 = vld [vmem:[%s3 + $0x1b8] sm:$0xff]
  %v626 = vld [vmem:[%s3 + $0x1c0] sm:$0xff]
  %v627 = vld [vmem:[%s3 + $0x1c8] sm:$0xff]
  %v628 = vld [vmem:[%s3 + $0x1d0] sm:$0xff]
  %v629 = vld [vmem:[%s3 + $0x1d8] sm:$0xff]
  %v630 = vld [vmem:[%s3 + $0x1e0] sm:$0xff]
  %v631 = vld [vmem:[%s3 + $0x1e8] sm:$0xff]
  %v632 = vld [vmem:[%s3 + $0x1f0] sm:$0xff]
  %v633 = vld [vmem:[%s3 + $0x1f8] sm:$0xff]
  %v634 = vld [vmem:[%s3 + $0x200] sm:$0xff]
  %v635 = vld [vmem:[%s3 + $0x208] sm:$0xff]
  %v636 = vld [vmem:[%s3 + $0x210] sm:$0xff]
  %v637 = vld [vmem:[%s3 + $0x218] sm:$0xff]
  %v638 = vld [vmem:[%s3 + $0x220] sm:$0xff]
  %v639 = vld [vmem:[%s3 + $0x228] sm:$0xff]
  %v640 = vld [vmem:[%s3 + $0x230] sm:$0xff]
  %v641 = vld [vmem:[%s3 + $0x238] sm:$0xff]
  %v642 = vld [vmem:[%s3 + $0x240] sm:$0xff]
  %v643 = vld [vmem:[%s3 + $0x248] sm:$0xff]
  %v644 = vld [vmem:[%s3 + $0x250] sm:$0xff]
  %v645 = vld [vmem:[%s3 + $0x258] sm:$0xff]
  %v646 = vld [vmem:[%s3 + $0x260] sm:$0xff]
  %v647 = vld [vmem:[%s3 + $0x268] sm:$0xff]
  %v648 = vld [vmem:[%s3 + $0x270] sm:$0xff]
  %v649 = vld [vmem:[%s3 + $0x278] sm:$0xff]
  %v650 = vld [vmem:[%s3 + $0x280] sm:$0xff]
  %v651 = vld [vmem:[%s3 + $0x288] sm:$0xff]
  %v652 = vld [vmem:[%s3 + $0x290] sm:$0xff]
  %v653 = vld [vmem:[%s3 + $0x298] sm:$0xff]
  %v654 = vld [vmem:[%s3 + $0x2a0] sm:$0xff]
  %v655 = vld [vmem:[%s3 + $0x2a8] sm:$0xff]
  %v656 = vld [vmem:[%s3 + $0x2b0] sm:$0xff]
  %v657 = vld [vmem:[%s3 + $0x2b8] sm:$0xff]
  %v658 = vld [vmem:[%s3 + $0x2c0] sm:$0xff]
  %v659 = vld [vmem:[%s3 + $0x2c8] sm:$0xff]
  %v660 = vld [vmem:[%s3 + $0x2d0] sm:$0xff]
  %v661 = vld [vmem:[%s3 + $0x2d8] sm:$0xff]
  %v662 = vld [vmem:[%s3 + $0x2e0] sm:$0xff]
  %v663 = vld [vmem:[%s3 + $0x2e8] sm:$0xff]
  %v664 = vld [vmem:[%s3 + $0x2f0] sm:$0xff]
  %v665 = vld [vmem:[%s3 + $0x2f8] sm:$0xff]
  %v666 = vld [vmem:[%s3 + $0x300] sm:$0xff]
  %v667 = vld [vmem:[%s3 + $0x308] sm:$0xff]
  %v668 = vld [vmem:[%s3 + $0x310] sm:$0xff]
  %v669 = vld [vmem:[%s3 + $0x318] sm:$0xff]
  %v670 = vld [vmem:[%s3 + $0x320] sm:$0xff]
  %v671 = vld [vmem:[%s3 + $0x328] sm:$0xff]
  %v672 = vld [vmem:[%s3 + $0x330] sm:$0xff]
  %v673 = vld [vmem:[%s3 + $0x338] sm:$0xff]
  %v674 = vld [vmem:[%s3 + $0x340] sm:$0xff]
  %v675 = vld [vmem:[%s3 + $0x348] sm:$0xff]
  %v676 = vld [vmem:[%s3 + $0x350] sm:$0xff]
  %v677 = vld [vmem:[%s3 + $0x358] sm:$0xff]
  %v678 = vld [vmem:[%s3 + $0x360] sm:$0xff]
  %v679 = vld [vmem:[%s3 + $0x368] sm:$0xff]
  %v680 = vld [vmem:[%s3 + $0x370] sm:$0xff]
  %v681 = vld [vmem:[%s3 + $0x378] sm:$0xff]
  %v682 = vld [vmem:[%s3 + $0x380] sm:$0xff]
  %v683 = vld [vmem:[%s3 + $0x388] sm:$0xff]
  %v684 = vld [vmem:[%s3 + $0x390] sm:$0xff]
  %v685 = vld [vmem:[%s3 + $0x398] sm:$0xff]
  %v686 = vld [vmem:[%s3 + $0x3a0] sm:$0xff]
  %v687 = vld [vmem:[%s3 + $0x3a8] sm:$0xff]
  %v688 = vld [vmem:[%s3 + $0x3b0] sm:$0xff]
  %v689 = vld [vmem:[%s3 + $0x3b8] sm:$0xff]
  %v690 = vld [vmem:[%s3 + $0x3c0] sm:$0xff]
  %v691 = vld [vmem:[%s3 + $0x3c8] sm:$0xff]
  %v692 = vld [vmem:[%s3 + $0x3d0] sm:$0xff]
  %v693 = vld [vmem:[%s3 + $0x3d8] sm:$0xff]
  %v694 = vld [vmem:[%s3 + $0x3e0] sm:$0xff]
  %v695 = vld [vmem:[%s3 + $0x3e8] sm:$0xff]
  %v696 = vld [vmem:[%s3 + $0x3f0] sm:$0xff]
  %v697 = vld [vmem:[%s3 + $0x3f8] sm:$0xff]
  %v826 = vunpack.c.l.b16 %v570
  %v827 = vunpack.c.h.b16 %v570
  %v828 = vunpack.c.l.b16 %v571
  %v829 = vunpack.c.h.b16 %v571
  %v830 = vunpack.c.l.b16 %v572
  %v831 = vunpack.c.h.b16 %v572
  %v832 = vunpack.c.l.b16 %v573
  %v833 = vunpack.c.h.b16 %v573
  %v834 = vunpack.c.l.b16 %v574
  %v835 = vunpack.c.h.b16 %v574
  %v836 = vunpack.c.l.b16 %v575
  %v837 = vunpack.c.h.b16 %v575
  %v838 = vunpack.c.l.b16 %v576
  %v839 = vunpack.c.h.b16 %v576
  %v840 = vunpack.c.l.b16 %v577
  %v841 = vunpack.c.h.b16 %v577
  %v842 = vunpack.c.l.b16 %v578
  %v843 = vunpack.c.h.b16 %v578
  %v844 = vunpack.c.l.b16 %v579
  %v845 = vunpack.c.h.b16 %v579
  %v846 = vunpack.c.l.b16 %v580
  %v847 = vunpack.c.h.b16 %v580
  %v848 = vunpack.c.l.b16 %v581
  %v849 = vunpack.c.h.b16 %v581
  %v850 = vunpack.c.l.b16 %v582
  %v851 = vunpack.c.h.b16 %v582
  %v852 = vunpack.c.l.b16 %v583
  %v853 = vunpack.c.h.b16 %v583
  %v854 = vunpack.c.l.b16 %v584
  %v855 = vunpack.c.h.b16 %v584
  %v856 = vunpack.c.l.b16 %v585
  %v857 = vunpack.c.h.b16 %v585
  %v858 = vunpack.c.l.b16 %v586
  %v859 = vunpack.c.h.b16 %v586
  %v860 = vunpack.c.l.b16 %v587
  %v861 = vunpack.c.h.b16 %v587
  %v862 = vunpack.c.l.b16 %v588
  %v863 = vunpack.c.h.b16 %v588
  %v864 = vunpack.c.l.b16 %v589
  %v865 = vunpack.c.h.b16 %v589
  %v866 = vunpack.c.l.b16 %v590
  %v867 = vunpack.c.h.b16 %v590
  %v868 = vunpack.c.l.b16 %v591
  %v869 = vunpack.c.h.b16 %v591
  %v870 = vunpack.c.l.b16 %v592
  %v871 = vunpack.c.h.b16 %v592
  %v872 = vunpack.c.l.b16 %v593
  %v873 = vunpack.c.h.b16 %v593
  %v874 = vunpack.c.l.b16 %v594
  %v875 = vunpack.c.h.b16 %v594
  %v876 = vunpack.c.l.b16 %v595
  %v877 = vunpack.c.h.b16 %v595
  %v878 = vunpack.c.l.b16 %v596
  %v879 = vunpack.c.h.b16 %v596
  %v880 = vunpack.c.l.b16 %v597
  %v881 = vunpack.c.h.b16 %v597
  %v882 = vunpack.c.l.b16 %v598
  %v883 = vunpack.c.h.b16 %v598
  %v884 = vunpack.c.l.b16 %v599
  %v885 = vunpack.c.h.b16 %v599
  %v886 = vunpack.c.l.b16 %v600
  %v887 = vunpack.c.h.b16 %v600
  %v888 = vunpack.c.l.b16 %v601
  %v889 = vunpack.c.h.b16 %v601
  %v890 = vunpack.c.l.b16 %v602
  %v891 = vunpack.c.h.b16 %v602
  %v892 = vunpack.c.l.b16 %v603
  %v893 = vunpack.c.h.b16 %v603
  %v894 = vunpack.c.l.b16 %v604
  %v895 = vunpack.c.h.b16 %v604
  %v896 = vunpack.c.l.b16 %v605
  %v897 = vunpack.c.h.b16 %v605
  %v898 = vunpack.c.l.b16 %v606
  %v899 = vunpack.c.h.b16 %v606
  %v900 = vunpack.c.l.b16 %v607
  %v901 = vunpack.c.h.b16 %v607
  %v902 = vunpack.c.l.b16 %v608
  %v903 = vunpack.c.h.b16 %v608
  %v904 = vunpack.c.l.b16 %v609
  %v905 = vunpack.c.h.b16 %v609
  %v906 = vunpack.c.l.b16 %v610
  %v907 = vunpack.c.h.b16 %v610
  %v908 = vunpack.c.l.b16 %v611
  %v909 = vunpack.c.h.b16 %v611
  %v910 = vunpack.c.l.b16 %v612
  %v911 = vunpack.c.h.b16 %v612
  %v912 = vunpack.c.l.b16 %v613
  %v913 = vunpack.c.h.b16 %v613
  %v914 = vunpack.c.l.b16 %v614
  %v915 = vunpack.c.h.b16 %v614
  %v916 = vunpack.c.l.b16 %v615
  %v917 = vunpack.c.h.b16 %v615
  %v918 = vunpack.c.l.b16 %v616
  %v919 = vunpack.c.h.b16 %v616
  %v920 = vunpack.c.l.b16 %v617
  %v921 = vunpack.c.h.b16 %v617
  %v922 = vunpack.c.l.b16 %v618
  %v923 = vunpack.c.h.b16 %v618
  %v924 = vunpack.c.l.b16 %v619
  %v925 = vunpack.c.h.b16 %v619
  %v926 = vunpack.c.l.b16 %v620
  %v927 = vunpack.c.h.b16 %v620
  %v928 = vunpack.c.l.b16 %v621
  %v929 = vunpack.c.h.b16 %v621
  %v930 = vunpack.c.l.b16 %v622
  %v931 = vunpack.c.h.b16 %v622
  %v932 = vunpack.c.l.b16 %v623
  %v933 = vunpack.c.h.b16 %v623
  %v934 = vunpack.c.l.b16 %v624
  %v935 = vunpack.c.h.b16 %v624
  %v936 = vunpack.c.l.b16 %v625
  %v937 = vunpack.c.h.b16 %v625
  %v938 = vunpack.c.l.b16 %v626
  %v939 = vunpack.c.h.b16 %v626
  %v940 = vunpack.c.l.b16 %v627
  %v941 = vunpack.c.h.b16 %v627
  %v942 = vunpack.c.l.b16 %v628
  %v943 = vunpack.c.h.b16 %v628
  %v944 = vunpack.c.l.b16 %v629
  %v945 = vunpack.c.h.b16 %v629
  %v946 = vunpack.c.l.b16 %v630
  %v947 = vunpack.c.h.b16 %v630
  %v948 = vunpack.c.l.b16 %v631
  %v949 = vunpack.c.h.b16 %v631
  %v950 = vunpack.c.l.b16 %v632
  %v951 = vunpack.c.h.b16 %v632
  %v952 = vunpack.c.l.b16 %v633
  %v953 = vunpack.c.h.b16 %v633
  %v954 = vunpack.c.l.b16 %v634
  %v955 = vunpack.c.h.b16 %v634
  %v956 = vunpack.c.l.b16 %v635
  %v957 = vunpack.c.h.b16 %v635
  %v958 = vunpack.c.l.b16 %v636
  %v959 = vunpack.c.h.b16 %v636
  %v960 = vunpack.c.l.b16 %v637
  %v961 = vunpack.c.h.b16 %v637
  %v962 = vunpack.c.l.b16 %v638
  %v963 = vunpack.c.h.b16 %v638
  %v964 = vunpack.c.l.b16 %v639
  %v965 = vunpack.c.h.b16 %v639
  %v966 = vunpack.c.l.b16 %v640
  %v967 = vunpack.c.h.b16 %v640
  %v968 = vunpack.c.l.b16 %v641
  %v969 = vunpack.c.h.b16 %v641
  %v970 = vunpack.c.l.b16 %v642
  %v971 = vunpack.c.h.b16 %v642
  %v972 = vunpack.c.l.b16 %v643
  %v973 = vunpack.c.h.b16 %v643
  %v974 = vunpack.c.l.b16 %v644
  %v975 = vunpack.c.h.b16 %v644
  %v976 = vunpack.c.l.b16 %v645
  %v977 = vunpack.c.h.b16 %v645
  %v978 = vunpack.c.l.b16 %v646
  %v979 = vunpack.c.h.b16 %v646
  %v980 = vunpack.c.l.b16 %v647
  %v981 = vunpack.c.h.b16 %v647
  %v982 = vunpack.c.l.b16 %v648
  %v983 = vunpack.c.h.b16 %v648
  %v984 = vunpack.c.l.b16 %v649
  %v985 = vunpack.c.h.b16 %v649
  %v986 = vunpack.c.l.b16 %v650
  %v987 = vunpack.c.h.b16 %v650
  %v988 = vunpack.c.l.b16 %v651
  %v989 = vunpack.c.h.b16 %v651
  %v990 = vunpack.c.l.b16 %v652
  %v991 = vunpack.c.h.b16 %v652
  %v992 = vunpack.c.l.b16 %v653
  %v993 = vunpack.c.h.b16 %v653
  %v994 = vunpack.c.l.b16 %v654
  %v995 = vunpack.c.h.b16 %v654
  %v996 = vunpack.c.l.b16 %v655
  %v997 = vunpack.c.h.b16 %v655
  %v998 = vunpack.c.l.b16 %v656
  %v999 = vunpack.c.h.b16 %v656
  %v1000 = vunpack.c.l.b16 %v657
  %v1001 = vunpack.c.h.b16 %v657
  %v1002 = vunpack.c.l.b16 %v658
  %v1003 = vunpack.c.h.b16 %v658
  %v1004 = vunpack.c.l.b16 %v659
  %v1005 = vunpack.c.h.b16 %v659
  %v1006 = vunpack.c.l.b16 %v660
  %v1007 = vunpack.c.h.b16 %v660
  %v1008 = vunpack.c.l.b16 %v661
  %v1009 = vunpack.c.h.b16 %v661
  %v1010 = vunpack.c.l.b16 %v662
  %v1011 = vunpack.c.h.b16 %v662
  %v1012 = vunpack.c.l.b16 %v663
  %v1013 = vunpack.c.h.b16 %v663
  %v1014 = vunpack.c.l.b16 %v664
  %v1015 = vunpack.c.h.b16 %v664
  %v1016 = vunpack.c.l.b16 %v665
  %v1017 = vunpack.c.h.b16 %v665
  %v1018 = vunpack.c.l.b16 %v666
  %v1019 = vunpack.c.h.b16 %v666
  %v1020 = vunpack.c.l.b16 %v667
  %v1021 = vunpack.c.h.b16 %v667
  %v1022 = vunpack.c.l.b16 %v668
  %v1023 = vunpack.c.h.b16 %v668
  %v1024 = vunpack.c.l.b16 %v669
  %v1025 = vunpack.c.h.b16 %v669
  %v1026 = vunpack.c.l.b16 %v670
  %v1027 = vunpack.c.h.b16 %v670
  %v1028 = vunpack.c.l.b16 %v671
  %v1029 = vunpack.c.h.b16 %v671
  %v1030 = vunpack.c.l.b16 %v672
  %v1031 = vunpack.c.h.b16 %v672
  %v1032 = vunpack.c.l.b16 %v673
  %v1033 = vunpack.c.h.b16 %v673
  %v1034 = vunpack.c.l.b16 %v674
  %v1035 = vunpack.c.h.b16 %v674
  %v1036 = vunpack.c.l.b16 %v675
  %v1037 = vunpack.c.h.b16 %v675
  %v1038 = vunpack.c.l.b16 %v676
  %v1039 = vunpack.c.h.b16 %v676
  %v1040 = vunpack.c.l.b16 %v677
  %v1041 = vunpack.c.h.b16 %v677
  %v1042 = vunpack.c.l.b16 %v678
  %v1043 = vunpack.c.h.b16 %v678
  %v1044 = vunpack.c.l.b16 %v679
  %v1045 = vunpack.c.h.b16 %v679
  %v1046 = vunpack.c.l.b16 %v680
  %v1047 = vunpack.c.h.b16 %v680
  %v1048 = vunpack.c.l.b16 %v681
  %v1049 = vunpack.c.h.b16 %v681
  %v1050 = vunpack.c.l.b16 %v682
  %v1051 = vunpack.c.h.b16 %v682
  %v1052 = vunpack.c.l.b16 %v683
  %v1053 = vunpack.c.h.b16 %v683
  %v1054 = vunpack.c.l.b16 %v684
  %v1055 = vunpack.c.h.b16 %v684
  %v1056 = vunpack.c.l.b16 %v685
  %v1057 = vunpack.c.h.b16 %v685
  %v1058 = vunpack.c.l.b16 %v686
  %v1059 = vunpack.c.h.b16 %v686
  %v1060 = vunpack.c.l.b16 %v687
  %v1061 = vunpack.c.h.b16 %v687
  %v1062 = vunpack.c.l.b16 %v688
  %v1063 = vunpack.c.h.b16 %v688
  %v1064 = vunpack.c.l.b16 %v689
  %v1065 = vunpack.c.h.b16 %v689
  %v1066 = vunpack.c.l.b16 %v690
  %v1067 = vunpack.c.h.b16 %v690
  %v1068 = vunpack.c.l.b16 %v691
  %v1069 = vunpack.c.h.b16 %v691
  %v1070 = vunpack.c.l.b16 %v692
  %v1071 = vunpack.c.h.b16 %v692
  %v1072 = vunpack.c.l.b16 %v693
  %v1073 = vunpack.c.h.b16 %v693
  %v1074 = vunpack.c.l.b16 %v694
  %v1075 = vunpack.c.h.b16 %v694
  %v1076 = vunpack.c.l.b16 %v695
  %v1077 = vunpack.c.h.b16 %v695
  %v1078 = vunpack.c.l.b16 %v696
  %v1079 = vunpack.c.h.b16 %v696
  %v1080 = vunpack.c.l.b16 %v697
  %v1081 = vunpack.c.h.b16 %v697
  %v1082 = vpack.c.b16 %v830, %v826
  %v1083 = vpack.c.b16 %v831, %v827
  %v1084 = vpack.c.b16 %v832, %v828
  %v1085 = vpack.c.b16 %v833, %v829
  %v1086 = vpack.c.b16 %v838, %v834
  %v1087 = vpack.c.b16 %v839, %v835
  %v1088 = vpack.c.b16 %v840, %v836
  %v1089 = vpack.c.b16 %v841, %v837
  %v1090 = vpack.c.b16 %v846, %v842
  %v1091 = vpack.c.b16 %v847, %v843
  %v1092 = vpack.c.b16 %v848, %v844
  %v1093 = vpack.c.b16 %v849, %v845
  %v1094 = vpack.c.b16 %v854, %v850
  %v1095 = vpack.c.b16 %v855, %v851
  %v1096 = vpack.c.b16 %v856, %v852
  %v1097 = vpack.c.b16 %v857, %v853
  %v1098 = vpack.c.b16 %v862, %v858
  %v1099 = vpack.c.b16 %v863, %v859
  %v1100 = vpack.c.b16 %v864, %v860
  %v1101 = vpack.c.b16 %v865, %v861
  %v1102 = vpack.c.b16 %v870, %v866
  %v1103 = vpack.c.b16 %v871, %v867
  %v1104 = vpack.c.b16 %v872, %v868
  %v1105 = vpack.c.b16 %v873, %v869
  %v1106 = vpack.c.b16 %v878, %v874
  %v1107 = vpack.c.b16 %v879, %v875
  %v1108 = vpack.c.b16 %v880, %v876
  %v1109 = vpack.c.b16 %v881, %v877
  %v1110 = vpack.c.b16 %v886, %v882
  %v1111 = vpack.c.b16 %v887, %v883
  %v1112 = vpack.c.b16 %v888, %v884
  %v1113 = vpack.c.b16 %v889, %v885
  %v1114 = vpack.c.b16 %v894, %v890
  %v1115 = vpack.c.b16 %v895, %v891
  %v1116 = vpack.c.b16 %v896, %v892
  %v1117 = vpack.c.b16 %v897, %v893
  %v1118 = vpack.c.b16 %v902, %v898
  %v1119 = vpack.c.b16 %v903, %v899
  %v1120 = vpack.c.b16 %v904, %v900
  %v1121 = vpack.c.b16 %v905, %v901
  %v1122 = vpack.c.b16 %v910, %v906
  %v1123 = vpack.c.b16 %v911, %v907
  %v1124 = vpack.c.b16 %v912, %v908
  %v1125 = vpack.c.b16 %v913, %v909
  %v1126 = vpack.c.b16 %v918, %v914
  %v1127 = vpack.c.b16 %v919, %v915
  %v1128 = vpack.c.b16 %v920, %v916
  %v1129 = vpack.c.b16 %v921, %v917
  %v1130 = vpack.c.b16 %v926, %v922
  %v1131 = vpack.c.b16 %v927, %v923
  %v1132 = vpack.c.b16 %v928, %v924
  %v1133 = vpack.c.b16 %v929, %v925
  %v1134 = vpack.c.b16 %v934, %v930
  %v1135 = vpack.c.b16 %v935, %v931
  %v1136 = vpack.c.b16 %v936, %v932
  %v1137 = vpack.c.b16 %v937, %v933
  %v1138 = vpack.c.b16 %v942, %v938
  %v1139 = vpack.c.b16 %v943, %v939
  %v1140 = vpack.c.b16 %v944, %v940
  %v1141 = vpack.c.b16 %v945, %v941
  %v1142 = vpack.c.b16 %v950, %v946
  %v1143 = vpack.c.b16 %v951, %v947
  %v1144 = vpack.c.b16 %v952, %v948
  %v1145 = vpack.c.b16 %v953, %v949
  %v1146 = vpack.c.b16 %v958, %v954
  %v1147 = vpack.c.b16 %v959, %v955
  %v1148 = vpack.c.b16 %v960, %v956
  %v1149 = vpack.c.b16 %v961, %v957
  %v1150 = vpack.c.b16 %v966, %v962
  %v1151 = vpack.c.b16 %v967, %v963
  %v1152 = vpack.c.b16 %v968, %v964
  %v1153 = vpack.c.b16 %v969, %v965
  %v1154 = vpack.c.b16 %v974, %v970
  %v1155 = vpack.c.b16 %v975, %v971
  %v1156 = vpack.c.b16 %v976, %v972
  %v1157 = vpack.c.b16 %v977, %v973
  %v1158 = vpack.c.b16 %v982, %v978
  %v1159 = vpack.c.b16 %v983, %v979
  %v1160 = vpack.c.b16 %v984, %v980
  %v1161 = vpack.c.b16 %v985, %v981
  %v1162 = vpack.c.b16 %v990, %v986
  %v1163 = vpack.c.b16 %v991, %v987
  %v1164 = vpack.c.b16 %v992, %v988
  %v1165 = vpack.c.b16 %v993, %v989
  %v1166 = vpack.c.b16 %v998, %v994
  %v1167 = vpack.c.b16 %v999, %v995
  %v1168 = vpack.c.b16 %v1000, %v996
  %v1169 = vpack.c.b16 %v1001, %v997
  %v1170 = vpack.c.b16 %v1006, %v1002
  %v1171 = vpack.c.b16 %v1007, %v1003
  %v1172 = vpack.c.b16 %v1008, %v1004
  %v1173 = vpack.c.b16 %v1009, %v1005
  %v1174 = vpack.c.b16 %v1014, %v1010
  %v1175 = vpack.c.b16 %v1015, %v1011
  %v1176 = vpack.c.b16 %v1016, %v1012
  %v1177 = vpack.c.b16 %v1017, %v1013
  %v1178 = vpack.c.b16 %v1022, %v1018
  %v1179 = vpack.c.b16 %v1023, %v1019
  %v1180 = vpack.c.b16 %v1024, %v1020
  %v1181 = vpack.c.b16 %v1025, %v1021
  %v1182 = vpack.c.b16 %v1030, %v1026
  %v1183 = vpack.c.b16 %v1031, %v1027
  %v1184 = vpack.c.b16 %v1032, %v1028
  %v1185 = vpack.c.b16 %v1033, %v1029
  %v1186 = vpack.c.b16 %v1038, %v1034
  %v1187 = vpack.c.b16 %v1039, %v1035
  %v1188 = vpack.c.b16 %v1040, %v1036
  %v1189 = vpack.c.b16 %v1041, %v1037
  %v1190 = vpack.c.b16 %v1046, %v1042
  %v1191 = vpack.c.b16 %v1047, %v1043
  %v1192 = vpack.c.b16 %v1048, %v1044
  %v1193 = vpack.c.b16 %v1049, %v1045
  %v1194 = vpack.c.b16 %v1054, %v1050
  %v1195 = vpack.c.b16 %v1055, %v1051
  %v1196 = vpack.c.b16 %v1056, %v1052
  %v1197 = vpack.c.b16 %v1057, %v1053
  %v1198 = vpack.c.b16 %v1062, %v1058
  %v1199 = vpack.c.b16 %v1063, %v1059
  %v1200 = vpack.c.b16 %v1064, %v1060
  %v1201 = vpack.c.b16 %v1065, %v1061
  %v1202 = vpack.c.b16 %v1070, %v1066
  %v1203 = vpack.c.b16 %v1071, %v1067
  %v1204 = vpack.c.b16 %v1072, %v1068
  %v1205 = vpack.c.b16 %v1073, %v1069
  %v1206 = vpack.c.b16 %v1078, %v1074
  %v1207 = vpack.c.b16 %v1079, %v1075
  %v1208 = vpack.c.b16 %v1080, %v1076
  %v1209 = vpack.c.b16 %v1081, %v1077
  %1338 = vmatprep.subr.bf16.mxu0 %v1083
  %1339 = vmatpush1.bf16.msra.mxu0 %v1082
  %1340 = vmatprep.subr.bf16.mxu0 %v1087
  %1341 = vmatpush1.bf16.msra.mxu0 %v1086
  %1342 = vmatprep.subr.bf16.mxu0 %v1091
  %1343 = vmatpush1.bf16.msra.mxu0 %v1090
  %1344 = vmatprep.subr.bf16.mxu0 %v1095
  %1345 = vmatpush1.bf16.msra.mxu0 %v1094
  %1346 = vmatprep.subr.bf16.mxu0 %v1099
  %1347 = vmatpush1.bf16.msra.mxu0 %v1098
  %1348 = vmatprep.subr.bf16.mxu0 %v1103
  %1349 = vmatpush1.bf16.msra.mxu0 %v1102
  %1350 = vmatprep.subr.bf16.mxu0 %v1107
  %1351 = vmatpush1.bf16.msra.mxu0 %v1106
  %1352 = vmatprep.subr.bf16.mxu0 %v1111
  %1353 = vmatpush1.bf16.msra.mxu0 %v1110
  %1354 = vmatprep.subr.bf16.mxu0 %v1115
  %1355 = vmatpush1.bf16.msra.mxu0 %v1114
  %1356 = vmatprep.subr.bf16.mxu0 %v1119
  %1357 = vmatpush1.bf16.msra.mxu0 %v1118
  %1358 = vmatprep.subr.bf16.mxu0 %v1123
  %1359 = vmatpush1.bf16.msra.mxu0 %v1122
  %1360 = vmatprep.subr.bf16.mxu0 %v1127
  %1361 = vmatpush1.bf16.msra.mxu0 %v1126
  %1362 = vmatprep.subr.bf16.mxu0 %v1131
  %1363 = vmatpush1.bf16.msra.mxu0 %v1130
  %1364 = vmatprep.subr.bf16.mxu0 %v1135
  %1365 = vmatpush1.bf16.msra.mxu0 %v1134
  %1366 = vmatprep.subr.bf16.mxu0 %v1139
  %1367 = vmatpush1.bf16.msra.mxu0 %v1138
  %1368 = vmatprep.subr.bf16.mxu0 %v1143
  %1369 = vmatpush1.bf16.msra.mxu0 %v1142
  %1370 = vmatprep.mubr.bf16.mxu0 %v539
  %1371 = vmatmul.mubr.bf16.gmra.mrb[0].mxu0 %v538
  %v1372 = vpop.f32.mrb[0].mxu0
  %v1373 = vadd.f32 0.0, %v1372
  %v1374 = vpop.f32.mrb[0].mxu0
  %v1375 = vadd.f32 0.0, %v1374
  %v1376 = vpop.f32.mrb[0].mxu0
  %v1377 = vadd.f32 0.0, %v1376
  %v1378 = vpop.f32.mrb[0].mxu0
  %v1379 = vadd.f32 0.0, %v1378
  %1380 = vmatprep.mubr.bf16.mxu0 %v543
  %1381 = vmatmul.mubr.bf16.gmra.mrb[0].mxu0 %v542
  %v1382 = vpop.f32.mrb[0].mxu0
  %v1383 = vadd.f32 0.0, %v1382
  %v1384 = vpop.f32.mrb[0].mxu0
  %v1385 = vadd.f32 0.0, %v1384
  %v1386 = vpop.f32.mrb[0].mxu0
  %v1387 = vadd.f32 0.0, %v1386
  %v1388 = vpop.f32.mrb[0].mxu0
  %v1389 = vadd.f32 0.0, %v1388
  %1390 = vmatprep.mubr.bf16.mxu0 %v547
  %1391 = vmatmul.mubr.bf16.gmra.mrb[0].mxu0 %v546
  %v1392 = vpop.f32.mrb[0].mxu0
  %v1393 = vadd.f32 0.0, %v1392
  %v1394 = vpop.f32.mrb[0].mxu0
  %v1395 = vadd.f32 0.0, %v1394
  %v1396 = vpop.f32.mrb[0].mxu0
  %v1397 = vadd.f32 0.0, %v1396
  %v1398 = vpop.f32.mrb[0].mxu0
  %v1399 = vadd.f32 0.0, %v1398
  %1400 = vmatprep.mubr.bf16.mxu0 %v551
  %1401 = vmatmul.mubr.bf16.gmra.mrb[0].mxu0 %v550
  %v1402 = vpop.f32.mrb[0].mxu0
  %v1403 = vadd.f32 0.0, %v1402
  %v1404 = vpop.f32.mrb[0].mxu0
  %v1405 = vadd.f32 0.0, %v1404
  %v1406 = vpop.f32.mrb[0].mxu0
  %v1407 = vadd.f32 0.0, %v1406
  %v1408 = vpop.f32.mrb[0].mxu0
  %v1409 = vadd.f32 0.0, %v1408
  %1410 = vmatprep.mubr.bf16.mxu0 %v555
  %1411 = vmatmul.mubr.bf16.gmra.mrb[0].mxu0 %v554
  %v1412 = vpop.f32.mrb[0].mxu0
  %v1413 = vadd.f32 0.0, %v1412
  %v1414 = vpop.f32.mrb[0].mxu0
  %v1415 = vadd.f32 0.0, %v1414
  %v1416 = vpop.f32.mrb[0].mxu0
  %v1417 = vadd.f32 0.0, %v1416
  %v1418 = vpop.f32.mrb[0].mxu0
  %v1419 = vadd.f32 0.0, %v1418
  %1420 = vmatprep.mubr.bf16.mxu0 %v559
  %1421 = vmatmul.mubr.bf16.gmra.mrb[0].mxu0 %v558
  %v1422 = vpop.f32.mrb[0].mxu0
  %v1423 = vadd.f32 0.0, %v1422
  %v1424 = vpop.f32.mrb[0].mxu0
  %v1425 = vadd.f32 0.0, %v1424
  %v1426 = vpop.f32.mrb[0].mxu0
  %v1427 = vadd.f32 0.0, %v1426
  %v1428 = vpop.f32.mrb[0].mxu0
  %v1429 = vadd.f32 0.0, %v1428
  %1430 = vmatprep.mubr.bf16.mxu0 %v563
  %1431 = vmatmul.mubr.bf16.gmra.mrb[0].mxu0 %v562
  %v1432 = vpop.f32.mrb[0].mxu0
  %v1433 = vadd.f32 0.0, %v1432
  %v1434 = vpop.f32.mrb[0].mxu0
  %v1435 = vadd.f32 0.0, %v1434
  %v1436 = vpop.f32.mrb[0].mxu0
  %v1437 = vadd.f32 0.0, %v1436
  %v1438 = vpop.f32.mrb[0].mxu0
  %v1439 = vadd.f32 0.0, %v1438
  %1440 = vmatprep.mubr.bf16.mxu0 %v567
  %1441 = vmatmul.mubr.bf16.gmra.mrb[0].mxu0 %v566
  %v1442 = vpop.f32.mrb[0].mxu0
  %v1443 = vadd.f32 0.0, %v1442
  %v1444 = vpop.f32.mrb[0].mxu0
  %v1445 = vadd.f32 0.0, %v1444
  %v1446 = vpop.f32.mrb[0].mxu0
  %v1447 = vadd.f32 0.0, %v1446
  %v1448 = vpop.f32.mrb[0].mxu0
  %v1449 = vadd.f32 0.0, %v1448
  %1450 = vdwg.mxu0
  %1451 = vmatprep.subr.bf16.mxu0 %v1147
  %1452 = vmatpush1.bf16.msra.mxu0 %v1146
  %1453 = vmatprep.subr.bf16.mxu0 %v1151
  %1454 = vmatpush1.bf16.msra.mxu0 %v1150
  %1455 = vmatprep.subr.bf16.mxu0 %v1155
  %1456 = vmatpush1.bf16.msra.mxu0 %v1154
  %1457 = vmatprep.subr.bf16.mxu0 %v1159
  %1458 = vmatpush1.bf16.msra.mxu0 %v1158
  %1459 = vmatprep.subr.bf16.mxu0 %v1163
  %1460 = vmatpush1.bf16.msra.mxu0 %v1162
  %1461 = vmatprep.subr.bf16.mxu0 %v1167
  %1462 = vmatpush1.bf16.msra.mxu0 %v1166
  %1463 = vmatprep.subr.bf16.mxu0 %v1171
  %1464 = vmatpush1.bf16.msra.mxu0 %v1170
  %1465 = vmatprep.subr.bf16.mxu0 %v1175
  %1466 = vmatpush1.bf16.msra.mxu0 %v1174
  %1467 = vmatprep.subr.bf16.mxu0 %v1179
  %1468 = vmatpush1.bf16.msra.mxu0 %v1178
  %1469 = vmatprep.subr.bf16.mxu0 %v1183
  %1470 = vmatpush1.bf16.msra.mxu0 %v1182
  %1471 = vmatprep.subr.bf16.mxu0 %v1187
  %1472 = vmatpush1.bf16.msra.mxu0 %v1186
  %1473 = vmatprep.subr.bf16.mxu0 %v1191
  %1474 = vmatpush1.bf16.msra.mxu0 %v1190
  %1475 = vmatprep.subr.bf16.mxu0 %v1195
  %1476 = vmatpush1.bf16.msra.mxu0 %v1194
  %1477 = vmatprep.subr.bf16.mxu0 %v1199
  %1478 = vmatpush1.bf16.msra.mxu0 %v1198
  %1479 = vmatprep.subr.bf16.mxu0 %v1203
  %1480 = vmatpush1.bf16.msra.mxu0 %v1202
  %1481 = vmatprep.subr.bf16.mxu0 %v1207
  %1482 = vmatpush1.bf16.msra.mxu0 %v1206
  %1483 = vmatprep.mubr.bf16.mxu0 %v541
  %1484 = vmatmul.mubr.bf16.gmra.mrb[0].mxu0 %v540
  %v1485 = vpop.f32.mrb[0].mxu0
  %v1486 = vadd.f32 %v1373, %v1485
  %v1487 = vpop.f32.mrb[0].mxu0
  %v1488 = vadd.f32 %v1375, %v1487
  %v1489 = vpop.f32.mrb[0].mxu0
  %v1490 = vadd.f32 %v1377, %v1489
  %v1491 = vpop.f32.mrb[0].mxu0
  %v1492 = vadd.f32 %v1379, %v1491
  %1493 = vmatprep.mubr.bf16.mxu0 %v545
  %1494 = vmatmul.mubr.bf16.gmra.mrb[0].mxu0 %v544
  %v1495 = vpop.f32.mrb[0].mxu0
  %v1496 = vadd.f32 %v1383, %v1495
  %v1497 = vpop.f32.mrb[0].mxu0
  %v1498 = vadd.f32 %v1385, %v1497
  %v1499 = vpop.f32.mrb[0].mxu0
  %v1500 = vadd.f32 %v1387, %v1499
  %v1501 = vpop.f32.mrb[0].mxu0
  %v1502 = vadd.f32 %v1389, %v1501
  %1503 = vmatprep.mubr.bf16.mxu0 %v549
  %1504 = vmatmul.mubr.bf16.gmra.mrb[0].mxu0 %v548
  %v1505 = vpop.f32.mrb[0].mxu0
  %v1506 = vadd.f32 %v1393, %v1505
  %v1507 = vpop.f32.mrb[0].mxu0
  %v1508 = vadd.f32 %v1395, %v1507
  %v1509 = vpop.f32.mrb[0].mxu0
  %v1510 = vadd.f32 %v1397, %v1509
  %v1511 = vpop.f32.mrb[0].mxu0
  %v1512 = vadd.f32 %v1399, %v1511
  %1513 = vmatprep.mubr.bf16.mxu0 %v553
  %1514 = vmatmul.mubr.bf16.gmra.mrb[0].mxu0 %v552
  %v1515 = vpop.f32.mrb[0].mxu0
  %v1516 = vadd.f32 %v1403, %v1515
  %v1517 = vpop.f32.mrb[0].mxu0
  %v1518 = vadd.f32 %v1405, %v1517
  %v1519 = vpop.f32.mrb[0].mxu0
  %v1520 = vadd.f32 %v1407, %v1519
  %v1521 = vpop.f32.mrb[0].mxu0
  %v1522 = vadd.f32 %v1409, %v1521
  %1523 = vmatprep.mubr.bf16.mxu0 %v557
  %1524 = vmatmul.mubr.bf16.gmra.mrb[0].mxu0 %v556
  %v1525 = vpop.f32.mrb[0].mxu0
  %v1526 = vadd.f32 %v1413, %v1525
  %v1527 = vpop.f32.mrb[0].mxu0
  %v1528 = vadd.f32 %v1415, %v1527
  %v1529 = vpop.f32.mrb[0].mxu0
  %v1530 = vadd.f32 %v1417, %v1529
  %v1531 = vpop.f32.mrb[0].mxu0
  %v1532 = vadd.f32 %v1419, %v1531
  %1533 = vmatprep.mubr.bf16.mxu0 %v561
  %1534 = vmatmul.mubr.bf16.gmra.mrb[0].mxu0 %v560
  %v1535 = vpop.f32.mrb[0].mxu0
  %v1536 = vadd.f32 %v1423, %v1535
  %v1537 = vpop.f32.mrb[0].mxu0
  %v1538 = vadd.f32 %v1425, %v1537
  %v1539 = vpop.f32.mrb[0].mxu0
  %v1540 = vadd.f32 %v1427, %v1539
  %v1541 = vpop.f32.mrb[0].mxu0
  %v1542 = vadd.f32 %v1429, %v1541
  %1543 = vmatprep.mubr.bf16.mxu0 %v565
  %1544 = vmatmul.mubr.bf16.gmra.mrb[0].mxu0 %v564
  %v1545 = vpop.f32.mrb[0].mxu0
  %v1546 = vadd.f32 %v1433, %v1545
  %v1547 = vpop.f32.mrb[0].mxu0
  %v1548 = vadd.f32 %v1435, %v1547
  %v1549 = vpop.f32.mrb[0].mxu0
  %v1550 = vadd.f32 %v1437, %v1549
  %v1551 = vpop.f32.mrb[0].mxu0
  %v1552 = vadd.f32 %v1439, %v1551
  %1553 = vmatprep.mubr.bf16.mxu0 %v569
  %1554 = vmatmul.mubr.bf16.gmra.mrb[0].mxu0 %v568
  %v1555 = vpop.f32.mrb[0].mxu0
  %v1556 = vadd.f32 %v1443, %v1555
  %v1557 = vpop.f32.mrb[0].mxu0
  %v1558 = vadd.f32 %v1445, %v1557
  %v1559 = vpop.f32.mrb[0].mxu0
  %v1560 = vadd.f32 %v1447, %v1559
  %v1561 = vpop.f32.mrb[0].mxu0
  %v1562 = vadd.f32 %v1449, %v1561
  %1563 = vdwg.mxu0
  %1564 = vmatprep.subr.bf16.mxu0 %v1085
  %1565 = vmatpush1.bf16.msra.mxu0 %v1084
  %1566 = vmatprep.subr.bf16.mxu0 %v1089
  %1567 = vmatpush1.bf16.msra.mxu0 %v1088
  %1568 = vmatprep.subr.bf16.mxu0 %v1093
  %1569 = vmatpush1.bf16.msra.mxu0 %v1092
  %1570 = vmatprep.subr.bf16.mxu0 %v1097
  %1571 = vmatpush1.bf16.msra.mxu0 %v1096
  %1572 = vmatprep.subr.bf16.mxu0 %v1101
  %1573 = vmatpush1.bf16.msra.mxu0 %v1100
  %1574 = vmatprep.subr.bf16.mxu0 %v1105
  %1575 = vmatpush1.bf16.msra.mxu0 %v1104
  %1576 = vmatprep.subr.bf16.mxu0 %v1109
  %1577 = vmatpush1.bf16.msra.mxu0 %v1108
  %1578 = vmatprep.subr.bf16.mxu0 %v1113
  %1579 = vmatpush1.bf16.msra.mxu0 %v1112
  %1580 = vmatprep.subr.bf16.mxu0 %v1117
  %1581 = vmatpush1.bf16.msra.mxu0 %v1116
  %1582 = vmatprep.subr.bf16.mxu0 %v1121
  %1583 = vmatpush1.bf16.msra.mxu0 %v1120
  %1584 = vmatprep.subr.bf16.mxu0 %v1125
  %1585 = vmatpush1.bf16.msra.mxu0 %v1124
  %1586 = vmatprep.subr.bf16.mxu0 %v1129
  %1587 = vmatpush1.bf16.msra.mxu0 %v1128
  %1588 = vmatprep.subr.bf16.mxu0 %v1133
  %1589 = vmatpush1.bf16.msra.mxu0 %v1132
  %1590 = vmatprep.subr.bf16.mxu0 %v1137
  %1591 = vmatpush1.bf16.msra.mxu0 %v1136
  %1592 = vmatprep.subr.bf16.mxu0 %v1141
  %1593 = vmatpush1.bf16.msra.mxu0 %v1140
  %1594 = vmatprep.subr.bf16.mxu0 %v1145
  %1595 = vmatpush1.bf16.msra.mxu0 %v1144
  %1596 = vmatprep.mubr.bf16.mxu0 %v539
  %1597 = vmatmul.mubr.bf16.gmra.mrb[0].mxu0 %v538
  %v1598 = vpop.f32.mrb[0].mxu0
  %v1599 = vadd.f32 0.0, %v1598
  %v1600 = vpop.f32.mrb[0].mxu0
  %v1601 = vadd.f32 0.0, %v1600
  %v1602 = vpop.f32.mrb[0].mxu0
  %v1603 = vadd.f32 0.0, %v1602
  %v1604 = vpop.f32.mrb[0].mxu0
  %v1605 = vadd.f32 0.0, %v1604
  %1606 = vmatprep.mubr.bf16.mxu0 %v543
  %1607 = vmatmul.mubr.bf16.gmra.mrb[0].mxu0 %v542
  %v1608 = vpop.f32.mrb[0].mxu0
  %v1609 = vadd.f32 0.0, %v1608
  %v1610 = vpop.f32.mrb[0].mxu0
  %v1611 = vadd.f32 0.0, %v1610
  %v1612 = vpop.f32.mrb[0].mxu0
  %v1613 = vadd.f32 0.0, %v1612
  %v1614 = vpop.f32.mrb[0].mxu0
  %v1615 = vadd.f32 0.0, %v1614
  %1616 = vmatprep.mubr.bf16.mxu0 %v547
  %1617 = vmatmul.mubr.bf16.gmra.mrb[0].mxu0 %v546
  %v1618 = vpop.f32.mrb[0].mxu0
  %v1619 = vadd.f32 0.0, %v1618
  %v1620 = vpop.f32.mrb[0].mxu0
  %v1621 = vadd.f32 0.0, %v1620
  %v1622 = vpop.f32.mrb[0].mxu0
  %v1623 = vadd.f32 0.0, %v1622
  %v1624 = vpop.f32.mrb[0].mxu0
  %v1625 = vadd.f32 0.0, %v1624
  %1626 = vmatprep.mubr.bf16.mxu0 %v551
  %1627 = vmatmul.mubr.bf16.gmra.mrb[0].mxu0 %v550
  %v1628 = vpop.f32.mrb[0].mxu0
  %v1629 = vadd.f32 0.0, %v1628
  %v1630 = vpop.f32.mrb[0].mxu0
  %v1631 = vadd.f32 0.0, %v1630
  %v1632 = vpop.f32.mrb[0].mxu0
  %v1633 = vadd.f32 0.0, %v1632
  %v1634 = vpop.f32.mrb[0].mxu0
  %v1635 = vadd.f32 0.0, %v1634
  %1636 = vmatprep.mubr.bf16.mxu0 %v555
  %1637 = vmatmul.mubr.bf16.gmra.mrb[0].mxu0 %v554
  %v1638 = vpop.f32.mrb[0].mxu0
  %v1639 = vadd.f32 0.0, %v1638
  %v1640 = vpop.f32.mrb[0].mxu0
  %v1641 = vadd.f32 0.0, %v1640
  %v1642 = vpop.f32.mrb[0].mxu0
  %v1643 = vadd.f32 0.0, %v1642
  %v1644 = vpop.f32.mrb[0].mxu0
  %v1645 = vadd.f32 0.0, %v1644
  %1646 = vmatprep.mubr.bf16.mxu0 %v559
  %1647 = vmatmul.mubr.bf16.gmra.mrb[0].mxu0 %v558
  %v1648 = vpop.f32.mrb[0].mxu0
  %v1649 = vadd.f32 0.0, %v1648
  %v1650 = vpop.f32.mrb[0].mxu0
  %v1651 = vadd.f32 0.0, %v1650
  %v1652 = vpop.f32.mrb[0].mxu0
  %v1653 = vadd.f32 0.0, %v1652
  %v1654 = vpop.f32.mrb[0].mxu0
  %v1655 = vadd.f32 0.0, %v1654
  %1656 = vmatprep.mubr.bf16.mxu0 %v563
  %1657 = vmatmul.mubr.bf16.gmra.mrb[0].mxu0 %v562
  %v1658 = vpop.f32.mrb[0].mxu0
  %v1659 = vadd.f32 0.0, %v1658
  %v1660 = vpop.f32.mrb[0].mxu0
  %v1661 = vadd.f32 0.0, %v1660
  %v1662 = vpop.f32.mrb[0].mxu0
  %v1663 = vadd.f32 0.0, %v1662
  %v1664 = vpop.f32.mrb[0].mxu0
  %v1665 = vadd.f32 0.0, %v1664
  %1666 = vmatprep.mubr.bf16.mxu0 %v567
  %1667 = vmatmul.mubr.bf16.gmra.mrb[0].mxu0 %v566
  %v1668 = vpop.f32.mrb[0].mxu0
  %v1669 = vadd.f32 0.0, %v1668
  %v1670 = vpop.f32.mrb[0].mxu0
  %v1671 = vadd.f32 0.0, %v1670
  %v1672 = vpop.f32.mrb[0].mxu0
  %v1673 = vadd.f32 0.0, %v1672
  %v1674 = vpop.f32.mrb[0].mxu0
  %v1675 = vadd.f32 0.0, %v1674
  %1676 = vdwg.mxu0
  %1677 = vmatprep.subr.bf16.mxu0 %v1149
  %1678 = vmatpush1.bf16.msra.mxu0 %v1148
  %1679 = vmatprep.subr.bf16.mxu0 %v1153
  %1680 = vmatpush1.bf16.msra.mxu0 %v1152
  %1681 = vmatprep.subr.bf16.mxu0 %v1157
  %1682 = vmatpush1.bf16.msra.mxu0 %v1156
  %1683 = vmatprep.subr.bf16.mxu0 %v1161
  %1684 = vmatpush1.bf16.msra.mxu0 %v1160
  %1685 = vmatprep.subr.bf16.mxu0 %v1165
  %1686 = vmatpush1.bf16.msra.mxu0 %v1164
  %1687 = vmatprep.subr.bf16.mxu0 %v1169
  %1688 = vmatpush1.bf16.msra.mxu0 %v1168
  %1689 = vmatprep.subr.bf16.mxu0 %v1173
  %1690 = vmatpush1.bf16.msra.mxu0 %v1172
  %1691 = vmatprep.subr.bf16.mxu0 %v1177
  %1692 = vmatpush1.bf16.msra.mxu0 %v1176
  %1693 = vmatprep.subr.bf16.mxu0 %v1181
  %1694 = vmatpush1.bf16.msra.mxu0 %v1180
  %1695 = vmatprep.subr.bf16.mxu0 %v1185
  %1696 = vmatpush1.bf16.msra.mxu0 %v1184
  %1697 = vmatprep.subr.bf16.mxu0 %v1189
  %1698 = vmatpush1.bf16.msra.mxu0 %v1188
  %1699 = vmatprep.subr.bf16.mxu0 %v1193
  %1700 = vmatpush1.bf16.msra.mxu0 %v1192
  %1701 = vmatprep.subr.bf16.mxu0 %v1197
  %1702 = vmatpush1.bf16.msra.mxu0 %v1196
  %1703 = vmatprep.subr.bf16.mxu0 %v1201
  %1704 = vmatpush1.bf16.msra.mxu0 %v1200
  %1705 = vmatprep.subr.bf16.mxu0 %v1205
  %1706 = vmatpush1.bf16.msra.mxu0 %v1204
  %1707 = vmatprep.subr.bf16.mxu0 %v1209
  %1708 = vmatpush1.bf16.msra.mxu0 %v1208
  %1709 = vmatprep.mubr.bf16.mxu0 %v541
  %1710 = vmatmul.mubr.bf16.gmra.mrb[0].mxu0 %v540
  %v1711 = vpop.f32.mrb[0].mxu0
  %v1712 = vadd.f32 %v1599, %v1711
  %v1713 = vpop.f32.mrb[0].mxu0
  %v1714 = vadd.f32 %v1601, %v1713
  %v1715 = vpop.f32.mrb[0].mxu0
  %v1716 = vadd.f32 %v1603, %v1715
  %v1717 = vpop.f32.mrb[0].mxu0
  %v1718 = vadd.f32 %v1605, %v1717
  %1719 = vmatprep.mubr.bf16.mxu0 %v545
  %1720 = vmatmul.mubr.bf16.gmra.mrb[0].mxu0 %v544
  %v1721 = vpop.f32.mrb[0].mxu0
  %v1722 = vadd.f32 %v1609, %v1721
  %v1723 = vpop.f32.mrb[0].mxu0
  %v1724 = vadd.f32 %v1611, %v1723
  %v1725 = vpop.f32.mrb[0].mxu0
  %v1726 = vadd.f32 %v1613, %v1725
  %v1727 = vpop.f32.mrb[0].mxu0
  %v1728 = vadd.f32 %v1615, %v1727
  %1729 = vmatprep.mubr.bf16.mxu0 %v549
  %1730 = vmatmul.mubr.bf16.gmra.mrb[0].mxu0 %v548
  %v1731 = vpop.f32.mrb[0].mxu0
  %v1732 = vadd.f32 %v1619, %v1731
  %v1733 = vpop.f32.mrb[0].mxu0
  %v1734 = vadd.f32 %v1621, %v1733
  %v1735 = vpop.f32.mrb[0].mxu0
  %v1736 = vadd.f32 %v1623, %v1735
  %v1737 = vpop.f32.mrb[0].mxu0
  %v1738 = vadd.f32 %v1625, %v1737
  %1739 = vmatprep.mubr.bf16.mxu0 %v553
  %1740 = vmatmul.mubr.bf16.gmra.mrb[0].mxu0 %v552
  %v1741 = vpop.f32.mrb[0].mxu0
  %v1742 = vadd.f32 %v1629, %v1741
  %v1743 = vpop.f32.mrb[0].mxu0
  %v1744 = vadd.f32 %v1631, %v1743
  %v1745 = vpop.f32.mrb[0].mxu0
  %v1746 = vadd.f32 %v1633, %v1745
  %v1747 = vpop.f32.mrb[0].mxu0
  %v1748 = vadd.f32 %v1635, %v1747
  %1749 = vmatprep.mubr.bf16.mxu0 %v557
  %1750 = vmatmul.mubr.bf16.gmra.mrb[0].mxu0 %v556
  %v1751 = vpop.f32.mrb[0].mxu0
  %v1752 = vadd.f32 %v1639, %v1751
  %v1753 = vpop.f32.mrb[0].mxu0
  %v1754 = vadd.f32 %v1641, %v1753
  %v1755 = vpop.f32.mrb[0].mxu0
  %v1756 = vadd.f32 %v1643, %v1755
  %v1757 = vpop.f32.mrb[0].mxu0
  %v1758 = vadd.f32 %v1645, %v1757
  %1759 = vmatprep.mubr.bf16.mxu0 %v561
  %1760 = vmatmul.mubr.bf16.gmra.mrb[0].mxu0 %v560
  %v1761 = vpop.f32.mrb[0].mxu0
  %v1762 = vadd.f32 %v1649, %v1761
  %v1763 = vpop.f32.mrb[0].mxu0
  %v1764 = vadd.f32 %v1651, %v1763
  %v1765 = vpop.f32.mrb[0].mxu0
  %v1766 = vadd.f32 %v1653, %v1765
  %v1767 = vpop.f32.mrb[0].mxu0
  %v1768 = vadd.f32 %v1655, %v1767
  %1769 = vmatprep.mubr.bf16.mxu0 %v565
  %1770 = vmatmul.mubr.bf16.gmra.mrb[0].mxu0 %v564
  %v1771 = vpop.f32.mrb[0].mxu0
  %v1772 = vadd.f32 %v1659, %v1771
  %v1773 = vpop.f32.mrb[0].mxu0
  %v1774 = vadd.f32 %v1661, %v1773
  %v1775 = vpop.f32.mrb[0].mxu0
  %v1776 = vadd.f32 %v1663, %v1775
  %v1777 = vpop.f32.mrb[0].mxu0
  %v1778 = vadd.f32 %v1665, %v1777
  %1779 = vmatprep.mubr.bf16.mxu0 %v569
  %1780 = vmatmul.mubr.bf16.gmra.mrb[0].mxu0 %v568
  %v1781 = vpop.f32.mrb[0].mxu0
  %v1782 = vadd.f32 %v1669, %v1781
  %v1783 = vpop.f32.mrb[0].mxu0
  %v1784 = vadd.f32 %v1671, %v1783
  %v1785 = vpop.f32.mrb[0].mxu0
  %v1786 = vadd.f32 %v1673, %v1785
  %v1787 = vpop.f32.mrb[0].mxu0
  %v1788 = vadd.f32 %v1675, %v1787
  %1789 = vdwg.mxu0
  %v1790 = vpack.c.bf16 %v1490, %v1486
  %v1791 = vpack.c.bf16 %v1492, %v1488
  %v1792 = vpack.c.bf16 %v1716, %v1712
  %v1793 = vpack.c.bf16 %v1718, %v1714
  %v1794 = vpack.c.bf16 %v1500, %v1496
  %v1795 = vpack.c.bf16 %v1502, %v1498
  %v1796 = vpack.c.bf16 %v1726, %v1722
  %v1797 = vpack.c.bf16 %v1728, %v1724
  %v1798 = vpack.c.bf16 %v1510, %v1506
  %v1799 = vpack.c.bf16 %v1512, %v1508
  %v1800 = vpack.c.bf16 %v1736, %v1732
  %v1801 = vpack.c.bf16 %v1738, %v1734
  %v1802 = vpack.c.bf16 %v1520, %v1516
  %v1803 = vpack.c.bf16 %v1522, %v1518
  %v1804 = vpack.c.bf16 %v1746, %v1742
  %v1805 = vpack.c.bf16 %v1748, %v1744
  %v1806 = vpack.c.bf16 %v1530, %v1526
  %v1807 = vpack.c.bf16 %v1532, %v1528
  %v1808 = vpack.c.bf16 %v1756, %v1752
  %v1809 = vpack.c.bf16 %v1758, %v1754
  %v1810 = vpack.c.bf16 %v1540, %v1536
  %v1811 = vpack.c.bf16 %v1542, %v1538
  %v1812 = vpack.c.bf16 %v1766, %v1762
  %v1813 = vpack.c.bf16 %v1768, %v1764
  %v1814 = vpack.c.bf16 %v1550, %v1546
  %v1815 = vpack.c.bf16 %v1552, %v1548
  %v1816 = vpack.c.bf16 %v1776, %v1772
  %v1817 = vpack.c.bf16 %v1778, %v1774
  %v1818 = vpack.c.bf16 %v1560, %v1556
  %v1819 = vpack.c.bf16 %v1562, %v1558
  %v1820 = vpack.c.bf16 %v1786, %v1782
  %v1821 = vpack.c.bf16 %v1788, %v1784
  %v1822 = vld [vmem:[%s4] sm:$0xf]
  %v1825 = vunpack.c.l.s4 1966171168
  %v1826 = vunpack.c.0.s8 %v1825
  %v1827 = vlaneseq
  %v1828 = vshrl.u32 %v1827, 7
  %v1829 = vsub.s32 %v1826, %v1828
  %v1830 = vrot.slane %v1822, %v1829
  %v1831 = vcombine.high %v1830, %v1830
  %v1833 = vunpack.c.l.s4 1966171168
  %v1834 = vunpack.c.0.s8 %v1833
  %v1835 = vlaneseq
  %v1836 = vshrl.u32 %v1835, 7
  %v1837 = vsub.s32 %v1834, %v1836
  %v1838 = vrot.slane %v1830, %v1837
  %v1840 = vunpack.c.l.s4 1966171168
  %v1841 = vunpack.c.0.s8 %v1840
  %v1842 = vlaneseq
  %v1843 = vshrl.u32 %v1842, 7
  %v1844 = vsub.s32 %v1841, %v1843
  %v1845 = vrot.slane %v1831, %v1844
  %v1846 = vcombine.high %v1838, %v1838
  %v1847 = vcombine.high %v1845, %v1845
  %v1849 = vpack.i.b16 %v1838, %v1838
  %v1851 = vlaneseq
  %v1852 = vshrl.u32 %v1851, 7
  %v1853 = vsub.s32 0, %v1852
  %v1854 = vrot.slane %v1849, %v1853
  %v1856 = vpack.i.b16 %v1845, %v1845
  %v1858 = vlaneseq
  %v1859 = vshrl.u32 %v1858, 7
  %v1860 = vsub.s32 0, %v1859
  %v1861 = vrot.slane %v1856, %v1860
  %v1863 = vpack.i.b16 %v1846, %v1846
  %v1865 = vlaneseq
  %v1866 = vshrl.u32 %v1865, 7
  %v1867 = vsub.s32 0, %v1866
  %v1868 = vrot.slane %v1863, %v1867
  %v1870 = vpack.i.b16 %v1847, %v1847
  %v1872 = vlaneseq
  %v1873 = vshrl.u32 %v1872, 7
  %v1874 = vsub.s32 0, %v1873
  %v1875 = vrot.slane %v1870, %v1874
  %v1876 = vadd.bf16 %v1790, %v1854
  %v1877 = vadd.bf16 %v1791, %v1861
  %v1878 = vadd.bf16 %v1792, %v1868
  %v1879 = vadd.bf16 %v1793, %v1875
  %v1880 = vadd.bf16 %v1794, %v1854
  %v1881 = vadd.bf16 %v1795, %v1861
  %v1882 = vadd.bf16 %v1796, %v1868
  %v1883 = vadd.bf16 %v1797, %v1875
  %v1884 = vadd.bf16 %v1798, %v1854
  %v1885 = vadd.bf16 %v1799, %v1861
  %v1886 = vadd.bf16 %v1800, %v1868
  %v1887 = vadd.bf16 %v1801, %v1875
  %v1888 = vadd.bf16 %v1802, %v1854
  %v1889 = vadd.bf16 %v1803, %v1861
  %v1890 = vadd.bf16 %v1804, %v1868
  %v1891 = vadd.bf16 %v1805, %v1875
  %v1892 = vadd.bf16 %v1806, %v1854
  %v1893 = vadd.bf16 %v1807, %v1861
  %v1894 = vadd.bf16 %v1808, %v1868
  %v1895 = vadd.bf16 %v1809, %v1875
  %v1896 = vadd.bf16 %v1810, %v1854
  %v1897 = vadd.bf16 %v1811, %v1861
  %v1898 = vadd.bf16 %v1812, %v1868
  %v1899 = vadd.bf16 %v1813, %v1875
  %v1900 = vadd.bf16 %v1814, %v1854
  %v1901 = vadd.bf16 %v1815, %v1861
  %v1902 = vadd.bf16 %v1816, %v1868
  %v1903 = vadd.bf16 %v1817, %v1875
  %v1904 = vadd.bf16 %v1818, %v1854
  %v1905 = vadd.bf16 %v1819, %v1861
  %v1906 = vadd.bf16 %v1820, %v1868
  %v1907 = vadd.bf16 %v1821, %v1875
  %v1908 = vtanh.bf16.pop %v1876
  %v1909 = vtanh.bf16.pop %v1877
  %v1910 = vtanh.bf16.pop %v1878
  %v1911 = vtanh.bf16.pop %v1879
  %v1912 = vtanh.bf16.pop %v1880
  %v1913 = vtanh.bf16.pop %v1881
  %v1914 = vtanh.bf16.pop %v1882
  %v1915 = vtanh.bf16.pop %v1883
  %v1916 = vtanh.bf16.pop %v1884
  %v1917 = vtanh.bf16.pop %v1885
  %v1918 = vtanh.bf16.pop %v1886
  %v1919 = vtanh.bf16.pop %v1887
  %v1920 = vtanh.bf16.pop %v1888
  %v1921 = vtanh.bf16.pop %v1889
  %v1922 = vtanh.bf16.pop %v1890
  %v1923 = vtanh.bf16.pop %v1891
  %v1924 = vtanh.bf16.pop %v1892
  %v1925 = vtanh.bf16.pop %v1893
  %v1926 = vtanh.bf16.pop %v1894
  %v1927 = vtanh.bf16.pop %v1895
  %v1928 = vtanh.bf16.pop %v1896
  %v1929 = vtanh.bf16.pop %v1897
  %v1930 = vtanh.bf16.pop %v1898
  %v1931 = vtanh.bf16.pop %v1899
  %v1932 = vtanh.bf16.pop %v1900
  %v1933 = vtanh.bf16.pop %v1901
  %v1934 = vtanh.bf16.pop %v1902
  %v1935 = vtanh.bf16.pop %v1903
  %v1936 = vtanh.bf16.pop %v1904
  %v1937 = vtanh.bf16.pop %v1905
  %v1938 = vtanh.bf16.pop %v1906
  %v1939 = vtanh.bf16.pop %v1907
  %v1940 = vld [vmem:[%s5] sm:$0xff]
  %v1941 = vld [vmem:[%s5 + $0x8] sm:$0xff]
  %v1942 = vld [vmem:[%s5 + $0x10] sm:$0xff]
  %v1943 = vld [vmem:[%s5 + $0x18] sm:$0xff]
  %v1944 = vld [vmem:[%s5 + $0x20] sm:$0xff]
  %v1945 = vld [vmem:[%s5 + $0x28] sm:$0xff]
  %v1946 = vld [vmem:[%s5 + $0x30] sm:$0xff]
  %v1947 = vld [vmem:[%s5 + $0x38] sm:$0xff]
  %v1948 = vld [vmem:[%s5 + $0x40] sm:$0xff]
  %v1949 = vld [vmem:[%s5 + $0x48] sm:$0xff]
  %v1950 = vld [vmem:[%s5 + $0x50] sm:$0xff]
  %v1951 = vld [vmem:[%s5 + $0x58] sm:$0xff]
  %v1952 = vld [vmem:[%s5 + $0x60] sm:$0xff]
  %v1953 = vld [vmem:[%s5 + $0x68] sm:$0xff]
  %v1954 = vld [vmem:[%s5 + $0x70] sm:$0xff]
  %v1955 = vld [vmem:[%s5 + $0x78] sm:$0xff]
  %v1956 = vld [vmem:[%s5 + $0x80] sm:$0xff]
  %v1957 = vld [vmem:[%s5 + $0x88] sm:$0xff]
  %v1958 = vld [vmem:[%s5 + $0x90] sm:$0xff]
  %v1959 = vld [vmem:[%s5 + $0x98] sm:$0xff]
  %v1960 = vld [vmem:[%s5 + $0xa0] sm:$0xff]
  %v1961 = vld [vmem:[%s5 + $0xa8] sm:$0xff]
  %v1962 = vld [vmem:[%s5 + $0xb0] sm:$0xff]
  %v1963 = vld [vmem:[%s5 + $0xb8] sm:$0xff]
  %v1964 = vld [vmem:[%s5 + $0xc0] sm:$0xff]
  %v1965 = vld [vmem:[%s5 + $0xc8] sm:$0xff]
  %v1966 = vld [vmem:[%s5 + $0xd0] sm:$0xff]
  %v1967 = vld [vmem:[%s5 + $0xd8] sm:$0xff]
  %v1968 = vld [vmem:[%s5 + $0xe0] sm:$0xff]
  %v1969 = vld [vmem:[%s5 + $0xe8] sm:$0xff]
  %v1970 = vld [vmem:[%s5 + $0xf0] sm:$0xff]
  %v1971 = vld [vmem:[%s5 + $0xf8] sm:$0xff]
  %v1972 = vld [vmem:[%s5 + $0x100] sm:$0xff]
  %v1973 = vld [vmem:[%s5 + $0x108] sm:$0xff]
  %v1974 = vld [vmem:[%s5 + $0x110] sm:$0xff]
  %v1975 = vld [vmem:[%s5 + $0x118] sm:$0xff]
  %v1976 = vld [vmem:[%s5 + $0x120] sm:$0xff]
  %v1977 = vld [vmem:[%s5 + $0x128] sm:$0xff]
  %v1978 = vld [vmem:[%s5 + $0x130] sm:$0xff]
  %v1979 = vld [vmem:[%s5 + $0x138] sm:$0xff]
  %v1980 = vld [vmem:[%s5 + $0x140] sm:$0xff]
  %v1981 = vld [vmem:[%s5 + $0x148] sm:$0xff]
  %v1982 = vld [vmem:[%s5 + $0x150] sm:$0xff]
  %v1983 = vld [vmem:[%s5 + $0x158] sm:$0xff]
  %v1984 = vld [vmem:[%s5 + $0x160] sm:$0xff]
  %v1985 = vld [vmem:[%s5 + $0x168] sm:$0xff]
  %v1986 = vld [vmem:[%s5 + $0x170] sm:$0xff]
  %v1987 = vld [vmem:[%s5 + $0x178] sm:$0xff]
  %v1988 = vld [vmem:[%s5 + $0x180] sm:$0xff]
  %v1989 = vld [vmem:[%s5 + $0x188] sm:$0xff]
  %v1990 = vld [vmem:[%s5 + $0x190] sm:$0xff]
  %v1991 = vld [vmem:[%s5 + $0x198] sm:$0xff]
  %v1992 = vld [vmem:[%s5 + $0x1a0] sm:$0xff]
  %v1993 = vld [vmem:[%s5 + $0x1a8] sm:$0xff]
  %v1994 = vld [vmem:[%s5 + $0x1b0] sm:$0xff]
  %v1995 = vld [vmem:[%s5 + $0x1b8] sm:$0xff]
  %v1996 = vld [vmem:[%s5 + $0x1c0] sm:$0xff]
  %v1997 = vld [vmem:[%s5 + $0x1c8] sm:$0xff]
  %v1998 = vld [vmem:[%s5 + $0x1d0] sm:$0xff]
  %v1999 = vld [vmem:[%s5 + $0x1d8] sm:$0xff]
  %v2000 = vld [vmem:[%s5 + $0x1e0] sm:$0xff]
  %v2001 = vld [vmem:[%s5 + $0x1e8] sm:$0xff]
  %v2002 = vld [vmem:[%s5 + $0x1f0] sm:$0xff]
  %v2003 = vld [vmem:[%s5 + $0x1f8] sm:$0xff]
  %v2004 = vld [vmem:[%s5 + $0x200] sm:$0xff]
  %v2005 = vld [vmem:[%s5 + $0x208] sm:$0xff]
  %v2006 = vld [vmem:[%s5 + $0x210] sm:$0xff]
  %v2007 = vld [vmem:[%s5 + $0x218] sm:$0xff]
  %v2008 = vld [vmem:[%s5 + $0x220] sm:$0xff]
  %v2009 = vld [vmem:[%s5 + $0x228] sm:$0xff]
  %v2010 = vld [vmem:[%s5 + $0x230] sm:$0xff]
  %v2011 = vld [vmem:[%s5 + $0x238] sm:$0xff]
  %v2012 = vld [vmem:[%s5 + $0x240] sm:$0xff]
  %v2013 = vld [vmem:[%s5 + $0x248] sm:$0xff]
  %v2014 = vld [vmem:[%s5 + $0x250] sm:$0xff]
  %v2015 = vld [vmem:[%s5 + $0x258] sm:$0xff]
  %v2016 = vld [vmem:[%s5 + $0x260] sm:$0xff]
  %v2017 = vld [vmem:[%s5 + $0x268] sm:$0xff]
  %v2018 = vld [vmem:[%s5 + $0x270] sm:$0xff]
  %v2019 = vld [vmem:[%s5 + $0x278] sm:$0xff]
  %v2020 = vld [vmem:[%s5 + $0x280] sm:$0xff]
  %v2021 = vld [vmem:[%s5 + $0x288] sm:$0xff]
  %v2022 = vld [vmem:[%s5 + $0x290] sm:$0xff]
  %v2023 = vld [vmem:[%s5 + $0x298] sm:$0xff]
  %v2024 = vld [vmem:[%s5 + $0x2a0] sm:$0xff]
  %v2025 = vld [vmem:[%s5 + $0x2a8] sm:$0xff]
  %v2026 = vld [vmem:[%s5 + $0x2b0] sm:$0xff]
  %v2027 = vld [vmem:[%s5 + $0x2b8] sm:$0xff]
  %v2028 = vld [vmem:[%s5 + $0x2c0] sm:$0xff]
  %v2029 = vld [vmem:[%s5 + $0x2c8] sm:$0xff]
  %v2030 = vld [vmem:[%s5 + $0x2d0] sm:$0xff]
  %v2031 = vld [vmem:[%s5 + $0x2d8] sm:$0xff]
  %v2032 = vld [vmem:[%s5 + $0x2e0] sm:$0xff]
  %v2033 = vld [vmem:[%s5 + $0x2e8] sm:$0xff]
  %v2034 = vld [vmem:[%s5 + $0x2f0] sm:$0xff]
  %v2035 = vld [vmem:[%s5 + $0x2f8] sm:$0xff]
  %v2036 = vld [vmem:[%s5 + $0x300] sm:$0xff]
  %v2037 = vld [vmem:[%s5 + $0x308] sm:$0xff]
  %v2038 = vld [vmem:[%s5 + $0x310] sm:$0xff]
  %v2039 = vld [vmem:[%s5 + $0x318] sm:$0xff]
  %v2040 = vld [vmem:[%s5 + $0x320] sm:$0xff]
  %v2041 = vld [vmem:[%s5 + $0x328] sm:$0xff]
  %v2042 = vld [vmem:[%s5 + $0x330] sm:$0xff]
  %v2043 = vld [vmem:[%s5 + $0x338] sm:$0xff]
  %v2044 = vld [vmem:[%s5 + $0x340] sm:$0xff]
  %v2045 = vld [vmem:[%s5 + $0x348] sm:$0xff]
  %v2046 = vld [vmem:[%s5 + $0x350] sm:$0xff]
  %v2047 = vld [vmem:[%s5 + $0x358] sm:$0xff]
  %v2048 = vld [vmem:[%s5 + $0x360] sm:$0xff]
  %v2049 = vld [vmem:[%s5 + $0x368] sm:$0xff]
  %v2050 = vld [vmem:[%s5 + $0x370] sm:$0xff]
  %v2051 = vld [vmem:[%s5 + $0x378] sm:$0xff]
  %v2052 = vld [vmem:[%s5 + $0x380] sm:$0xff]
  %v2053 = vld [vmem:[%s5 + $0x388] sm:$0xff]
  %v2054 = vld [vmem:[%s5 + $0x390] sm:$0xff]
  %v2055 = vld [vmem:[%s5 + $0x398] sm:$0xff]
  %v2056 = vld [vmem:[%s5 + $0x3a0] sm:$0xff]
  %v2057 = vld [vmem:[%s5 + $0x3a8] sm:$0xff]
  %v2058 = vld [vmem:[%s5 + $0x3b0] sm:$0xff]
  %v2059 = vld [vmem:[%s5 + $0x3b8] sm:$0xff]
  %v2060 = vld [vmem:[%s5 + $0x3c0] sm:$0xff]
  %v2061 = vld [vmem:[%s5 + $0x3c8] sm:$0xff]
  %v2062 = vld [vmem:[%s5 + $0x3d0] sm:$0xff]
  %v2063 = vld [vmem:[%s5 + $0x3d8] sm:$0xff]
  %v2064 = vld [vmem:[%s5 + $0x3e0] sm:$0xff]
  %v2065 = vld [vmem:[%s5 + $0x3e8] sm:$0xff]
  %v2066 = vld [vmem:[%s5 + $0x3f0] sm:$0xff]
  %v2067 = vld [vmem:[%s5 + $0x3f8] sm:$0xff]
  %v2196 = vunpack.c.l.b16 %v1940
  %v2197 = vunpack.c.h.b16 %v1940
  %v2198 = vunpack.c.l.b16 %v1941
  %v2199 = vunpack.c.h.b16 %v1941
  %v2200 = vunpack.c.l.b16 %v1942
  %v2201 = vunpack.c.h.b16 %v1942
  %v2202 = vunpack.c.l.b16 %v1943
  %v2203 = vunpack.c.h.b16 %v1943
  %v2204 = vunpack.c.l.b16 %v1944
  %v2205 = vunpack.c.h.b16 %v1944
  %v2206 = vunpack.c.l.b16 %v1945
  %v2207 = vunpack.c.h.b16 %v1945
  %v2208 = vunpack.c.l.b16 %v1946
  %v2209 = vunpack.c.h.b16 %v1946
  %v2210 = vunpack.c.l.b16 %v1947
  %v2211 = vunpack.c.h.b16 %v1947
  %v2212 = vunpack.c.l.b16 %v1948
  %v2213 = vunpack.c.h.b16 %v1948
  %v2214 = vunpack.c.l.b16 %v1949
  %v2215 = vunpack.c.h.b16 %v1949
  %v2216 = vunpack.c.l.b16 %v1950
  %v2217 = vunpack.c.h.b16 %v1950
  %v2218 = vunpack.c.l.b16 %v1951
  %v2219 = vunpack.c.h.b16 %v1951
  %v2220 = vunpack.c.l.b16 %v1952
  %v2221 = vunpack.c.h.b16 %v1952
  %v2222 = vunpack.c.l.b16 %v1953
  %v2223 = vunpack.c.h.b16 %v1953
  %v2224 = vunpack.c.l.b16 %v1954
  %v2225 = vunpack.c.h.b16 %v1954
  %v2226 = vunpack.c.l.b16 %v1955
  %v2227 = vunpack.c.h.b16 %v1955
  %v2228 = vunpack.c.l.b16 %v1956
  %v2229 = vunpack.c.h.b16 %v1956
  %v2230 = vunpack.c.l.b16 %v1957
  %v2231 = vunpack.c.h.b16 %v1957
  %v2232 = vunpack.c.l.b16 %v1958
  %v2233 = vunpack.c.h.b16 %v1958
  %v2234 = vunpack.c.l.b16 %v1959
  %v2235 = vunpack.c.h.b16 %v1959
  %v2236 = vunpack.c.l.b16 %v1960
  %v2237 = vunpack.c.h.b16 %v1960
  %v2238 = vunpack.c.l.b16 %v1961
  %v2239 = vunpack.c.h.b16 %v1961
  %v2240 = vunpack.c.l.b16 %v1962
  %v2241 = vunpack.c.h.b16 %v1962
  %v2242 = vunpack.c.l.b16 %v1963
  %v2243 = vunpack.c.h.b16 %v1963
  %v2244 = vunpack.c.l.b16 %v1964
  %v2245 = vunpack.c.h.b16 %v1964
  %v2246 = vunpack.c.l.b16 %v1965
  %v2247 = vunpack.c.h.b16 %v1965
  %v2248 = vunpack.c.l.b16 %v1966
  %v2249 = vunpack.c.h.b16 %v1966
  %v2250 = vunpack.c.l.b16 %v1967
  %v2251 = vunpack.c.h.b16 %v1967
  %v2252 = vunpack.c.l.b16 %v1968
  %v2253 = vunpack.c.h.b16 %v1968
  %v2254 = vunpack.c.l.b16 %v1969
  %v2255 = vunpack.c.h.b16 %v1969
  %v2256 = vunpack.c.l.b16 %v1970
  %v2257 = vunpack.c.h.b16 %v1970
  %v2258 = vunpack.c.l.b16 %v1971
  %v2259 = vunpack.c.h.b16 %v1971
  %v2260 = vunpack.c.l.b16 %v1972
  %v2261 = vunpack.c.h.b16 %v1972
  %v2262 = vunpack.c.l.b16 %v1973
  %v2263 = vunpack.c.h.b16 %v1973
  %v2264 = vunpack.c.l.b16 %v1974
  %v2265 = vunpack.c.h.b16 %v1974
  %v2266 = vunpack.c.l.b16 %v1975
  %v2267 = vunpack.c.h.b16 %v1975
  %v2268 = vunpack.c.l.b16 %v1976
  %v2269 = vunpack.c.h.b16 %v1976
  %v2270 = vunpack.c.l.b16 %v1977
  %v2271 = vunpack.c.h.b16 %v1977
  %v2272 = vunpack.c.l.b16 %v1978
  %v2273 = vunpack.c.h.b16 %v1978
  %v2274 = vunpack.c.l.b16 %v1979
  %v2275 = vunpack.c.h.b16 %v1979
  %v2276 = vunpack.c.l.b16 %v1980
  %v2277 = vunpack.c.h.b16 %v1980
  %v2278 = vunpack.c.l.b16 %v1981
  %v2279 = vunpack.c.h.b16 %v1981
  %v2280 = vunpack.c.l.b16 %v1982
  %v2281 = vunpack.c.h.b16 %v1982
  %v2282 = vunpack.c.l.b16 %v1983
  %v2283 = vunpack.c.h.b16 %v1983
  %v2284 = vunpack.c.l.b16 %v1984
  %v2285 = vunpack.c.h.b16 %v1984
  %v2286 = vunpack.c.l.b16 %v1985
  %v2287 = vunpack.c.h.b16 %v1985
  %v2288 = vunpack.c.l.b16 %v1986
  %v2289 = vunpack.c.h.b16 %v1986
  %v2290 = vunpack.c.l.b16 %v1987
  %v2291 = vunpack.c.h.b16 %v1987
  %v2292 = vunpack.c.l.b16 %v1988
  %v2293 = vunpack.c.h.b16 %v1988
  %v2294 = vunpack.c.l.b16 %v1989
  %v2295 = vunpack.c.h.b16 %v1989
  %v2296 = vunpack.c.l.b16 %v1990
  %v2297 = vunpack.c.h.b16 %v1990
  %v2298 = vunpack.c.l.b16 %v1991
  %v2299 = vunpack.c.h.b16 %v1991
  %v2300 = vunpack.c.l.b16 %v1992
  %v2301 = vunpack.c.h.b16 %v1992
  %v2302 = vunpack.c.l.b16 %v1993
  %v2303 = vunpack.c.h.b16 %v1993
  %v2304 = vunpack.c.l.b16 %v1994
  %v2305 = vunpack.c.h.b16 %v1994
  %v2306 = vunpack.c.l.b16 %v1995
  %v2307 = vunpack.c.h.b16 %v1995
  %v2308 = vunpack.c.l.b16 %v1996
  %v2309 = vunpack.c.h.b16 %v1996
  %v2310 = vunpack.c.l.b16 %v1997
  %v2311 = vunpack.c.h.b16 %v1997
  %v2312 = vunpack.c.l.b16 %v1998
  %v2313 = vunpack.c.h.b16 %v1998
  %v2314 = vunpack.c.l.b16 %v1999
  %v2315 = vunpack.c.h.b16 %v1999
  %v2316 = vunpack.c.l.b16 %v2000
  %v2317 = vunpack.c.h.b16 %v2000
  %v2318 = vunpack.c.l.b16 %v2001
  %v2319 = vunpack.c.h.b16 %v2001
  %v2320 = vunpack.c.l.b16 %v2002
  %v2321 = vunpack.c.h.b16 %v2002
  %v2322 = vunpack.c.l.b16 %v2003
  %v2323 = vunpack.c.h.b16 %v2003
  %v2324 = vunpack.c.l.b16 %v2004
  %v2325 = vunpack.c.h.b16 %v2004
  %v2326 = vunpack.c.l.b16 %v2005
  %v2327 = vunpack.c.h.b16 %v2005
  %v2328 = vunpack.c.l.b16 %v2006
  %v2329 = vunpack.c.h.b16 %v2006
  %v2330 = vunpack.c.l.b16 %v2007
  %v2331 = vunpack.c.h.b16 %v2007
  %v2332 = vunpack.c.l.b16 %v2008
  %v2333 = vunpack.c.h.b16 %v2008
  %v2334 = vunpack.c.l.b16 %v2009
  %v2335 = vunpack.c.h.b16 %v2009
  %v2336 = vunpack.c.l.b16 %v2010
  %v2337 = vunpack.c.h.b16 %v2010
  %v2338 = vunpack.c.l.b16 %v2011
  %v2339 = vunpack.c.h.b16 %v2011
  %v2340 = vunpack.c.l.b16 %v2012
  %v2341 = vunpack.c.h.b16 %v2012
  %v2342 = vunpack.c.l.b16 %v2013
  %v2343 = vunpack.c.h.b16 %v2013
  %v2344 = vunpack.c.l.b16 %v2014
  %v2345 = vunpack.c.h.b16 %v2014
  %v2346 = vunpack.c.l.b16 %v2015
  %v2347 = vunpack.c.h.b16 %v2015
  %v2348 = vunpack.c.l.b16 %v2016
  %v2349 = vunpack.c.h.b16 %v2016
  %v2350 = vunpack.c.l.b16 %v2017
  %v2351 = vunpack.c.h.b16 %v2017
  %v2352 = vunpack.c.l.b16 %v2018
  %v2353 = vunpack.c.h.b16 %v2018
  %v2354 = vunpack.c.l.b16 %v2019
  %v2355 = vunpack.c.h.b16 %v2019
  %v2356 = vunpack.c.l.b16 %v2020
  %v2357 = vunpack.c.h.b16 %v2020
  %v2358 = vunpack.c.l.b16 %v2021
  %v2359 = vunpack.c.h.b16 %v2021
  %v2360 = vunpack.c.l.b16 %v2022
  %v2361 = vunpack.c.h.b16 %v2022
  %v2362 = vunpack.c.l.b16 %v2023
  %v2363 = vunpack.c.h.b16 %v2023
  %v2364 = vunpack.c.l.b16 %v2024
  %v2365 = vunpack.c.h.b16 %v2024
  %v2366 = vunpack.c.l.b16 %v2025
  %v2367 = vunpack.c.h.b16 %v2025
  %v2368 = vunpack.c.l.b16 %v2026
  %v2369 = vunpack.c.h.b16 %v2026
  %v2370 = vunpack.c.l.b16 %v2027
  %v2371 = vunpack.c.h.b16 %v2027
  %v2372 = vunpack.c.l.b16 %v2028
  %v2373 = vunpack.c.h.b16 %v2028
  %v2374 = vunpack.c.l.b16 %v2029
  %v2375 = vunpack.c.h.b16 %v2029
  %v2376 = vunpack.c.l.b16 %v2030
  %v2377 = vunpack.c.h.b16 %v2030
  %v2378 = vunpack.c.l.b16 %v2031
  %v2379 = vunpack.c.h.b16 %v2031
  %v2380 = vunpack.c.l.b16 %v2032
  %v2381 = vunpack.c.h.b16 %v2032
  %v2382 = vunpack.c.l.b16 %v2033
  %v2383 = vunpack.c.h.b16 %v2033
  %v2384 = vunpack.c.l.b16 %v2034
  %v2385 = vunpack.c.h.b16 %v2034
  %v2386 = vunpack.c.l.b16 %v2035
  %v2387 = vunpack.c.h.b16 %v2035
  %v2388 = vunpack.c.l.b16 %v2036
  %v2389 = vunpack.c.h.b16 %v2036
  %v2390 = vunpack.c.l.b16 %v2037
  %v2391 = vunpack.c.h.b16 %v2037
  %v2392 = vunpack.c.l.b16 %v2038
  %v2393 = vunpack.c.h.b16 %v2038
  %v2394 = vunpack.c.l.b16 %v2039
  %v2395 = vunpack.c.h.b16 %v2039
  %v2396 = vunpack.c.l.b16 %v2040
  %v2397 = vunpack.c.h.b16 %v2040
  %v2398 = vunpack.c.l.b16 %v2041
  %v2399 = vunpack.c.h.b16 %v2041
  %v2400 = vunpack.c.l.b16 %v2042
  %v2401 = vunpack.c.h.b16 %v2042
  %v2402 = vunpack.c.l.b16 %v2043
  %v2403 = vunpack.c.h.b16 %v2043
  %v2404 = vunpack.c.l.b16 %v2044
  %v2405 = vunpack.c.h.b16 %v2044
  %v2406 = vunpack.c.l.b16 %v2045
  %v2407 = vunpack.c.h.b16 %v2045
  %v2408 = vunpack.c.l.b16 %v2046
  %v2409 = vunpack.c.h.b16 %v2046
  %v2410 = vunpack.c.l.b16 %v2047
  %v2411 = vunpack.c.h.b16 %v2047
  %v2412 = vunpack.c.l.b16 %v2048
  %v2413 = vunpack.c.h.b16 %v2048
  %v2414 = vunpack.c.l.b16 %v2049
  %v2415 = vunpack.c.h.b16 %v2049
  %v2416 = vunpack.c.l.b16 %v2050
  %v2417 = vunpack.c.h.b16 %v2050
  %v2418 = vunpack.c.l.b16 %v2051
  %v2419 = vunpack.c.h.b16 %v2051
  %v2420 = vunpack.c.l.b16 %v2052
  %v2421 = vunpack.c.h.b16 %v2052
  %v2422 = vunpack.c.l.b16 %v2053
  %v2423 = vunpack.c.h.b16 %v2053
  %v2424 = vunpack.c.l.b16 %v2054
  %v2425 = vunpack.c.h.b16 %v2054
  %v2426 = vunpack.c.l.b16 %v2055
  %v2427 = vunpack.c.h.b16 %v2055
  %v2428 = vunpack.c.l.b16 %v2056
  %v2429 = vunpack.c.h.b16 %v2056
  %v2430 = vunpack.c.l.b16 %v2057
  %v2431 = vunpack.c.h.b16 %v2057
  %v2432 = vunpack.c.l.b16 %v2058
  %v2433 = vunpack.c.h.b16 %v2058
  %v2434 = vunpack.c.l.b16 %v2059
  %v2435 = vunpack.c.h.b16 %v2059
  %v2436 = vunpack.c.l.b16 %v2060
  %v2437 = vunpack.c.h.b16 %v2060
  %v2438 = vunpack.c.l.b16 %v2061
  %v2439 = vunpack.c.h.b16 %v2061
  %v2440 = vunpack.c.l.b16 %v2062
  %v2441 = vunpack.c.h.b16 %v2062
  %v2442 = vunpack.c.l.b16 %v2063
  %v2443 = vunpack.c.h.b16 %v2063
  %v2444 = vunpack.c.l.b16 %v2064
  %v2445 = vunpack.c.h.b16 %v2064
  %v2446 = vunpack.c.l.b16 %v2065
  %v2447 = vunpack.c.h.b16 %v2065
  %v2448 = vunpack.c.l.b16 %v2066
  %v2449 = vunpack.c.h.b16 %v2066
  %v2450 = vunpack.c.l.b16 %v2067
  %v2451 = vunpack.c.h.b16 %v2067
  %v2452 = vpack.c.b16 %v2200, %v2196
  %v2453 = vpack.c.b16 %v2201, %v2197
  %v2454 = vpack.c.b16 %v2202, %v2198
  %v2455 = vpack.c.b16 %v2203, %v2199
  %v2456 = vpack.c.b16 %v2208, %v2204
  %v2457 = vpack.c.b16 %v2209, %v2205
  %v2458 = vpack.c.b16 %v2210, %v2206
  %v2459 = vpack.c.b16 %v2211, %v2207
  %v2460 = vpack.c.b16 %v2216, %v2212
  %v2461 = vpack.c.b16 %v2217, %v2213
  %v2462 = vpack.c.b16 %v2218, %v2214
  %v2463 = vpack.c.b16 %v2219, %v2215
  %v2464 = vpack.c.b16 %v2224, %v2220
  %v2465 = vpack.c.b16 %v2225, %v2221
  %v2466 = vpack.c.b16 %v2226, %v2222
  %v2467 = vpack.c.b16 %v2227, %v2223
  %v2468 = vpack.c.b16 %v2232, %v2228
  %v2469 = vpack.c.b16 %v2233, %v2229
  %v2470 = vpack.c.b16 %v2234, %v2230
  %v2471 = vpack.c.b16 %v2235, %v2231
  %v2472 = vpack.c.b16 %v2240, %v2236
  %v2473 = vpack.c.b16 %v2241, %v2237
  %v2474 = vpack.c.b16 %v2242, %v2238
  %v2475 = vpack.c.b16 %v2243, %v2239
  %v2476 = vpack.c.b16 %v2248, %v2244
  %v2477 = vpack.c.b16 %v2249, %v2245
  %v2478 = vpack.c.b16 %v2250, %v2246
  %v2479 = vpack.c.b16 %v2251, %v2247
  %v2480 = vpack.c.b16 %v2256, %v2252
  %v2481 = vpack.c.b16 %v2257, %v2253
  %v2482 = vpack.c.b16 %v2258, %v2254
  %v2483 = vpack.c.b16 %v2259, %v2255
  %v2484 = vpack.c.b16 %v2264, %v2260
  %v2485 = vpack.c.b16 %v2265, %v2261
  %v2486 = vpack.c.b16 %v2266, %v2262
  %v2487 = vpack.c.b16 %v2267, %v2263
  %v2488 = vpack.c.b16 %v2272, %v2268
  %v2489 = vpack.c.b16 %v2273, %v2269
  %v2490 = vpack.c.b16 %v2274, %v2270
  %v2491 = vpack.c.b16 %v2275, %v2271
  %v2492 = vpack.c.b16 %v2280, %v2276
  %v2493 = vpack.c.b16 %v2281, %v2277
  %v2494 = vpack.c.b16 %v2282, %v2278
  %v2495 = vpack.c.b16 %v2283, %v2279
  %v2496 = vpack.c.b16 %v2288, %v2284
  %v2497 = vpack.c.b16 %v2289, %v2285
  %v2498 = vpack.c.b16 %v2290, %v2286
  %v2499 = vpack.c.b16 %v2291, %v2287
  %v2500 = vpack.c.b16 %v2296, %v2292
  %v2501 = vpack.c.b16 %v2297, %v2293
  %v2502 = vpack.c.b16 %v2298, %v2294
  %v2503 = vpack.c.b16 %v2299, %v2295
  %v2504 = vpack.c.b16 %v2304, %v2300
  %v2505 = vpack.c.b16 %v2305, %v2301
  %v2506 = vpack.c.b16 %v2306, %v2302
  %v2507 = vpack.c.b16 %v2307, %v2303
  %v2508 = vpack.c.b16 %v2312, %v2308
  %v2509 = vpack.c.b16 %v2313, %v2309
  %v2510 = vpack.c.b16 %v2314, %v2310
  %v2511 = vpack.c.b16 %v2315, %v2311
  %v2512 = vpack.c.b16 %v2320, %v2316
  %v2513 = vpack.c.b16 %v2321, %v2317
  %v2514 = vpack.c.b16 %v2322, %v2318
  %v2515 = vpack.c.b16 %v2323, %v2319
  %v2516 = vpack.c.b16 %v2328, %v2324
  %v2517 = vpack.c.b16 %v2329, %v2325
  %v2518 = vpack.c.b16 %v2330, %v2326
  %v2519 = vpack.c.b16 %v2331, %v2327
  %v2520 = vpack.c.b16 %v2336, %v2332
  %v2521 = vpack.c.b16 %v2337, %v2333
  %v2522 = vpack.c.b16 %v2338, %v2334
  %v2523 = vpack.c.b16 %v2339, %v2335
  %v2524 = vpack.c.b16 %v2344, %v2340
  %v2525 = vpack.c.b16 %v2345, %v2341
  %v2526 = vpack.c.b16 %v2346, %v2342
  %v2527 = vpack.c.b16 %v2347, %v2343
  %v2528 = vpack.c.b16 %v2352, %v2348
  %v2529 = vpack.c.b16 %v2353, %v2349
  %v2530 = vpack.c.b16 %v2354, %v2350
  %v2531 = vpack.c.b16 %v2355, %v2351
  %v2532 = vpack.c.b16 %v2360, %v2356
  %v2533 = vpack.c.b16 %v2361, %v2357
  %v2534 = vpack.c.b16 %v2362, %v2358
  %v2535 = vpack.c.b16 %v2363, %v2359
  %v2536 = vpack.c.b16 %v2368, %v2364
  %v2537 = vpack.c.b16 %v2369, %v2365
  %v2538 = vpack.c.b16 %v2370, %v2366
  %v2539 = vpack.c.b16 %v2371, %v2367
  %v2540 = vpack.c.b16 %v2376, %v2372
  %v2541 = vpack.c.b16 %v2377, %v2373
  %v2542 = vpack.c.b16 %v2378, %v2374
  %v2543 = vpack.c.b16 %v2379, %v2375
  %v2544 = vpack.c.b16 %v2384, %v2380
  %v2545 = vpack.c.b16 %v2385, %v2381
  %v2546 = vpack.c.b16 %v2386, %v2382
  %v2547 = vpack.c.b16 %v2387, %v2383
  %v2548 = vpack.c.b16 %v2392, %v2388
  %v2549 = vpack.c.b16 %v2393, %v2389
  %v2550 = vpack.c.b16 %v2394, %v2390
  %v2551 = vpack.c.b16 %v2395, %v2391
  %v2552 = vpack.c.b16 %v2400, %v2396
  %v2553 = vpack.c.b16 %v2401, %v2397
  %v2554 = vpack.c.b16 %v2402, %v2398
  %v2555 = vpack.c.b16 %v2403, %v2399
  %v2556 = vpack.c.b16 %v2408, %v2404
  %v2557 = vpack.c.b16 %v2409, %v2405
  %v2558 = vpack.c.b16 %v2410, %v2406
  %v2559 = vpack.c.b16 %v2411, %v2407
  %v2560 = vpack.c.b16 %v2416, %v2412
  %v2561 = vpack.c.b16 %v2417, %v2413
  %v2562 = vpack.c.b16 %v2418, %v2414
  %v2563 = vpack.c.b16 %v2419, %v2415
  %v2564 = vpack.c.b16 %v2424, %v2420
  %v2565 = vpack.c.b16 %v2425, %v2421
  %v2566 = vpack.c.b16 %v2426, %v2422
  %v2567 = vpack.c.b16 %v2427, %v2423
  %v2568 = vpack.c.b16 %v2432, %v2428
  %v2569 = vpack.c.b16 %v2433, %v2429
  %v2570 = vpack.c.b16 %v2434, %v2430
  %v2571 = vpack.c.b16 %v2435, %v2431
  %v2572 = vpack.c.b16 %v2440, %v2436
  %v2573 = vpack.c.b16 %v2441, %v2437
  %v2574 = vpack.c.b16 %v2442, %v2438
  %v2575 = vpack.c.b16 %v2443, %v2439
  %v2576 = vpack.c.b16 %v2448, %v2444
  %v2577 = vpack.c.b16 %v2449, %v2445
  %v2578 = vpack.c.b16 %v2450, %v2446
  %v2579 = vpack.c.b16 %v2451, %v2447
  %2708 = vmatprep.subr.bf16.mxu0 %v2453
  %2709 = vmatpush1.bf16.msra.mxu0 %v2452
  %2710 = vmatprep.subr.bf16.mxu0 %v2457
  %2711 = vmatpush1.bf16.msra.mxu0 %v2456
  %2712 = vmatprep.subr.bf16.mxu0 %v2461
  %2713 = vmatpush1.bf16.msra.mxu0 %v2460
  %2714 = vmatprep.subr.bf16.mxu0 %v2465
  %2715 = vmatpush1.bf16.msra.mxu0 %v2464
  %2716 = vmatprep.subr.bf16.mxu0 %v2469
  %2717 = vmatpush1.bf16.msra.mxu0 %v2468
  %2718 = vmatprep.subr.bf16.mxu0 %v2473
  %2719 = vmatpush1.bf16.msra.mxu0 %v2472
  %2720 = vmatprep.subr.bf16.mxu0 %v2477
  %2721 = vmatpush1.bf16.msra.mxu0 %v2476
  %2722 = vmatprep.subr.bf16.mxu0 %v2481
  %2723 = vmatpush1.bf16.msra.mxu0 %v2480
  %2724 = vmatprep.subr.bf16.mxu0 %v2485
  %2725 = vmatpush1.bf16.msra.mxu0 %v2484
  %2726 = vmatprep.subr.bf16.mxu0 %v2489
  %2727 = vmatpush1.bf16.msra.mxu0 %v2488
  %2728 = vmatprep.subr.bf16.mxu0 %v2493
  %2729 = vmatpush1.bf16.msra.mxu0 %v2492
  %2730 = vmatprep.subr.bf16.mxu0 %v2497
  %2731 = vmatpush1.bf16.msra.mxu0 %v2496
  %2732 = vmatprep.subr.bf16.mxu0 %v2501
  %2733 = vmatpush1.bf16.msra.mxu0 %v2500
  %2734 = vmatprep.subr.bf16.mxu0 %v2505
  %2735 = vmatpush1.bf16.msra.mxu0 %v2504
  %2736 = vmatprep.subr.bf16.mxu0 %v2509
  %2737 = vmatpush1.bf16.msra.mxu0 %v2508
  %2738 = vmatprep.subr.bf16.mxu0 %v2513
  %2739 = vmatpush1.bf16.msra.mxu0 %v2512
  %2740 = vmatprep.mubr.bf16.mxu0 %v1909
  %2741 = vmatmul.mubr.bf16.gmra.mrb[0].mxu0 %v1908
  %v2742 = vpop.f32.mrb[0].mxu0
  %v2743 = vadd.f32 0.0, %v2742
  %v2744 = vpop.f32.mrb[0].mxu0
  %v2745 = vadd.f32 0.0, %v2744
  %v2746 = vpop.f32.mrb[0].mxu0
  %v2747 = vadd.f32 0.0, %v2746
  %v2748 = vpop.f32.mrb[0].mxu0
  %v2749 = vadd.f32 0.0, %v2748
  %2750 = vmatprep.mubr.bf16.mxu0 %v1913
  %2751 = vmatmul.mubr.bf16.gmra.mrb[0].mxu0 %v1912
  %v2752 = vpop.f32.mrb[0].mxu0
  %v2753 = vadd.f32 0.0, %v2752
  %v2754 = vpop.f32.mrb[0].mxu0
  %v2755 = vadd.f32 0.0, %v2754
  %v2756 = vpop.f32.mrb[0].mxu0
  %v2757 = vadd.f32 0.0, %v2756
  %v2758 = vpop.f32.mrb[0].mxu0
  %v2759 = vadd.f32 0.0, %v2758
  %2760 = vmatprep.mubr.bf16.mxu0 %v1917
  %2761 = vmatmul.mubr.bf16.gmra.mrb[0].mxu0 %v1916
  %v2762 = vpop.f32.mrb[0].mxu0
  %v2763 = vadd.f32 0.0, %v2762
  %v2764 = vpop.f32.mrb[0].mxu0
  %v2765 = vadd.f32 0.0, %v2764
  %v2766 = vpop.f32.mrb[0].mxu0
  %v2767 = vadd.f32 0.0, %v2766
  %v2768 = vpop.f32.mrb[0].mxu0
  %v2769 = vadd.f32 0.0, %v2768
  %2770 = vmatprep.mubr.bf16.mxu0 %v1921
  %2771 = vmatmul.mubr.bf16.gmra.mrb[0].mxu0 %v1920
  %v2772 = vpop.f32.mrb[0].mxu0
  %v2773 = vadd.f32 0.0, %v2772
  %v2774 = vpop.f32.mrb[0].mxu0
  %v2775 = vadd.f32 0.0, %v2774
  %v2776 = vpop.f32.mrb[0].mxu0
  %v2777 = vadd.f32 0.0, %v2776
  %v2778 = vpop.f32.mrb[0].mxu0
  %v2779 = vadd.f32 0.0, %v2778
  %2780 = vmatprep.mubr.bf16.mxu0 %v1925
  %2781 = vmatmul.mubr.bf16.gmra.mrb[0].mxu0 %v1924
  %v2782 = vpop.f32.mrb[0].mxu0
  %v2783 = vadd.f32 0.0, %v2782
  %v2784 = vpop.f32.mrb[0].mxu0
  %v2785 = vadd.f32 0.0, %v2784
  %v2786 = vpop.f32.mrb[0].mxu0
  %v2787 = vadd.f32 0.0, %v2786
  %v2788 = vpop.f32.mrb[0].mxu0
  %v2789 = vadd.f32 0.0, %v2788
  %2790 = vmatprep.mubr.bf16.mxu0 %v1929
  %2791 = vmatmul.mubr.bf16.gmra.mrb[0].mxu0 %v1928
  %v2792 = vpop.f32.mrb[0].mxu0
  %v2793 = vadd.f32 0.0, %v2792
  %v2794 = vpop.f32.mrb[0].mxu0
  %v2795 = vadd.f32 0.0, %v2794
  %v2796 = vpop.f32.mrb[0].mxu0
  %v2797 = vadd.f32 0.0, %v2796
  %v2798 = vpop.f32.mrb[0].mxu0
  %v2799 = vadd.f32 0.0, %v2798
  %2800 = vmatprep.mubr.bf16.mxu0 %v1933
  %2801 = vmatmul.mubr.bf16.gmra.mrb[0].mxu0 %v1932
  %v2802 = vpop.f32.mrb[0].mxu0
  %v2803 = vadd.f32 0.0, %v2802
  %v2804 = vpop.f32.mrb[0].mxu0
  %v2805 = vadd.f32 0.0, %v2804
  %v2806 = vpop.f32.mrb[0].mxu0
  %v2807 = vadd.f32 0.0, %v2806
  %v2808 = vpop.f32.mrb[0].mxu0
  %v2809 = vadd.f32 0.0, %v2808
  %2810 = vmatprep.mubr.bf16.mxu0 %v1937
  %2811 = vmatmul.mubr.bf16.gmra.mrb[0].mxu0 %v1936
  %v2812 = vpop.f32.mrb[0].mxu0
  %v2813 = vadd.f32 0.0, %v2812
  %v2814 = vpop.f32.mrb[0].mxu0
  %v2815 = vadd.f32 0.0, %v2814
  %v2816 = vpop.f32.mrb[0].mxu0
  %v2817 = vadd.f32 0.0, %v2816
  %v2818 = vpop.f32.mrb[0].mxu0
  %v2819 = vadd.f32 0.0, %v2818
  %2820 = vdwg.mxu0
  %2821 = vmatprep.subr.bf16.mxu0 %v2517
  %2822 = vmatpush1.bf16.msra.mxu0 %v2516
  %2823 = vmatprep.subr.bf16.mxu0 %v2521
  %2824 = vmatpush1.bf16.msra.mxu0 %v2520
  %2825 = vmatprep.subr.bf16.mxu0 %v2525
  %2826 = vmatpush1.bf16.msra.mxu0 %v2524
  %2827 = vmatprep.subr.bf16.mxu0 %v2529
  %2828 = vmatpush1.bf16.msra.mxu0 %v2528
  %2829 = vmatprep.subr.bf16.mxu0 %v2533
  %2830 = vmatpush1.bf16.msra.mxu0 %v2532
  %2831 = vmatprep.subr.bf16.mxu0 %v2537
  %2832 = vmatpush1.bf16.msra.mxu0 %v2536
  %2833 = vmatprep.subr.bf16.mxu0 %v2541
  %2834 = vmatpush1.bf16.msra.mxu0 %v2540
  %2835 = vmatprep.subr.bf16.mxu0 %v2545
  %2836 = vmatpush1.bf16.msra.mxu0 %v2544
  %2837 = vmatprep.subr.bf16.mxu0 %v2549
  %2838 = vmatpush1.bf16.msra.mxu0 %v2548
  %2839 = vmatprep.subr.bf16.mxu0 %v2553
  %2840 = vmatpush1.bf16.msra.mxu0 %v2552
  %2841 = vmatprep.subr.bf16.mxu0 %v2557
  %2842 = vmatpush1.bf16.msra.mxu0 %v2556
  %2843 = vmatprep.subr.bf16.mxu0 %v2561
  %2844 = vmatpush1.bf16.msra.mxu0 %v2560
  %2845 = vmatprep.subr.bf16.mxu0 %v2565
  %2846 = vmatpush1.bf16.msra.mxu0 %v2564
  %2847 = vmatprep.subr.bf16.mxu0 %v2569
  %2848 = vmatpush1.bf16.msra.mxu0 %v2568
  %2849 = vmatprep.subr.bf16.mxu0 %v2573
  %2850 = vmatpush1.bf16.msra.mxu0 %v2572
  %2851 = vmatprep.subr.bf16.mxu0 %v2577
  %2852 = vmatpush1.bf16.msra.mxu0 %v2576
  %2853 = vmatprep.mubr.bf16.mxu0 %v1911
  %2854 = vmatmul.mubr.bf16.gmra.mrb[0].mxu0 %v1910
  %v2855 = vpop.f32.mrb[0].mxu0
  %v2856 = vadd.f32 %v2743, %v2855
  %v2857 = vpop.f32.mrb[0].mxu0
  %v2858 = vadd.f32 %v2745, %v2857
  %v2859 = vpop.f32.mrb[0].mxu0
  %v2860 = vadd.f32 %v2747, %v2859
  %v2861 = vpop.f32.mrb[0].mxu0
  %v2862 = vadd.f32 %v2749, %v2861
  %2863 = vmatprep.mubr.bf16.mxu0 %v1915
  %2864 = vmatmul.mubr.bf16.gmra.mrb[0].mxu0 %v1914
  %v2865 = vpop.f32.mrb[0].mxu0
  %v2866 = vadd.f32 %v2753, %v2865
  %v2867 = vpop.f32.mrb[0].mxu0
  %v2868 = vadd.f32 %v2755, %v2867
  %v2869 = vpop.f32.mrb[0].mxu0
  %v2870 = vadd.f32 %v2757, %v2869
  %v2871 = vpop.f32.mrb[0].mxu0
  %v2872 = vadd.f32 %v2759, %v2871
  %2873 = vmatprep.mubr.bf16.mxu0 %v1919
  %2874 = vmatmul.mubr.bf16.gmra.mrb[0].mxu0 %v1918
  %v2875 = vpop.f32.mrb[0].mxu0
  %v2876 = vadd.f32 %v2763, %v2875
  %v2877 = vpop.f32.mrb[0].mxu0
  %v2878 = vadd.f32 %v2765, %v2877
  %v2879 = vpop.f32.mrb[0].mxu0
  %v2880 = vadd.f32 %v2767, %v2879
  %v2881 = vpop.f32.mrb[0].mxu0
  %v2882 = vadd.f32 %v2769, %v2881
  %2883 = vmatprep.mubr.bf16.mxu0 %v1923
  %2884 = vmatmul.mubr.bf16.gmra.mrb[0].mxu0 %v1922
  %v2885 = vpop.f32.mrb[0].mxu0
  %v2886 = vadd.f32 %v2773, %v2885
  %v2887 = vpop.f32.mrb[0].mxu0
  %v2888 = vadd.f32 %v2775, %v2887
  %v2889 = vpop.f32.mrb[0].mxu0
  %v2890 = vadd.f32 %v2777, %v2889
  %v2891 = vpop.f32.mrb[0].mxu0
  %v2892 = vadd.f32 %v2779, %v2891
  %2893 = vmatprep.mubr.bf16.mxu0 %v1927
  %2894 = vmatmul.mubr.bf16.gmra.mrb[0].mxu0 %v1926
  %v2895 = vpop.f32.mrb[0].mxu0
  %v2896 = vadd.f32 %v2783, %v2895
  %v2897 = vpop.f32.mrb[0].mxu0
  %v2898 = vadd.f32 %v2785, %v2897
  %v2899 = vpop.f32.mrb[0].mxu0
  %v2900 = vadd.f32 %v2787, %v2899
  %v2901 = vpop.f32.mrb[0].mxu0
  %v2902 = vadd.f32 %v2789, %v2901
  %2903 = vmatprep.mubr.bf16.mxu0 %v1931
  %2904 = vmatmul.mubr.bf16.gmra.mrb[0].mxu0 %v1930
  %v2905 = vpop.f32.mrb[0].mxu0
  %v2906 = vadd.f32 %v2793, %v2905
  %v2907 = vpop.f32.mrb[0].mxu0
  %v2908 = vadd.f32 %v2795, %v2907
  %v2909 = vpop.f32.mrb[0].mxu0
  %v2910 = vadd.f32 %v2797, %v2909
  %v2911 = vpop.f32.mrb[0].mxu0
  %v2912 = vadd.f32 %v2799, %v2911
  %2913 = vmatprep.mubr.bf16.mxu0 %v1935
  %2914 = vmatmul.mubr.bf16.gmra.mrb[0].mxu0 %v1934
  %v2915 = vpop.f32.mrb[0].mxu0
  %v2916 = vadd.f32 %v2803, %v2915
  %v2917 = vpop.f32.mrb[0].mxu0
  %v2918 = vadd.f32 %v2805, %v2917
  %v2919 = vpop.f32.mrb[0].mxu0
  %v2920 = vadd.f32 %v2807, %v2919
  %v2921 = vpop.f32.mrb[0].mxu0
  %v2922 = vadd.f32 %v2809, %v2921
  %2923 = vmatprep.mubr.bf16.mxu0 %v1939
  %2924 = vmatmul.mubr.bf16.gmra.mrb[0].mxu0 %v1938
  %v2925 = vpop.f32.mrb[0].mxu0
  %v2926 = vadd.f32 %v2813, %v2925
  %v2927 = vpop.f32.mrb[0].mxu0
  %v2928 = vadd.f32 %v2815, %v2927
  %v2929 = vpop.f32.mrb[0].mxu0
  %v2930 = vadd.f32 %v2817, %v2929
  %v2931 = vpop.f32.mrb[0].mxu0
  %v2932 = vadd.f32 %v2819, %v2931
  %2933 = vdwg.mxu0
  %2934 = vmatprep.subr.bf16.mxu0 %v2455
  %2935 = vmatpush1.bf16.msra.mxu0 %v2454
  %2936 = vmatprep.subr.bf16.mxu0 %v2459
  %2937 = vmatpush1.bf16.msra.mxu0 %v2458
  %2938 = vmatprep.subr.bf16.mxu0 %v2463
  %2939 = vmatpush1.bf16.msra.mxu0 %v2462
  %2940 = vmatprep.subr.bf16.mxu0 %v2467
  %2941 = vmatpush1.bf16.msra.mxu0 %v2466
  %2942 = vmatprep.subr.bf16.mxu0 %v2471
  %2943 = vmatpush1.bf16.msra.mxu0 %v2470
  %2944 = vmatprep.subr.bf16.mxu0 %v2475
  %2945 = vmatpush1.bf16.msra.mxu0 %v2474
  %2946 = vmatprep.subr.bf16.mxu0 %v2479
  %2947 = vmatpush1.bf16.msra.mxu0 %v2478
  %2948 = vmatprep.subr.bf16.mxu0 %v2483
  %2949 = vmatpush1.bf16.msra.mxu0 %v2482
  %2950 = vmatprep.subr.bf16.mxu0 %v2487
  %2951 = vmatpush1.bf16.msra.mxu0 %v2486
  %2952 = vmatprep.subr.bf16.mxu0 %v2491
  %2953 = vmatpush1.bf16.msra.mxu0 %v2490
  %2954 = vmatprep.subr.bf16.mxu0 %v2495
  %2955 = vmatpush1.bf16.msra.mxu0 %v2494
  %2956 = vmatprep.subr.bf16.mxu0 %v2499
  %2957 = vmatpush1.bf16.msra.mxu0 %v2498
  %2958 = vmatprep.subr.bf16.mxu0 %v2503
  %2959 = vmatpush1.bf16.msra.mxu0 %v2502
  %2960 = vmatprep.subr.bf16.mxu0 %v2507
  %2961 = vmatpush1.bf16.msra.mxu0 %v2506
  %2962 = vmatprep.subr.bf16.mxu0 %v2511
  %2963 = vmatpush1.bf16.msra.mxu0 %v2510
  %2964 = vmatprep.subr.bf16.mxu0 %v2515
  %2965 = vmatpush1.bf16.msra.mxu0 %v2514
  %2966 = vmatprep.mubr.bf16.mxu0 %v1909
  %2967 = vmatmul.mubr.bf16.gmra.mrb[0].mxu0 %v1908
  %v2968 = vpop.f32.mrb[0].mxu0
  %v2969 = vadd.f32 0.0, %v2968
  %v2970 = vpop.f32.mrb[0].mxu0
  %v2971 = vadd.f32 0.0, %v2970
  %v2972 = vpop.f32.mrb[0].mxu0
  %v2973 = vadd.f32 0.0, %v2972
  %v2974 = vpop.f32.mrb[0].mxu0
  %v2975 = vadd.f32 0.0, %v2974
  %2976 = vmatprep.mubr.bf16.mxu0 %v1913
  %2977 = vmatmul.mubr.bf16.gmra.mrb[0].mxu0 %v1912
  %v2978 = vpop.f32.mrb[0].mxu0
  %v2979 = vadd.f32 0.0, %v2978
  %v2980 = vpop.f32.mrb[0].mxu0
  %v2981 = vadd.f32 0.0, %v2980
  %v2982 = vpop.f32.mrb[0].mxu0
  %v2983 = vadd.f32 0.0, %v2982
  %v2984 = vpop.f32.mrb[0].mxu0
  %v2985 = vadd.f32 0.0, %v2984
  %2986 = vmatprep.mubr.bf16.mxu0 %v1917
  %2987 = vmatmul.mubr.bf16.gmra.mrb[0].mxu0 %v1916
  %v2988 = vpop.f32.mrb[0].mxu0
  %v2989 = vadd.f32 0.0, %v2988
  %v2990 = vpop.f32.mrb[0].mxu0
  %v2991 = vadd.f32 0.0, %v2990
  %v2992 = vpop.f32.mrb[0].mxu0
  %v2993 = vadd.f32 0.0, %v2992
  %v2994 = vpop.f32.mrb[0].mxu0
  %v2995 = vadd.f32 0.0, %v2994
  %2996 = vmatprep.mubr.bf16.mxu0 %v1921
  %2997 = vmatmul.mubr.bf16.gmra.mrb[0].mxu0 %v1920
  %v2998 = vpop.f32.mrb[0].mxu0
  %v2999 = vadd.f32 0.0, %v2998
  %v3000 = vpop.f32.mrb[0].mxu0
  %v3001 = vadd.f32 0.0, %v3000
  %v3002 = vpop.f32.mrb[0].mxu0
  %v3003 = vadd.f32 0.0, %v3002
  %v3004 = vpop.f32.mrb[0].mxu0
  %v3005 = vadd.f32 0.0, %v3004
  %3006 = vmatprep.mubr.bf16.mxu0 %v1925
  %3007 = vmatmul.mubr.bf16.gmra.mrb[0].mxu0 %v1924
  %v3008 = vpop.f32.mrb[0].mxu0
  %v3009 = vadd.f32 0.0, %v3008
  %v3010 = vpop.f32.mrb[0].mxu0
  %v3011 = vadd.f32 0.0, %v3010
  %v3012 = vpop.f32.mrb[0].mxu0
  %v3013 = vadd.f32 0.0, %v3012
  %v3014 = vpop.f32.mrb[0].mxu0
  %v3015 = vadd.f32 0.0, %v3014
  %3016 = vmatprep.mubr.bf16.mxu0 %v1929
  %3017 = vmatmul.mubr.bf16.gmra.mrb[0].mxu0 %v1928
  %v3018 = vpop.f32.mrb[0].mxu0
  %v3019 = vadd.f32 0.0, %v3018
  %v3020 = vpop.f32.mrb[0].mxu0
  %v3021 = vadd.f32 0.0, %v3020
  %v3022 = vpop.f32.mrb[0].mxu0
  %v3023 = vadd.f32 0.0, %v3022
  %v3024 = vpop.f32.mrb[0].mxu0
  %v3025 = vadd.f32 0.0, %v3024
  %3026 = vmatprep.mubr.bf16.mxu0 %v1933
  %3027 = vmatmul.mubr.bf16.gmra.mrb[0].mxu0 %v1932
  %v3028 = vpop.f32.mrb[0].mxu0
  %v3029 = vadd.f32 0.0, %v3028
  %v3030 = vpop.f32.mrb[0].mxu0
  %v3031 = vadd.f32 0.0, %v3030
  %v3032 = vpop.f32.mrb[0].mxu0
  %v3033 = vadd.f32 0.0, %v3032
  %v3034 = vpop.f32.mrb[0].mxu0
  %v3035 = vadd.f32 0.0, %v3034
  %3036 = vmatprep.mubr.bf16.mxu0 %v1937
  %3037 = vmatmul.mubr.bf16.gmra.mrb[0].mxu0 %v1936
  %v3038 = vpop.f32.mrb[0].mxu0
  %v3039 = vadd.f32 0.0, %v3038
  %v3040 = vpop.f32.mrb[0].mxu0
  %v3041 = vadd.f32 0.0, %v3040
  %v3042 = vpop.f32.mrb[0].mxu0
  %v3043 = vadd.f32 0.0, %v3042
  %v3044 = vpop.f32.mrb[0].mxu0
  %v3045 = vadd.f32 0.0, %v3044
  %3046 = vdwg.mxu0
  %3047 = vmatprep.subr.bf16.mxu0 %v2519
  %3048 = vmatpush1.bf16.msra.mxu0 %v2518
  %3049 = vmatprep.subr.bf16.mxu0 %v2523
  %3050 = vmatpush1.bf16.msra.mxu0 %v2522
  %3051 = vmatprep.subr.bf16.mxu0 %v2527
  %3052 = vmatpush1.bf16.msra.mxu0 %v2526
  %3053 = vmatprep.subr.bf16.mxu0 %v2531
  %3054 = vmatpush1.bf16.msra.mxu0 %v2530
  %3055 = vmatprep.subr.bf16.mxu0 %v2535
  %3056 = vmatpush1.bf16.msra.mxu0 %v2534
  %3057 = vmatprep.subr.bf16.mxu0 %v2539
  %3058 = vmatpush1.bf16.msra.mxu0 %v2538
  %3059 = vmatprep.subr.bf16.mxu0 %v2543
  %3060 = vmatpush1.bf16.msra.mxu0 %v2542
  %3061 = vmatprep.subr.bf16.mxu0 %v2547
  %3062 = vmatpush1.bf16.msra.mxu0 %v2546
  %3063 = vmatprep.subr.bf16.mxu0 %v2551
  %3064 = vmatpush1.bf16.msra.mxu0 %v2550
  %3065 = vmatprep.subr.bf16.mxu0 %v2555
  %3066 = vmatpush1.bf16.msra.mxu0 %v2554
  %3067 = vmatprep.subr.bf16.mxu0 %v2559
  %3068 = vmatpush1.bf16.msra.mxu0 %v2558
  %3069 = vmatprep.subr.bf16.mxu0 %v2563
  %3070 = vmatpush1.bf16.msra.mxu0 %v2562
  %3071 = vmatprep.subr.bf16.mxu0 %v2567
  %3072 = vmatpush1.bf16.msra.mxu0 %v2566
  %3073 = vmatprep.subr.bf16.mxu0 %v2571
  %3074 = vmatpush1.bf16.msra.mxu0 %v2570
  %3075 = vmatprep.subr.bf16.mxu0 %v2575
  %3076 = vmatpush1.bf16.msra.mxu0 %v2574
  %3077 = vmatprep.subr.bf16.mxu0 %v2579
  %3078 = vmatpush1.bf16.msra.mxu0 %v2578
  %3079 = vmatprep.mubr.bf16.mxu0 %v1911
  %3080 = vmatmul.mubr.bf16.gmra.mrb[0].mxu0 %v1910
  %v3081 = vpop.f32.mrb[0].mxu0
  %v3082 = vadd.f32 %v2969, %v3081
  %v3083 = vpop.f32.mrb[0].mxu0
  %v3084 = vadd.f32 %v2971, %v3083
  %v3085 = vpop.f32.mrb[0].mxu0
  %v3086 = vadd.f32 %v2973, %v3085
  %v3087 = vpop.f32.mrb[0].mxu0
  %v3088 = vadd.f32 %v2975, %v3087
  %3089 = vmatprep.mubr.bf16.mxu0 %v1915
  %3090 = vmatmul.mubr.bf16.gmra.mrb[0].mxu0 %v1914
  %v3091 = vpop.f32.mrb[0].mxu0
  %v3092 = vadd.f32 %v2979, %v3091
  %v3093 = vpop.f32.mrb[0].mxu0
  %v3094 = vadd.f32 %v2981, %v3093
  %v3095 = vpop.f32.mrb[0].mxu0
  %v3096 = vadd.f32 %v2983, %v3095
  %v3097 = vpop.f32.mrb[0].mxu0
  %v3098 = vadd.f32 %v2985, %v3097
  %3099 = vmatprep.mubr.bf16.mxu0 %v1919
  %3100 = vmatmul.mubr.bf16.gmra.mrb[0].mxu0 %v1918
  %v3101 = vpop.f32.mrb[0].mxu0
  %v3102 = vadd.f32 %v2989, %v3101
  %v3103 = vpop.f32.mrb[0].mxu0
  %v3104 = vadd.f32 %v2991, %v3103
  %v3105 = vpop.f32.mrb[0].mxu0
  %v3106 = vadd.f32 %v2993, %v3105
  %v3107 = vpop.f32.mrb[0].mxu0
  %v3108 = vadd.f32 %v2995, %v3107
  %3109 = vmatprep.mubr.bf16.mxu0 %v1923
  %3110 = vmatmul.mubr.bf16.gmra.mrb[0].mxu0 %v1922
  %v3111 = vpop.f32.mrb[0].mxu0
  %v3112 = vadd.f32 %v2999, %v3111
  %v3113 = vpop.f32.mrb[0].mxu0
  %v3114 = vadd.f32 %v3001, %v3113
  %v3115 = vpop.f32.mrb[0].mxu0
  %v3116 = vadd.f32 %v3003, %v3115
  %v3117 = vpop.f32.mrb[0].mxu0
  %v3118 = vadd.f32 %v3005, %v3117
  %3119 = vmatprep.mubr.bf16.mxu0 %v1927
  %3120 = vmatmul.mubr.bf16.gmra.mrb[0].mxu0 %v1926
  %v3121 = vpop.f32.mrb[0].mxu0
  %v3122 = vadd.f32 %v3009, %v3121
  %v3123 = vpop.f32.mrb[0].mxu0
  %v3124 = vadd.f32 %v3011, %v3123
  %v3125 = vpop.f32.mrb[0].mxu0
  %v3126 = vadd.f32 %v3013, %v3125
  %v3127 = vpop.f32.mrb[0].mxu0
  %v3128 = vadd.f32 %v3015, %v3127
  %3129 = vmatprep.mubr.bf16.mxu0 %v1931
  %3130 = vmatmul.mubr.bf16.gmra.mrb[0].mxu0 %v1930
  %v3131 = vpop.f32.mrb[0].mxu0
  %v3132 = vadd.f32 %v3019, %v3131
  %v3133 = vpop.f32.mrb[0].mxu0
  %v3134 = vadd.f32 %v3021, %v3133
  %v3135 = vpop.f32.mrb[0].mxu0
  %v3136 = vadd.f32 %v3023, %v3135
  %v3137 = vpop.f32.mrb[0].mxu0
  %v3138 = vadd.f32 %v3025, %v3137
  %3139 = vmatprep.mubr.bf16.mxu0 %v1935
  %3140 = vmatmul.mubr.bf16.gmra.mrb[0].mxu0 %v1934
  %v3141 = vpop.f32.mrb[0].mxu0
  %v3142 = vadd.f32 %v3029, %v3141
  %v3143 = vpop.f32.mrb[0].mxu0
  %v3144 = vadd.f32 %v3031, %v3143
  %v3145 = vpop.f32.mrb[0].mxu0
  %v3146 = vadd.f32 %v3033, %v3145
  %v3147 = vpop.f32.mrb[0].mxu0
  %v3148 = vadd.f32 %v3035, %v3147
  %3149 = vmatprep.mubr.bf16.mxu0 %v1939
  %3150 = vmatmul.mubr.bf16.gmra.mrb[0].mxu0 %v1938
  %v3151 = vpop.f32.mrb[0].mxu0
  %v3152 = vadd.f32 %v3039, %v3151
  %v3153 = vpop.f32.mrb[0].mxu0
  %v3154 = vadd.f32 %v3041, %v3153
  %v3155 = vpop.f32.mrb[0].mxu0
  %v3156 = vadd.f32 %v3043, %v3155
  %v3157 = vpop.f32.mrb[0].mxu0
  %v3158 = vadd.f32 %v3045, %v3157
  %3159 = vdwg.mxu0
  %v3160 = vpack.c.bf16 %v2860, %v2856
  %v3161 = vpack.c.bf16 %v2862, %v2858
  %v3162 = vpack.c.bf16 %v3086, %v3082
  %v3163 = vpack.c.bf16 %v3088, %v3084
  %v3164 = vpack.c.bf16 %v2870, %v2866
  %v3165 = vpack.c.bf16 %v2872, %v2868
  %v3166 = vpack.c.bf16 %v3096, %v3092
  %v3167 = vpack.c.bf16 %v3098, %v3094
  %v3168 = vpack.c.bf16 %v2880, %v2876
  %v3169 = vpack.c.bf16 %v2882, %v2878
  %v3170 = vpack.c.bf16 %v3106, %v3102
  %v3171 = vpack.c.bf16 %v3108, %v3104
  %v3172 = vpack.c.bf16 %v2890, %v2886
  %v3173 = vpack.c.bf16 %v2892, %v2888
  %v3174 = vpack.c.bf16 %v3116, %v3112
  %v3175 = vpack.c.bf16 %v3118, %v3114
  %v3176 = vpack.c.bf16 %v2900, %v2896
  %v3177 = vpack.c.bf16 %v2902, %v2898
  %v3178 = vpack.c.bf16 %v3126, %v3122
  %v3179 = vpack.c.bf16 %v3128, %v3124
  %v3180 = vpack.c.bf16 %v2910, %v2906
  %v3181 = vpack.c.bf16 %v2912, %v2908
  %v3182 = vpack.c.bf16 %v3136, %v3132
  %v3183 = vpack.c.bf16 %v3138, %v3134
  %v3184 = vpack.c.bf16 %v2920, %v2916
  %v3185 = vpack.c.bf16 %v2922, %v2918
  %v3186 = vpack.c.bf16 %v3146, %v3142
  %v3187 = vpack.c.bf16 %v3148, %v3144
  %v3188 = vpack.c.bf16 %v2930, %v2926
  %v3189 = vpack.c.bf16 %v2932, %v2928
  %v3190 = vpack.c.bf16 %v3156, %v3152
  %v3191 = vpack.c.bf16 %v3158, %v3154
  %v3192 = vld [vmem:[%s6] sm:$0xf]
  %v3195 = vunpack.c.l.s4 1966171168
  %v3196 = vunpack.c.0.s8 %v3195
  %v3197 = vlaneseq
  %v3198 = vshrl.u32 %v3197, 7
  %v3199 = vsub.s32 %v3196, %v3198
  %v3200 = vrot.slane %v3192, %v3199
  %v3201 = vcombine.high %v3200, %v3200
  %v3203 = vunpack.c.l.s4 1966171168
  %v3204 = vunpack.c.0.s8 %v3203
  %v3205 = vlaneseq
  %v3206 = vshrl.u32 %v3205, 7
  %v3207 = vsub.s32 %v3204, %v3206
  %v3208 = vrot.slane %v3200, %v3207
  %v3210 = vunpack.c.l.s4 1966171168
  %v3211 = vunpack.c.0.s8 %v3210
  %v3212 = vlaneseq
  %v3213 = vshrl.u32 %v3212, 7
  %v3214 = vsub.s32 %v3211, %v3213
  %v3215 = vrot.slane %v3201, %v3214
  %v3216 = vcombine.high %v3208, %v3208
  %v3217 = vcombine.high %v3215, %v3215
  %v3219 = vpack.i.b16 %v3208, %v3208
  %v3221 = vlaneseq
  %v3222 = vshrl.u32 %v3221, 7
  %v3223 = vsub.s32 0, %v3222
  %v3224 = vrot.slane %v3219, %v3223
  %v3226 = vpack.i.b16 %v3215, %v3215
  %v3228 = vlaneseq
  %v3229 = vshrl.u32 %v3228, 7
  %v3230 = vsub.s32 0, %v3229
  %v3231 = vrot.slane %v3226, %v3230
  %v3233 = vpack.i.b16 %v3216, %v3216
  %v3235 = vlaneseq
  %v3236 = vshrl.u32 %v3235, 7
  %v3237 = vsub.s32 0, %v3236
  %v3238 = vrot.slane %v3233, %v3237
  %v3240 = vpack.i.b16 %v3217, %v3217
  %v3242 = vlaneseq
  %v3243 = vshrl.u32 %v3242, 7
  %v3244 = vsub.s32 0, %v3243
  %v3245 = vrot.slane %v3240, %v3244
  %v3246 = vadd.bf16 %v3160, %v3224
  %v3247 = vadd.bf16 %v3161, %v3231
  %v3248 = vadd.bf16 %v3162, %v3238
  %v3249 = vadd.bf16 %v3163, %v3245
  %v3250 = vadd.bf16 %v3164, %v3224
  %v3251 = vadd.bf16 %v3165, %v3231
  %v3252 = vadd.bf16 %v3166, %v3238
  %v3253 = vadd.bf16 %v3167, %v3245
  %v3254 = vadd.bf16 %v3168, %v3224
  %v3255 = vadd.bf16 %v3169, %v3231
  %v3256 = vadd.bf16 %v3170, %v3238
  %v3257 = vadd.bf16 %v3171, %v3245
  %v3258 = vadd.bf16 %v3172, %v3224
  %v3259 = vadd.bf16 %v3173, %v3231
  %v3260 = vadd.bf16 %v3174, %v3238
  %v3261 = vadd.bf16 %v3175, %v3245
  %v3262 = vadd.bf16 %v3176, %v3224
  %v3263 = vadd.bf16 %v3177, %v3231
  %v3264 = vadd.bf16 %v3178, %v3238
  %v3265 = vadd.bf16 %v3179, %v3245
  %v3266 = vadd.bf16 %v3180, %v3224
  %v3267 = vadd.bf16 %v3181, %v3231
  %v3268 = vadd.bf16 %v3182, %v3238
  %v3269 = vadd.bf16 %v3183, %v3245
  %v3270 = vadd.bf16 %v3184, %v3224
  %v3271 = vadd.bf16 %v3185, %v3231
  %v3272 = vadd.bf16 %v3186, %v3238
  %v3273 = vadd.bf16 %v3187, %v3245
  %v3274 = vadd.bf16 %v3188, %v3224
  %v3275 = vadd.bf16 %v3189, %v3231
  %v3276 = vadd.bf16 %v3190, %v3238
  %v3277 = vadd.bf16 %v3191, %v3245
  %v3278 = vtanh.bf16.pop %v3246
  %v3279 = vtanh.bf16.pop %v3247
  %v3280 = vtanh.bf16.pop %v3248
  %v3281 = vtanh.bf16.pop %v3249
  %v3282 = vtanh.bf16.pop %v3250
  %v3283 = vtanh.bf16.pop %v3251
  %v3284 = vtanh.bf16.pop %v3252
  %v3285 = vtanh.bf16.pop %v3253
  %v3286 = vtanh.bf16.pop %v3254
  %v3287 = vtanh.bf16.pop %v3255
  %v3288 = vtanh.bf16.pop %v3256
  %v3289 = vtanh.bf16.pop %v3257
  %v3290 = vtanh.bf16.pop %v3258
  %v3291 = vtanh.bf16.pop %v3259
  %v3292 = vtanh.bf16.pop %v3260
  %v3293 = vtanh.bf16.pop %v3261
  %v3294 = vtanh.bf16.pop %v3262
  %v3295 = vtanh.bf16.pop %v3263
  %v3296 = vtanh.bf16.pop %v3264
  %v3297 = vtanh.bf16.pop %v3265
  %v3298 = vtanh.bf16.pop %v3266
  %v3299 = vtanh.bf16.pop %v3267
  %v3300 = vtanh.bf16.pop %v3268
  %v3301 = vtanh.bf16.pop %v3269
  %v3302 = vtanh.bf16.pop %v3270
  %v3303 = vtanh.bf16.pop %v3271
  %v3304 = vtanh.bf16.pop %v3272
  %v3305 = vtanh.bf16.pop %v3273
  %v3306 = vtanh.bf16.pop %v3274
  %v3307 = vtanh.bf16.pop %v3275
  %v3308 = vtanh.bf16.pop %v3276
  %v3309 = vtanh.bf16.pop %v3277
  %v3310 = vld [vmem:[%s7] sm:$0xf]
  %v3313 = vunpack.c.l.s4 1966171168
  %v3314 = vunpack.c.0.s8 %v3313
  %v3315 = vlaneseq
  %v3316 = vshrl.u32 %v3315, 7
  %v3317 = vsub.s32 %v3314, %v3316
  %v3318 = vrot.slane %v3310, %v3317
  %v3319 = vcombine.high %v3318, %v3318
  %v3321 = vunpack.c.l.s4 1966171168
  %v3322 = vunpack.c.0.s8 %v3321
  %v3323 = vlaneseq
  %v3324 = vshrl.u32 %v3323, 7
  %v3325 = vsub.s32 %v3322, %v3324
  %v3326 = vrot.slane %v3318, %v3325
  %v3328 = vunpack.c.l.s4 1966171168
  %v3329 = vunpack.c.0.s8 %v3328
  %v3330 = vlaneseq
  %v3331 = vshrl.u32 %v3330, 7
  %v3332 = vsub.s32 %v3329, %v3331
  %v3333 = vrot.slane %v3319, %v3332
  %v3334 = vcombine.high %v3326, %v3326
  %v3335 = vcombine.high %v3333, %v3333
  %v3337 = vpack.i.b16 %v3326, %v3326
  %v3339 = vlaneseq
  %v3340 = vshrl.u32 %v3339, 7
  %v3341 = vsub.s32 0, %v3340
  %v3342 = vrot.slane %v3337, %v3341
  %v3344 = vpack.i.b16 %v3333, %v3333
  %v3346 = vlaneseq
  %v3347 = vshrl.u32 %v3346, 7
  %v3348 = vsub.s32 0, %v3347
  %v3349 = vrot.slane %v3344, %v3348
  %v3351 = vpack.i.b16 %v3334, %v3334
  %v3353 = vlaneseq
  %v3354 = vshrl.u32 %v3353, 7
  %v3355 = vsub.s32 0, %v3354
  %v3356 = vrot.slane %v3351, %v3355
  %v3358 = vpack.i.b16 %v3335, %v3335
  %v3360 = vlaneseq
  %v3361 = vshrl.u32 %v3360, 7
  %v3362 = vsub.s32 0, %v3361
  %v3363 = vrot.slane %v3358, %v3362
  %v3364 = vmul.bf16 %v3278, %v3342
  %v3365 = vmul.bf16 %v3279, %v3349
  %v3366 = vmul.bf16 %v3280, %v3356
  %v3367 = vmul.bf16 %v3281, %v3363
  %v3368 = vmul.bf16 %v3282, %v3342
  %v3369 = vmul.bf16 %v3283, %v3349
  %v3370 = vmul.bf16 %v3284, %v3356
  %v3371 = vmul.bf16 %v3285, %v3363
  %v3372 = vmul.bf16 %v3286, %v3342
  %v3373 = vmul.bf16 %v3287, %v3349
  %v3374 = vmul.bf16 %v3288, %v3356
  %v3375 = vmul.bf16 %v3289, %v3363
  %v3376 = vmul.bf16 %v3290, %v3342
  %v3377 = vmul.bf16 %v3291, %v3349
  %v3378 = vmul.bf16 %v3292, %v3356
  %v3379 = vmul.bf16 %v3293, %v3363
  %v3380 = vmul.bf16 %v3294, %v3342
  %v3381 = vmul.bf16 %v3295, %v3349
  %v3382 = vmul.bf16 %v3296, %v3356
  %v3383 = vmul.bf16 %v3297, %v3363
  %v3384 = vmul.bf16 %v3298, %v3342
  %v3385 = vmul.bf16 %v3299, %v3349
  %v3386 = vmul.bf16 %v3300, %v3356
  %v3387 = vmul.bf16 %v3301, %v3363
  %v3388 = vmul.bf16 %v3302, %v3342
  %v3389 = vmul.bf16 %v3303, %v3349
  %v3390 = vmul.bf16 %v3304, %v3356
  %v3391 = vmul.bf16 %v3305, %v3363
  %v3392 = vmul.bf16 %v3306, %v3342
  %v3393 = vmul.bf16 %v3307, %v3349
  %v3394 = vmul.bf16 %v3308, %v3356
  %v3395 = vmul.bf16 %v3309, %v3363
  %v3396 = vunpack.c.l.bf16 %v3364
  %v3397 = vunpack.c.l.bf16 %v3365
  %v3398 = vunpack.c.l.bf16 %v3366
  %v3399 = vunpack.c.l.bf16 %v3367
  %v3400 = vunpack.c.h.bf16 %v3364
  %v3401 = vunpack.c.h.bf16 %v3365
  %v3402 = vunpack.c.h.bf16 %v3366
  %v3403 = vunpack.c.h.bf16 %v3367
  %v3404 = vunpack.c.l.bf16 %v3368
  %v3405 = vunpack.c.l.bf16 %v3369
  %v3406 = vunpack.c.l.bf16 %v3370
  %v3407 = vunpack.c.l.bf16 %v3371
  %v3408 = vunpack.c.h.bf16 %v3368
  %v3409 = vunpack.c.h.bf16 %v3369
  %v3410 = vunpack.c.h.bf16 %v3370
  %v3411 = vunpack.c.h.bf16 %v3371
  %v3412 = vunpack.c.l.bf16 %v3372
  %v3413 = vunpack.c.l.bf16 %v3373
  %v3414 = vunpack.c.l.bf16 %v3374
  %v3415 = vunpack.c.l.bf16 %v3375
  %v3416 = vunpack.c.h.bf16 %v3372
  %v3417 = vunpack.c.h.bf16 %v3373
  %v3418 = vunpack.c.h.bf16 %v3374
  %v3419 = vunpack.c.h.bf16 %v3375
  %v3420 = vunpack.c.l.bf16 %v3376
  %v3421 = vunpack.c.l.bf16 %v3377
  %v3422 = vunpack.c.l.bf16 %v3378
  %v3423 = vunpack.c.l.bf16 %v3379
  %v3424 = vunpack.c.h.bf16 %v3376
  %v3425 = vunpack.c.h.bf16 %v3377
  %v3426 = vunpack.c.h.bf16 %v3378
  %v3427 = vunpack.c.h.bf16 %v3379
  %v3428 = vunpack.c.l.bf16 %v3380
  %v3429 = vunpack.c.l.bf16 %v3381
  %v3430 = vunpack.c.l.bf16 %v3382
  %v3431 = vunpack.c.l.bf16 %v3383
  %v3432 = vunpack.c.h.bf16 %v3380
  %v3433 = vunpack.c.h.bf16 %v3381
  %v3434 = vunpack.c.h.bf16 %v3382
  %v3435 = vunpack.c.h.bf16 %v3383
  %v3436 = vunpack.c.l.bf16 %v3384
  %v3437 = vunpack.c.l.bf16 %v3385
  %v3438 = vunpack.c.l.bf16 %v3386
  %v3439 = vunpack.c.l.bf16 %v3387
  %v3440 = vunpack.c.h.bf16 %v3384
  %v3441 = vunpack.c.h.bf16 %v3385
  %v3442 = vunpack.c.h.bf16 %v3386
  %v3443 = vunpack.c.h.bf16 %v3387
  %v3444 = vunpack.c.l.bf16 %v3388
  %v3445 = vunpack.c.l.bf16 %v3389
  %v3446 = vunpack.c.l.bf16 %v3390
  %v3447 = vunpack.c.l.bf16 %v3391
  %v3448 = vunpack.c.h.bf16 %v3388
  %v3449 = vunpack.c.h.bf16 %v3389
  %v3450 = vunpack.c.h.bf16 %v3390
  %v3451 = vunpack.c.h.bf16 %v3391
  %v3452 = vunpack.c.l.bf16 %v3392
  %v3453 = vunpack.c.l.bf16 %v3393
  %v3454 = vunpack.c.l.bf16 %v3394
  %v3455 = vunpack.c.l.bf16 %v3395
  %v3456 = vunpack.c.h.bf16 %v3392
  %v3457 = vunpack.c.h.bf16 %v3393
  %v3458 = vunpack.c.h.bf16 %v3394
  %v3459 = vunpack.c.h.bf16 %v3395
  %v3460 = vadd.f32 %v3396, %v3397
  %v3461 = vadd.f32 %v3460, %v3398
  %v3462 = vadd.f32 %v3461, %v3399
  %3463 = vadd.xlane.f32.xlu0 %v3462
  %v3464 = vpop.xlane.xlu0 %3463
  %v3465 = vadd.f32 %v3400, %v3401
  %v3466 = vadd.f32 %v3465, %v3402
  %v3467 = vadd.f32 %v3466, %v3403
  %3468 = vadd.xlane.f32.xlu0 %v3467
  %v3469 = vpop.xlane.xlu0 %3468
  %v3470 = vadd.f32 %v3404, %v3405
  %v3471 = vadd.f32 %v3470, %v3406
  %v3472 = vadd.f32 %v3471, %v3407
  %3473 = vadd.xlane.f32.xlu0 %v3472
  %v3474 = vpop.xlane.xlu0 %3473
  %v3475 = vadd.f32 %v3408, %v3409
  %v3476 = vadd.f32 %v3475, %v3410
  %v3477 = vadd.f32 %v3476, %v3411
  %3478 = vadd.xlane.f32.xlu0 %v3477
  %v3479 = vpop.xlane.xlu0 %3478
  %v3480 = vadd.f32 %v3412, %v3413
  %v3481 = vadd.f32 %v3480, %v3414
  %v3482 = vadd.f32 %v3481, %v3415
  %3483 = vadd.xlane.f32.xlu0 %v3482
  %v3484 = vpop.xlane.xlu0 %3483
  %v3485 = vadd.f32 %v3416, %v3417
  %v3486 = vadd.f32 %v3485, %v3418
  %v3487 = vadd.f32 %v3486, %v3419
  %3488 = vadd.xlane.f32.xlu0 %v3487
  %v3489 = vpop.xlane.xlu0 %3488
  %v3490 = vadd.f32 %v3420, %v3421
  %v3491 = vadd.f32 %v3490, %v3422
  %v3492 = vadd.f32 %v3491, %v3423
  %3493 = vadd.xlane.f32.xlu0 %v3492
  %v3494 = vpop.xlane.xlu0 %3493
  %v3495 = vadd.f32 %v3424, %v3425
  %v3496 = vadd.f32 %v3495, %v3426
  %v3497 = vadd.f32 %v3496, %v3427
  %3498 = vadd.xlane.f32.xlu0 %v3497
  %v3499 = vpop.xlane.xlu0 %3498
  %v3500 = vadd.f32 %v3428, %v3429
  %v3501 = vadd.f32 %v3500, %v3430
  %v3502 = vadd.f32 %v3501, %v3431
  %3503 = vadd.xlane.f32.xlu0 %v3502
  %v3504 = vpop.xlane.xlu0 %3503
  %v3505 = vadd.f32 %v3432, %v3433
  %v3506 = vadd.f32 %v3505, %v3434
  %v3507 = vadd.f32 %v3506, %v3435
  %3508 = vadd.xlane.f32.xlu0 %v3507
  %v3509 = vpop.xlane.xlu0 %3508
  %v3510 = vadd.f32 %v3436, %v3437
  %v3511 = vadd.f32 %v3510, %v3438
  %v3512 = vadd.f32 %v3511, %v3439
  %3513 = vadd.xlane.f32.xlu0 %v3512
  %v3514 = vpop.xlane.xlu0 %3513
  %v3515 = vadd.f32 %v3440, %v3441
  %v3516 = vadd.f32 %v3515, %v3442
  %v3517 = vadd.f32 %v3516, %v3443
  %3518 = vadd.xlane.f32.xlu0 %v3517
  %v3519 = vpop.xlane.xlu0 %3518
  %v3520 = vadd.f32 %v3444, %v3445
  %v3521 = vadd.f32 %v3520, %v3446
  %v3522 = vadd.f32 %v3521, %v3447
  %3523 = vadd.xlane.f32.xlu0 %v3522
  %v3524 = vpop.xlane.xlu0 %3523
  %v3525 = vadd.f32 %v3448, %v3449
  %v3526 = vadd.f32 %v3525, %v3450
  %v3527 = vadd.f32 %v3526, %v3451
  %3528 = vadd.xlane.f32.xlu0 %v3527
  %v3529 = vpop.xlane.xlu0 %3528
  %v3530 = vadd.f32 %v3452, %v3453
  %v3531 = vadd.f32 %v3530, %v3454
  %v3532 = vadd.f32 %v3531, %v3455
  %3533 = vadd.xlane.f32.xlu0 %v3532
  %v3534 = vpop.xlane.xlu0 %3533
  %v3535 = vadd.f32 %v3456, %v3457
  %v3536 = vadd.f32 %v3535, %v3458
  %v3537 = vadd.f32 %v3536, %v3459
  %3538 = vadd.xlane.f32.xlu0 %v3537
  %v3539 = vpop.xlane.xlu0 %3538
  %s3540 = sld [smem:[#allocation2]]
  %v3541 = vstv %s3540
  %v3542 = vadd.f32 %v3464, %v3541
  %v3543 = vadd.f32 %v3469, %v3541
  %v3544 = vadd.f32 %v3474, %v3541
  %v3545 = vadd.f32 %v3479, %v3541
  %v3546 = vadd.f32 %v3484, %v3541
  %v3547 = vadd.f32 %v3489, %v3541
  %v3548 = vadd.f32 %v3494, %v3541
  %v3549 = vadd.f32 %v3499, %v3541
  %v3550 = vadd.f32 %v3504, %v3541
  %v3551 = vadd.f32 %v3509, %v3541
  %v3552 = vadd.f32 %v3514, %v3541
  %v3553 = vadd.f32 %v3519, %v3541
  %v3554 = vadd.f32 %v3524, %v3541
  %v3555 = vadd.f32 %v3529, %v3541
  %v3556 = vadd.f32 %v3534, %v3541
  %v3557 = vadd.f32 %v3539, %v3541
  %v3574 = vlaneseq
  %v3575 = vand.u32 %v3574, 127
  %v3576 = vlaneseq
  %v3577 = vshrl.u32 %v3576, 7
  %v3578 = vsub.s32 %v3575, %v3577
  %v3579 = vrot.slane %v3542, %v3578
  %v3580 = vadd.s32 %v3575, 4294967288
  %v3581 = vlaneseq
  %v3582 = vshrl.u32 %v3581, 7
  %v3583 = vsub.s32 %v3580, %v3582
  %v3584 = vrot.slane %v3543, %v3583
  %vm3585 = vcmask 130112
  %v3586 = vsel %vm3585, %v3584, %v3579
  %v3587 = vadd.s32 %v3575, 4294967280
  %v3588 = vlaneseq
  %v3589 = vshrl.u32 %v3588, 7
  %v3590 = vsub.s32 %v3587, %v3589
  %v3591 = vrot.slane %v3544, %v3590
  %vm3592 = vcmask 195712
  %v3593 = vsel %vm3592, %v3591, %v3586
  %v3594 = vadd.s32 %v3575, 4294967272
  %v3595 = vlaneseq
  %v3596 = vshrl.u32 %v3595, 7
  %v3597 = vsub.s32 %v3594, %v3596
  %v3598 = vrot.slane %v3545, %v3597
  %vm3599 = vcmask 261312
  %v3600 = vsel %vm3599, %v3598, %v3593
  %v3601 = vadd.s32 %v3575, 4294967264
  %v3602 = vlaneseq
  %v3603 = vshrl.u32 %v3602, 7
  %v3604 = vsub.s32 %v3601, %v3603
  %v3605 = vrot.slane %v3546, %v3604
  %vm3606 = vcmask 326912
  %v3607 = vsel %vm3606, %v3605, %v3600
  %v3608 = vadd.s32 %v3575, 4294967256
  %v3609 = vlaneseq
  %v3610 = vshrl.u32 %v3609, 7
  %v3611 = vsub.s32 %v3608, %v3610
  %v3612 = vrot.slane %v3547, %v3611
  %vm3613 = vcmask 392512
  %v3614 = vsel %vm3613, %v3612, %v3607
  %v3615 = vadd.s32 %v3575, 4294967248
  %v3616 = vlaneseq
  %v3617 = vshrl.u32 %v3616, 7
  %v3618 = vsub.s32 %v3615, %v3617
  %v3619 = vrot.slane %v3548, %v3618
  %vm3620 = vcmask 458112
  %v3621 = vsel %vm3620, %v3619, %v3614
  %v3622 = vadd.s32 %v3575, 4294967240
  %v3623 = vlaneseq
  %v3624 = vshrl.u32 %v3623, 7
  %v3625 = vsub.s32 %v3622, %v3624
  %v3626 = vrot.slane %v3549, %v3625
  %vm3627 = vcmask 523712
  %v3628 = vsel %vm3627, %v3626, %v3621
  %v3629 = vadd.s32 %v3575, 4294967232
  %v3630 = vlaneseq
  %v3631 = vshrl.u32 %v3630, 7
  %v3632 = vsub.s32 %v3629, %v3631
  %v3633 = vrot.slane %v3550, %v3632
  %vm3634 = vcmask 589312
  %v3635 = vsel %vm3634, %v3633, %v3628
  %v3636 = vadd.s32 %v3575, 4294967224
  %v3637 = vlaneseq
  %v3638 = vshrl.u32 %v3637, 7
  %v3639 = vsub.s32 %v3636, %v3638
  %v3640 = vrot.slane %v3551, %v3639
  %vm3641 = vcmask 654912
  %v3642 = vsel %vm3641, %v3640, %v3635
  %v3643 = vadd.s32 %v3575, 4294967216
  %v3644 = vlaneseq
  %v3645 = vshrl.u32 %v3644, 7
  %v3646 = vsub.s32 %v3643, %v3645
  %v3647 = vrot.slane %v3552, %v3646
  %vm3648 = vcmask 720512
  %v3649 = vsel %vm3648, %v3647, %v3642
  %v3650 = vadd.s32 %v3575, 4294967208
  %v3651 = vlaneseq
  %v3652 = vshrl.u32 %v3651, 7
  %v3653 = vsub.s32 %v3650, %v3652
  %v3654 = vrot.slane %v3553, %v3653
  %vm3655 = vcmask 786112
  %v3656 = vsel %vm3655, %v3654, %v3649
  %v3657 = vadd.s32 %v3575, 4294967200
  %v3658 = vlaneseq
  %v3659 = vshrl.u32 %v3658, 7
  %v3660 = vsub.s32 %v3657, %v3659
  %v3661 = vrot.slane %v3554, %v3660
  %vm3662 = vcmask 851712
  %v3663 = vsel %vm3662, %v3661, %v3656
  %v3664 = vadd.s32 %v3575, 4294967192
  %v3665 = vlaneseq
  %v3666 = vshrl.u32 %v3665, 7
  %v3667 = vsub.s32 %v3664, %v3666
  %v3668 = vrot.slane %v3555, %v3667
  %vm3669 = vcmask 917312
  %v3670 = vsel %vm3669, %v3668, %v3663
  %v3671 = vadd.s32 %v3575, 4294967184
  %v3672 = vlaneseq
  %v3673 = vshrl.u32 %v3672, 7
  %v3674 = vsub.s32 %v3671, %v3673
  %v3675 = vrot.slane %v3556, %v3674
  %vm3676 = vcmask 982912
  %v3677 = vsel %vm3676, %v3675, %v3670
  %v3678 = vadd.s32 %v3575, 4294967176
  %v3679 = vlaneseq
  %v3680 = vshrl.u32 %v3679, 7
  %v3681 = vsub.s32 %v3678, %v3680
  %v3682 = vrot.slane %v3557, %v3681
  %vm3683 = vcmask 1048512
  %v3684 = vsel %vm3683, %v3682, %v3677
  %3686 = vst [vmem:[%s9] sm:$0x1] %v3684
  // Predicated region
  $region38: #{mlp_forward.1} parent=0 // pred_check
    _
  $region39: #{mlp_forward.1} parent=0 // pred_check_branch
    %3688 = sbr.rel (0) target = $region41
  $region40: #{mlp_forward.1} parent=0 // pred_region
    _
  $region41: #{mlp_forward.1} parent=0 // pred_fallthru
    _
  // Predicated region
  $region42: #{mlp_forward.1} parent=0 // pred_check
    _
  $region43: #{mlp_forward.1} parent=0 // pred_check_branch
    %3690 = sbr.rel (0) target = $region45
  $region44: #{mlp_forward.1} parent=0 // pred_region
    _
  $region45: #{mlp_forward.1} parent=0 // pred_fallthru
    _

</llo_original>
